<compile_context>
chip_gen: v6e
topology: v6e:2x2x1
jax: 0.10.0
libtpu: 0.0.40
codegen_flags: <defaults>
</compile_context>

<pallas_src>
import math

import jax
import jax.numpy as jnp
from jax.experimental import pallas as pl
from jax.experimental.pallas import tpu as pltpu

# ---- synthetic model config (small, TPU-tile friendly) ----------------------
B, S, D = 2, 8, 128          # batch, sequence, hidden
H, DH = 4, 32                # heads, head dim
HD = H * DH                  # fused head width (=128, lane-dense)
HH = DH // 2                 # rotate-half shift within a head
F = 256                      # MLP intermediate
L = 2                        # decoder layers
V = 128                      # vocab size
NUM_CLASSES = 2              # classifier head
CPAD = 128                   # classifier output padded to a full lane tile
EPS = 1e-6


# ---- shared math (used by both the Pallas kernel and the pure-JAX reference) -
def _rmsnorm(v, w):
    var = jnp.mean(v * v, axis=-1, keepdims=True)
    return v * jax.lax.rsqrt(var + EPS) * w


def _build_bias(key_valid_row):
    """key_valid_row: (1, S) f32, 1.0 = real token. Returns (S, S) additive bias."""
    rows = jax.lax.broadcasted_iota(jnp.int32, (S, S), 0)
    cols = jax.lax.broadcasted_iota(jnp.int32, (S, S), 1)
    allowed = (cols <= rows) & jnp.broadcast_to(key_valid_row > 0.5, (S, S))
    return jnp.where(allowed, 0.0, -1e9).astype(jnp.float32)


def _rope(v, cos, sin_a, sin_b, roll):
    # Rotate-half within each 32-wide head of the fused head-major (.., H*DH)
    # layout, expressed as two full-width lane rotations (XLU) + VPU elementwise.
    # Roll semantics are jnp.roll-compatible: roll(v, s)[c] = v[(c - s) mod N].
    return v * cos + roll(v, HD - HH) * sin_a + roll(v, HH) * sin_b


def _decoder_layer(h, bias, cos, sin_a, sin_b, l,
                   ln1_all, ln2_all, wqkv_all, wo_all, wgu_all, wd_all,
                   roll, recip, last_only):
    """One Llama-style decoder layer on fused lane-dense weights.

    h: (S, D) f32. Returns (S, D), or (1, D) (last query row only) if last_only.
    Weight containers are indexed at point of use to keep live ranges small.
    """
    scale = 1.0 / math.sqrt(DH)

    # ---- attention ----------------------------------------------------------
    xn = _rmsnorm(h, ln1_all[l].astype(jnp.float32)).astype(jnp.bfloat16)   # (S, D)
    qkv = jnp.dot(xn, wqkv_all[l], preferred_element_type=jnp.float32)      # (S, 3*HD)
    q = _rope(qkv[:, :HD], cos, sin_a, sin_b, roll).astype(jnp.bfloat16)
    k = _rope(qkv[:, HD:2 * HD], cos, sin_a, sin_b, roll).astype(jnp.bfloat16)
    v = qkv[:, 2 * HD:].astype(jnp.bfloat16)

    if last_only:                       # only the last query row is consumed
        q = q[S - 1:S]
        bias = bias[S - 1:S]
        h = h[S - 1:S]

    heads = []
    for hd in range(H):
        q_h = q[:, hd * DH:(hd + 1) * DH]
        k_h = k[:, hd * DH:(hd + 1) * DH]
        v_h = v[:, hd * DH:(hd + 1) * DH]
        s = jax.lax.dot_general(q_h, k_h, (((1,), (1,)), ((), ())),
                                preferred_element_type=jnp.float32) * scale + bias
        p = jnp.exp(s - jnp.max(s, axis=-1, keepdims=True))
        p = p * recip(jnp.sum(p, axis=-1, keepdims=True))
        heads.append(jnp.dot(p.astype(jnp.bfloat16), v_h,
                             preferred_element_type=jnp.float32))
    attn = jnp.concatenate(heads, axis=-1).astype(jnp.bfloat16)             # (M, HD)
    h = h + jnp.dot(attn, wo_all[l], preferred_element_type=jnp.float32)    # (M, D)

    # ---- SwiGLU MLP (fused gate||up) ---------------------------------------
    xn2 = _rmsnorm(h, ln2_all[l].astype(jnp.float32)).astype(jnp.bfloat16)
    gu = jnp.dot(xn2, wgu_all[l], preferred_element_type=jnp.float32)       # (M, 2F)
    g, u = gu[:, :F], gu[:, F:]
    act = (g * recip(1.0 + jnp.exp(-g)) * u).astype(jnp.bfloat16)
    return h + jnp.dot(act, wd_all[l], preferred_element_type=jnp.float32)


# ---- Pallas kernel: decoder stack + classifier head for one batch element ----
def classifier_kernel(x_ref, mask_ref, cos_ref, sina_ref, sinb_ref,
                      ln1_ref, ln2_ref, lnf_ref,
                      wqkv_ref, wo_ref, wgu_ref, wd_ref,
                      wc_ref, bc_ref, out_ref):
    roll = lambda a, sh: pltpu.roll(a, sh, axis=1)        # XLU lane rotate
    recip = lambda a: pl.reciprocal(a, approx=True)       # EUP reciprocal

    h = x_ref[0].astype(jnp.float32)                      # (S, D)
    bias = _build_bias(mask_ref[0])                       # (S, S) built in-kernel
    cos, sin_a, sin_b = cos_ref[...], sina_ref[...], sinb_ref[...]

    for l in range(L - 1):                                # full layers
        h = _decoder_layer(h, bias, cos, sin_a, sin_b, l,
                           ln1_ref, ln2_ref, wqkv_ref, wo_ref, wgu_ref, wd_ref,
                           roll, recip, last_only=False)
    # Final layer: short-circuit to the last query row only.
    h = _decoder_layer(h, bias, cos, sin_a, sin_b, L - 1,
                       ln1_ref, ln2_ref, wqkv_ref, wo_ref, wgu_ref, wd_ref,
                       roll, recip, last_only=True)       # (1, D)

    eos = _rmsnorm(h, lnf_ref[...].astype(jnp.float32)).astype(jnp.bfloat16)
    # TODO(synk): nn.Dropout(0.1) is identity at inference; train-mode dropout not modeled.
    logits = jnp.dot(eos, wc_ref[...], preferred_element_type=jnp.float32) + bc_ref[...]
    out_ref[0] = logits.astype(out_ref.dtype)             # (1, CPAD) lane-dense


# ---- glue: embeddings, RoPE tables, pallas_call ------------------------------
def _rope_tables():
    pos = jnp.arange(S, dtype=jnp.float32)
    inv_freq = 1.0 / (10000.0 ** (jnp.arange(0, DH, 2, dtype=jnp.float32) / DH))
    ang = pos[:, None] * inv_freq[None, :]                            # (S, DH/2)
    cos = jnp.concatenate([jnp.cos(ang), jnp.cos(ang)], axis=-1)      # (S, DH)
    sin = jnp.concatenate([jnp.sin(ang), jnp.sin(ang)], axis=-1)      # (S, DH)
    j = jnp.arange(DH)[None, :]
    sin_a = jnp.where(j < HH, -sin, 0.0)       # pairs with roll(v, HD-HH) = v[c+HH]
    sin_b = jnp.where(j >= HH, sin, 0.0)       # pairs with roll(v, HH)    = v[c-HH]
    # tile to the fused head-major (S, H*DH) layout (tables repeat per head)
    return (jnp.tile(cos, (1, H)), jnp.tile(sin_a, (1, H)), jnp.tile(sin_b, (1, H)))


def _rep2(shape):
    return pl.BlockSpec(shape, lambda b: (0, 0))


def _rep3(shape):
    return pl.BlockSpec(shape, lambda b: (0, 0, 0))


def vllm_classifier_forward(input_ids, attention_mask, params):
    # prepare_inputs_embeds: token-embedding lookup (glue, JAX).
    # TODO(synk): image branch of prepare_inputs_embeds (vision tower) not modeled.
    emb = jnp.take(params["embed"], input_ids, axis=0)                # (B, S, D) bf16
    mask_f = attention_mask.astype(jnp.float32).reshape(B, 1, S)      # tiny mask input
    cos, sin_a, sin_b = _rope_tables()

    in_specs = [
        pl.BlockSpec((1, S, D), lambda b: (b, 0, 0)),     # embeddings
        pl.BlockSpec((1, 1, S), lambda b: (b, 0, 0)),     # key-validity mask
        _rep2((S, HD)), _rep2((S, HD)), _rep2((S, HD)),   # rope cos / signed-sin tables
        _rep3((L, 1, D)), _rep3((L, 1, D)), _rep2((1, D)),  # ln1, ln2, final ln
        _rep3((L, D, 3 * HD)),                            # fused QKV weight
        _rep3((L, HD, D)),                                # fused output projection
        _rep3((L, D, 2 * F)),                             # fused gate||up
        _rep3((L, F, D)),                                 # down projection
        _rep2((D, CPAD)), _rep2((1, CPAD)),               # classifier (lane-padded)
    ]
    out = pl.pallas_call(
        classifier_kernel,
        out_shape=jax.ShapeDtypeStruct((B, 1, CPAD), jnp.float32),
        grid=(B,),
        in_specs=in_specs,
        out_specs=pl.BlockSpec((1, 1, CPAD), lambda b: (b, 0, 0)),
        compiler_params=pltpu.CompilerParams(dimension_semantics=("parallel",)),
    )(emb, mask_f, cos, sin_a, sin_b,
      params["ln1"], params["ln2"], params["lnf"],
      params["wqkv"], params["wo"], params["wgu"], params["wd"],
      params["wc"], params["bc"])
    return out[:, 0, :NUM_CLASSES]                                    # (B, num_classes)


# ---- pure-JAX reference (same math, no short-circuit, no Pallas) -------------
def reference_forward(input_ids, attention_mask, params):
    emb = jnp.take(params["embed"], input_ids, axis=0)
    cos, sin_a, sin_b = _rope_tables()
    roll = lambda a, sh: jnp.roll(a, sh, axis=1)
    recip = lambda a: 1.0 / a
    logits = []
    for b in range(B):
        h = emb[b].astype(jnp.float32)
        bias = _build_bias(attention_mask[b:b + 1].astype(jnp.float32))
        for l in range(L):                       # full layers everywhere
            h = _decoder_layer(h, bias, cos, sin_a, sin_b, l,
                               params["ln1"], params["ln2"],
                               params["wqkv"], params["wo"],
                               params["wgu"], params["wd"],
                               roll, recip, last_only=False)
        eos = _rmsnorm(h[S - 1:S], params["lnf"].astype(jnp.float32)).astype(jnp.bfloat16)
        lg = jnp.dot(eos, params["wc"], preferred_element_type=jnp.float32) + params["bc"]
        logits.append(lg[0, :NUM_CLASSES])
    return jnp.stack(logits)                                          # (B, num_classes)


# ---- deterministic synthetic parameters --------------------------------------
def init_params(key):
    ks = jax.random.split(key, 12)
    std = 0.02

    def nrm(k, shape):
        return (std * jax.random.normal(k, shape, jnp.float32)).astype(jnp.bfloat16)

    wc = jnp.zeros((D, CPAD), jnp.float32)
    wc = wc.at[:, :NUM_CLASSES].set(std * jax.random.normal(ks[10], (D, NUM_CLASSES)))
    bc = jnp.zeros((1, CPAD), jnp.float32)
    bc = bc.at[:, :NUM_CLASSES].set(0.01 * jax.random.normal(ks[11], (1, NUM_CLASSES)))
    return {
        "embed": nrm(ks[0], (V, D)),
        "ln1": (1.0 + 0.1 * jax.random.normal(ks[1], (L, 1, D))).astype(jnp.bfloat16),
        "ln2": (1.0 + 0.1 * jax.random.normal(ks[2], (L, 1, D))).astype(jnp.bfloat16),
        "lnf": (1.0 + 0.1 * jax.random.normal(ks[3], (1, D))).astype(jnp.bfloat16),
        # lane-dense fused weights: every trailing dim is a multiple of 128
        "wqkv": nrm(ks[4], (L, D, 3 * HD)),   # [Wq | Wk | Wv], head-major columns
        "wo":   nrm(ks[5], (L, HD, D)),
        "wgu":  nrm(ks[6], (L, D, 2 * F)),    # [W_gate | W_up]
        "wd":   nrm(ks[7], (L, F, D)),
        "wc": wc.astype(jnp.bfloat16),        # classifier weight (padded to 128 cols)
        "bc": bc,                             # classifier bias (f32, padded)
    }


if __name__ == "__main__":
    key = jax.random.PRNGKey(0)
    pkey, ikey = jax.random.split(key)
    params = init_params(pkey)

    input_ids = jax.random.randint(ikey, (B, S), 0, V, dtype=jnp.int32)
    attention_mask = jnp.ones((B, S), jnp.int32).at[1, :3].set(0)   # left padding

    logits = vllm_classifier_forward(input_ids, attention_mask, params)
    logits = jax.block_until_ready(logits)

    assert logits.shape == (B, NUM_CLASSES) and logits.dtype == jnp.float32

    ref = jax.block_until_ready(reference_forward(input_ids, attention_mask, params))
    err = jnp.max(jnp.abs(logits - ref))
    assert float(err) < 5e-2, f"max abs err {float(err)}"

    print("KERNEL_OK")
</pallas_src>

<mosaic_0001>
module attributes {stable_mosaic.version = 11 : i64} {
  func.func @classifier_kernel(%arg0: i32, %arg1: memref<1x8x128xbf16, #tpu.memory_space<vmem>>, %arg2: memref<1x1x8xf32, #tpu.memory_space<vmem>>, %arg3: memref<8x128xf32, #tpu.memory_space<vmem>>, %arg4: memref<8x128xf32, #tpu.memory_space<vmem>>, %arg5: memref<8x128xf32, #tpu.memory_space<vmem>>, %arg6: memref<2x1x128xbf16, #tpu.memory_space<vmem>>, %arg7: memref<2x1x128xbf16, #tpu.memory_space<vmem>>, %arg8: memref<1x128xbf16, #tpu.memory_space<vmem>>, %arg9: memref<2x128x384xbf16, #tpu.memory_space<vmem>>, %arg10: memref<2x128x128xbf16, #tpu.memory_space<vmem>>, %arg11: memref<2x128x512xbf16, #tpu.memory_space<vmem>>, %arg12: memref<2x256x128xbf16, #tpu.memory_space<vmem>>, %arg13: memref<128x128xbf16, #tpu.memory_space<vmem>>, %arg14: memref<1x128xf32, #tpu.memory_space<vmem>>, %arg15: memref<1x1x128xf32, #tpu.memory_space<vmem>>) attributes {dimension_semantics = [#tpu.dimension_semantics<parallel>], iteration_bounds = array<i64: 2>, scalar_prefetch = 0 : i64, scratch_operands = 0 : i64, tpu.core_type = #tpu.core_type<tc>, window_params = [{transform_indices = @transform_0, window_bounds = array<i64: 1, 8, 128>}, {transform_indices = @transform_1, window_bounds = array<i64: 1, 1, 8>}, {pipeline_mode = #tpu.pipeline_mode<synchronous>, transform_indices = @transform_2, window_bounds = array<i64: 8, 128>}, {pipeline_mode = #tpu.pipeline_mode<synchronous>, transform_indices = @transform_3, window_bounds = array<i64: 8, 128>}, {pipeline_mode = #tpu.pipeline_mode<synchronous>, transform_indices = @transform_4, window_bounds = array<i64: 8, 128>}, {pipeline_mode = #tpu.pipeline_mode<synchronous>, transform_indices = @transform_5, window_bounds = array<i64: 2, 1, 128>}, {pipeline_mode = #tpu.pipeline_mode<synchronous>, transform_indices = @transform_6, window_bounds = array<i64: 2, 1, 128>}, {pipeline_mode = #tpu.pipeline_mode<synchronous>, transform_indices = @transform_7, window_bounds = array<i64: 1, 128>}, {pipeline_mode = #tpu.pipeline_mode<synchronous>, transform_indices = @transform_8, window_bounds = array<i64: 2, 128, 384>}, {pipeline_mode = #tpu.pipeline_mode<synchronous>, transform_indices = @transform_9, window_bounds = array<i64: 2, 128, 128>}, {pipeline_mode = #tpu.pipeline_mode<synchronous>, transform_indices = @transform_10, window_bounds = array<i64: 2, 128, 512>}, {pipeline_mode = #tpu.pipeline_mode<synchronous>, transform_indices = @transform_11, window_bounds = array<i64: 2, 256, 128>}, {pipeline_mode = #tpu.pipeline_mode<synchronous>, transform_indices = @transform_12, window_bounds = array<i64: 128, 128>}, {pipeline_mode = #tpu.pipeline_mode<synchronous>, transform_indices = @transform_13, window_bounds = array<i64: 1, 128>}, {transform_indices = @transform_14, window_bounds = array<i64: 1, 1, 128>}]} {
    %c0 = arith.constant 0 : index
    %c0_0 = arith.constant 0 : index
    %c0_1 = arith.constant 0 : index
    %0 = vector.load %arg1[%c0, %c0_0, %c0_1] : memref<1x8x128xbf16, #tpu.memory_space<vmem>>, vector<1x8x128xbf16>
    %1 = vector.shape_cast %0 : vector<1x8x128xbf16> to vector<8x128xbf16>
    %2 = arith.extf %1 : vector<8x128xbf16> to vector<8x128xf32>
    %c0_2 = arith.constant 0 : index
    %c0_3 = arith.constant 0 : index
    %c0_4 = arith.constant 0 : index
    %3 = vector.load %arg2[%c0_2, %c0_3, %c0_4] : memref<1x1x8xf32, #tpu.memory_space<vmem>>, vector<1x1x8xf32>
    %4 = vector.shape_cast %3 : vector<1x1x8xf32> to vector<1x8xf32>
    %5 = tpu.iota {dimensions = array<i32: 0>} : vector<8x8xi32>
    %6 = tpu.iota {dimensions = array<i32: 1>} : vector<8x8xi32>
    %7 = arith.cmpi sle, %6, %5 : vector<8x8xi32>
    %cst = arith.constant 5.000000e-01 : f32
    %8 = vector.broadcast %cst : f32 to vector<1x8xf32>
    %9 = arith.cmpf ogt, %4, %8 : vector<1x8xf32>
    %10 = vector.shape_cast %9 : vector<1x8xi1> to vector<1x8xi1>
    %11 = vector.broadcast %10 : vector<1x8xi1> to vector<8x8xi1>
    %12 = arith.andi %7, %11 : vector<8x8xi1>
    %cst_5 = arith.constant 0.000000e+00 : f32
    %cst_6 = arith.constant -1.000000e+09 : f32
    %13 = vector.broadcast %cst_5 : f32 to vector<8x8xf32>
    %14 = vector.broadcast %cst_6 : f32 to vector<8x8xf32>
    %15 = arith.select %12, %13, %14 : vector<8x8xi1>, vector<8x8xf32>
    %c0_7 = arith.constant 0 : index
    %c0_8 = arith.constant 0 : index
    %16 = vector.load %arg3[%c0_7, %c0_8] : memref<8x128xf32, #tpu.memory_space<vmem>>, vector<8x128xf32>
    %c0_9 = arith.constant 0 : index
    %c0_10 = arith.constant 0 : index
    %17 = vector.load %arg4[%c0_9, %c0_10] : memref<8x128xf32, #tpu.memory_space<vmem>>, vector<8x128xf32>
    %c0_11 = arith.constant 0 : index
    %c0_12 = arith.constant 0 : index
    %18 = vector.load %arg5[%c0_11, %c0_12] : memref<8x128xf32, #tpu.memory_space<vmem>>, vector<8x128xf32>
    %c0_13 = arith.constant 0 : index
    %c0_14 = arith.constant 0 : index
    %c0_15 = arith.constant 0 : index
    %19 = vector.load %arg6[%c0_13, %c0_14, %c0_15] : memref<2x1x128xbf16, #tpu.memory_space<vmem>>, vector<1x1x128xbf16>
    %20 = vector.shape_cast %19 : vector<1x1x128xbf16> to vector<1x128xbf16>
    %21 = arith.extf %20 : vector<1x128xbf16> to vector<1x128xf32>
    %22 = arith.mulf %2, %2 : vector<8x128xf32>
    %cst_16 = arith.constant dense<0.000000e+00> : vector<8xf32>
    %23 = vector.multi_reduction <add>, %22, %cst_16 [1] : vector<8x128xf32> to vector<8xf32>
    %24 = vector.shape_cast %23 : vector<8xf32> to vector<8x1xf32>
    %cst_17 = arith.constant 1.280000e+02 : f32
    %25 = vector.broadcast %cst_17 : f32 to vector<8x1xf32>
    %26 = arith.divf %24, %25 : vector<8x1xf32>
    %cst_18 = arith.constant 9.99999997E-7 : f32
    %27 = vector.broadcast %cst_18 : f32 to vector<8x1xf32>
    %28 = arith.addf %26, %27 : vector<8x1xf32>
    %29 = math.rsqrt %28 : vector<8x1xf32>
    %30 = vector.broadcast %29 : vector<8x1xf32> to vector<8x128xf32>
    %31 = arith.mulf %2, %30 : vector<8x128xf32>
    %32 = vector.broadcast %21 : vector<1x128xf32> to vector<8x128xf32>
    %33 = arith.mulf %31, %32 : vector<8x128xf32>
    %34 = arith.truncf %33 : vector<8x128xf32> to vector<8x128xbf16>
    %c0_19 = arith.constant 0 : index
    %c0_20 = arith.constant 0 : index
    %c0_21 = arith.constant 0 : index
    %35 = vector.load %arg9[%c0_19, %c0_20, %c0_21] : memref<2x128x384xbf16, #tpu.memory_space<vmem>>, vector<1x128x384xbf16>
    %36 = vector.shape_cast %35 : vector<1x128x384xbf16> to vector<128x384xbf16>
    %cst_22 = arith.constant dense<0.000000e+00> : vector<8x384xf32>
    %37 = tpu.matmul %34, %36, %cst_22 {dimension_numbers = #tpu.dot_dimension_numbers<[1], [0], [0], [1], [0, 0, 1, 1], [], []>} : vector<8x128xbf16>, vector<128x384xbf16>, vector<8x384xf32> -> vector<8x384xf32>
    %38 = vector.extract_strided_slice %37 {offsets = [0, 0], sizes = [8, 128], strides = [1, 1]} : vector<8x384xf32> to vector<8x128xf32>
    %39 = arith.mulf %38, %16 : vector<8x128xf32>
    %c112_i32 = arith.constant 112 : i32
    %40 = tpu.dynamic_rotate %38 by %c112_i32 dim 1 : vector<8x128xf32>, i32 -> vector<8x128xf32>
    %41 = arith.mulf %40, %17 : vector<8x128xf32>
    %42 = arith.addf %39, %41 : vector<8x128xf32>
    %c16_i32 = arith.constant 16 : i32
    %43 = tpu.dynamic_rotate %38 by %c16_i32 dim 1 : vector<8x128xf32>, i32 -> vector<8x128xf32>
    %44 = arith.mulf %43, %18 : vector<8x128xf32>
    %45 = arith.addf %42, %44 : vector<8x128xf32>
    %46 = arith.truncf %45 : vector<8x128xf32> to vector<8x128xbf16>
    %47 = vector.extract_strided_slice %37 {offsets = [0, 128], sizes = [8, 128], strides = [1, 1]} : vector<8x384xf32> to vector<8x128xf32>
    %48 = arith.mulf %47, %16 : vector<8x128xf32>
    %c112_i32_23 = arith.constant 112 : i32
    %49 = tpu.dynamic_rotate %47 by %c112_i32_23 dim 1 : vector<8x128xf32>, i32 -> vector<8x128xf32>
    %50 = arith.mulf %49, %17 : vector<8x128xf32>
    %51 = arith.addf %48, %50 : vector<8x128xf32>
    %c16_i32_24 = arith.constant 16 : i32
    %52 = tpu.dynamic_rotate %47 by %c16_i32_24 dim 1 : vector<8x128xf32>, i32 -> vector<8x128xf32>
    %53 = arith.mulf %52, %18 : vector<8x128xf32>
    %54 = arith.addf %51, %53 : vector<8x128xf32>
    %55 = arith.truncf %54 : vector<8x128xf32> to vector<8x128xbf16>
    %56 = vector.extract_strided_slice %37 {offsets = [0, 256], sizes = [8, 128], strides = [1, 1]} : vector<8x384xf32> to vector<8x128xf32>
    %57 = arith.truncf %56 : vector<8x128xf32> to vector<8x128xbf16>
    %58 = vector.extract_strided_slice %46 {offsets = [0, 0], sizes = [8, 32], strides = [1, 1]} : vector<8x128xbf16> to vector<8x32xbf16>
    %59 = vector.extract_strided_slice %55 {offsets = [0, 0], sizes = [8, 32], strides = [1, 1]} : vector<8x128xbf16> to vector<8x32xbf16>
    %60 = vector.extract_strided_slice %57 {offsets = [0, 0], sizes = [8, 32], strides = [1, 1]} : vector<8x128xbf16> to vector<8x32xbf16>
    %cst_25 = arith.constant dense<0.000000e+00> : vector<8x8xf32>
    %61 = tpu.matmul %58, %59, %cst_25 {dimension_numbers = #tpu.dot_dimension_numbers<[1], [1], [0], [0], [0, 0, 1, 0], [], []>} : vector<8x32xbf16>, vector<8x32xbf16>, vector<8x8xf32> -> vector<8x8xf32>
    %cst_26 = arith.constant 0.176776692 : f32
    %62 = vector.broadcast %cst_26 : f32 to vector<8x8xf32>
    %63 = arith.mulf %61, %62 : vector<8x8xf32>
    %64 = arith.addf %63, %15 : vector<8x8xf32>
    %cst_27 = arith.constant dense<0xFF800000> : vector<8xf32>
    %65 = vector.multi_reduction <maximumf>, %64, %cst_27 [1] : vector<8x8xf32> to vector<8xf32>
    %66 = vector.shape_cast %65 : vector<8xf32> to vector<8x1xf32>
    %67 = vector.broadcast %66 : vector<8x1xf32> to vector<8x8xf32>
    %68 = arith.subf %64, %67 : vector<8x8xf32>
    %69 = math.exp %68 : vector<8x8xf32>
    %cst_28 = arith.constant dense<0.000000e+00> : vector<8xf32>
    %70 = vector.multi_reduction <add>, %69, %cst_28 [1] : vector<8x8xf32> to vector<8xf32>
    %71 = vector.shape_cast %70 : vector<8xf32> to vector<8x1xf32>
    %72 = tpu.reciprocal %71 {approx = true} : vector<8x1xf32> -> vector<8x1xf32>
    %73 = vector.broadcast %72 : vector<8x1xf32> to vector<8x8xf32>
    %74 = arith.mulf %69, %73 : vector<8x8xf32>
    %75 = arith.truncf %74 : vector<8x8xf32> to vector<8x8xbf16>
    %cst_29 = arith.constant dense<0.000000e+00> : vector<8x32xf32>
    %76 = tpu.matmul %75, %60, %cst_29 {dimension_numbers = #tpu.dot_dimension_numbers<[1], [0], [0], [1], [0, 0, 1, 1], [], []>} : vector<8x8xbf16>, vector<8x32xbf16>, vector<8x32xf32> -> vector<8x32xf32>
    %77 = vector.extract_strided_slice %46 {offsets = [0, 32], sizes = [8, 32], strides = [1, 1]} : vector<8x128xbf16> to vector<8x32xbf16>
    %78 = vector.extract_strided_slice %55 {offsets = [0, 32], sizes = [8, 32], strides = [1, 1]} : vector<8x128xbf16> to vector<8x32xbf16>
    %79 = vector.extract_strided_slice %57 {offsets = [0, 32], sizes = [8, 32], strides = [1, 1]} : vector<8x128xbf16> to vector<8x32xbf16>
    %cst_30 = arith.constant dense<0.000000e+00> : vector<8x8xf32>
    %80 = tpu.matmul %77, %78, %cst_30 {dimension_numbers = #tpu.dot_dimension_numbers<[1], [1], [0], [0], [0, 0, 1, 0], [], []>} : vector<8x32xbf16>, vector<8x32xbf16>, vector<8x8xf32> -> vector<8x8xf32>
    %cst_31 = arith.constant 0.176776692 : f32
    %81 = vector.broadcast %cst_31 : f32 to vector<8x8xf32>
    %82 = arith.mulf %80, %81 : vector<8x8xf32>
    %83 = arith.addf %82, %15 : vector<8x8xf32>
    %cst_32 = arith.constant dense<0xFF800000> : vector<8xf32>
    %84 = vector.multi_reduction <maximumf>, %83, %cst_32 [1] : vector<8x8xf32> to vector<8xf32>
    %85 = vector.shape_cast %84 : vector<8xf32> to vector<8x1xf32>
    %86 = vector.broadcast %85 : vector<8x1xf32> to vector<8x8xf32>
    %87 = arith.subf %83, %86 : vector<8x8xf32>
    %88 = math.exp %87 : vector<8x8xf32>
    %cst_33 = arith.constant dense<0.000000e+00> : vector<8xf32>
    %89 = vector.multi_reduction <add>, %88, %cst_33 [1] : vector<8x8xf32> to vector<8xf32>
    %90 = vector.shape_cast %89 : vector<8xf32> to vector<8x1xf32>
    %91 = tpu.reciprocal %90 {approx = true} : vector<8x1xf32> -> vector<8x1xf32>
    %92 = vector.broadcast %91 : vector<8x1xf32> to vector<8x8xf32>
    %93 = arith.mulf %88, %92 : vector<8x8xf32>
    %94 = arith.truncf %93 : vector<8x8xf32> to vector<8x8xbf16>
    %cst_34 = arith.constant dense<0.000000e+00> : vector<8x32xf32>
    %95 = tpu.matmul %94, %79, %cst_34 {dimension_numbers = #tpu.dot_dimension_numbers<[1], [0], [0], [1], [0, 0, 1, 1], [], []>} : vector<8x8xbf16>, vector<8x32xbf16>, vector<8x32xf32> -> vector<8x32xf32>
    %96 = vector.extract_strided_slice %46 {offsets = [0, 64], sizes = [8, 32], strides = [1, 1]} : vector<8x128xbf16> to vector<8x32xbf16>
    %97 = vector.extract_strided_slice %55 {offsets = [0, 64], sizes = [8, 32], strides = [1, 1]} : vector<8x128xbf16> to vector<8x32xbf16>
    %98 = vector.extract_strided_slice %57 {offsets = [0, 64], sizes = [8, 32], strides = [1, 1]} : vector<8x128xbf16> to vector<8x32xbf16>
    %cst_35 = arith.constant dense<0.000000e+00> : vector<8x8xf32>
    %99 = tpu.matmul %96, %97, %cst_35 {dimension_numbers = #tpu.dot_dimension_numbers<[1], [1], [0], [0], [0, 0, 1, 0], [], []>} : vector<8x32xbf16>, vector<8x32xbf16>, vector<8x8xf32> -> vector<8x8xf32>
    %cst_36 = arith.constant 0.176776692 : f32
    %100 = vector.broadcast %cst_36 : f32 to vector<8x8xf32>
    %101 = arith.mulf %99, %100 : vector<8x8xf32>
    %102 = arith.addf %101, %15 : vector<8x8xf32>
    %cst_37 = arith.constant dense<0xFF800000> : vector<8xf32>
    %103 = vector.multi_reduction <maximumf>, %102, %cst_37 [1] : vector<8x8xf32> to vector<8xf32>
    %104 = vector.shape_cast %103 : vector<8xf32> to vector<8x1xf32>
    %105 = vector.broadcast %104 : vector<8x1xf32> to vector<8x8xf32>
    %106 = arith.subf %102, %105 : vector<8x8xf32>
    %107 = math.exp %106 : vector<8x8xf32>
    %cst_38 = arith.constant dense<0.000000e+00> : vector<8xf32>
    %108 = vector.multi_reduction <add>, %107, %cst_38 [1] : vector<8x8xf32> to vector<8xf32>
    %109 = vector.shape_cast %108 : vector<8xf32> to vector<8x1xf32>
    %110 = tpu.reciprocal %109 {approx = true} : vector<8x1xf32> -> vector<8x1xf32>
    %111 = vector.broadcast %110 : vector<8x1xf32> to vector<8x8xf32>
    %112 = arith.mulf %107, %111 : vector<8x8xf32>
    %113 = arith.truncf %112 : vector<8x8xf32> to vector<8x8xbf16>
    %cst_39 = arith.constant dense<0.000000e+00> : vector<8x32xf32>
    %114 = tpu.matmul %113, %98, %cst_39 {dimension_numbers = #tpu.dot_dimension_numbers<[1], [0], [0], [1], [0, 0, 1, 1], [], []>} : vector<8x8xbf16>, vector<8x32xbf16>, vector<8x32xf32> -> vector<8x32xf32>
    %115 = vector.extract_strided_slice %46 {offsets = [0, 96], sizes = [8, 32], strides = [1, 1]} : vector<8x128xbf16> to vector<8x32xbf16>
    %116 = vector.extract_strided_slice %55 {offsets = [0, 96], sizes = [8, 32], strides = [1, 1]} : vector<8x128xbf16> to vector<8x32xbf16>
    %117 = vector.extract_strided_slice %57 {offsets = [0, 96], sizes = [8, 32], strides = [1, 1]} : vector<8x128xbf16> to vector<8x32xbf16>
    %cst_40 = arith.constant dense<0.000000e+00> : vector<8x8xf32>
    %118 = tpu.matmul %115, %116, %cst_40 {dimension_numbers = #tpu.dot_dimension_numbers<[1], [1], [0], [0], [0, 0, 1, 0], [], []>} : vector<8x32xbf16>, vector<8x32xbf16>, vector<8x8xf32> -> vector<8x8xf32>
    %cst_41 = arith.constant 0.176776692 : f32
    %119 = vector.broadcast %cst_41 : f32 to vector<8x8xf32>
    %120 = arith.mulf %118, %119 : vector<8x8xf32>
    %121 = arith.addf %120, %15 : vector<8x8xf32>
    %cst_42 = arith.constant dense<0xFF800000> : vector<8xf32>
    %122 = vector.multi_reduction <maximumf>, %121, %cst_42 [1] : vector<8x8xf32> to vector<8xf32>
    %123 = vector.shape_cast %122 : vector<8xf32> to vector<8x1xf32>
    %124 = vector.broadcast %123 : vector<8x1xf32> to vector<8x8xf32>
    %125 = arith.subf %121, %124 : vector<8x8xf32>
    %126 = math.exp %125 : vector<8x8xf32>
    %cst_43 = arith.constant dense<0.000000e+00> : vector<8xf32>
    %127 = vector.multi_reduction <add>, %126, %cst_43 [1] : vector<8x8xf32> to vector<8xf32>
    %128 = vector.shape_cast %127 : vector<8xf32> to vector<8x1xf32>
    %129 = tpu.reciprocal %128 {approx = true} : vector<8x1xf32> -> vector<8x1xf32>
    %130 = vector.broadcast %129 : vector<8x1xf32> to vector<8x8xf32>
    %131 = arith.mulf %126, %130 : vector<8x8xf32>
    %132 = arith.truncf %131 : vector<8x8xf32> to vector<8x8xbf16>
    %cst_44 = arith.constant dense<0.000000e+00> : vector<8x32xf32>
    %133 = tpu.matmul %132, %117, %cst_44 {dimension_numbers = #tpu.dot_dimension_numbers<[1], [0], [0], [1], [0, 0, 1, 1], [], []>} : vector<8x8xbf16>, vector<8x32xbf16>, vector<8x32xf32> -> vector<8x32xf32>
    %134 = tpu.concatenate %76, %95, %114, %133 in 1 : vector<8x32xf32>, vector<8x32xf32>, vector<8x32xf32>, vector<8x32xf32> -> vector<8x128xf32>
    %135 = arith.truncf %134 : vector<8x128xf32> to vector<8x128xbf16>
    %c0_45 = arith.constant 0 : index
    %c0_46 = arith.constant 0 : index
    %c0_47 = arith.constant 0 : index
    %136 = vector.load %arg10[%c0_45, %c0_46, %c0_47] : memref<2x128x128xbf16, #tpu.memory_space<vmem>>, vector<1x128x128xbf16>
    %137 = vector.shape_cast %136 : vector<1x128x128xbf16> to vector<128x128xbf16>
    %cst_48 = arith.constant dense<0.000000e+00> : vector<8x128xf32>
    %138 = tpu.matmul %135, %137, %cst_48 {dimension_numbers = #tpu.dot_dimension_numbers<[1], [0], [0], [1], [0, 0, 1, 1], [], []>} : vector<8x128xbf16>, vector<128x128xbf16>, vector<8x128xf32> -> vector<8x128xf32>
    %139 = arith.addf %2, %138 : vector<8x128xf32>
    %c0_49 = arith.constant 0 : index
    %c0_50 = arith.constant 0 : index
    %c0_51 = arith.constant 0 : index
    %140 = vector.load %arg7[%c0_49, %c0_50, %c0_51] : memref<2x1x128xbf16, #tpu.memory_space<vmem>>, vector<1x1x128xbf16>
    %141 = vector.shape_cast %140 : vector<1x1x128xbf16> to vector<1x128xbf16>
    %142 = arith.extf %141 : vector<1x128xbf16> to vector<1x128xf32>
    %143 = arith.mulf %139, %139 : vector<8x128xf32>
    %cst_52 = arith.constant dense<0.000000e+00> : vector<8xf32>
    %144 = vector.multi_reduction <add>, %143, %cst_52 [1] : vector<8x128xf32> to vector<8xf32>
    %145 = vector.shape_cast %144 : vector<8xf32> to vector<8x1xf32>
    %cst_53 = arith.constant 1.280000e+02 : f32
    %146 = vector.broadcast %cst_53 : f32 to vector<8x1xf32>
    %147 = arith.divf %145, %146 : vector<8x1xf32>
    %cst_54 = arith.constant 9.99999997E-7 : f32
    %148 = vector.broadcast %cst_54 : f32 to vector<8x1xf32>
    %149 = arith.addf %147, %148 : vector<8x1xf32>
    %150 = math.rsqrt %149 : vector<8x1xf32>
    %151 = vector.broadcast %150 : vector<8x1xf32> to vector<8x128xf32>
    %152 = arith.mulf %139, %151 : vector<8x128xf32>
    %153 = vector.broadcast %142 : vector<1x128xf32> to vector<8x128xf32>
    %154 = arith.mulf %152, %153 : vector<8x128xf32>
    %155 = arith.truncf %154 : vector<8x128xf32> to vector<8x128xbf16>
    %c0_55 = arith.constant 0 : index
    %c0_56 = arith.constant 0 : index
    %c0_57 = arith.constant 0 : index
    %156 = vector.load %arg11[%c0_55, %c0_56, %c0_57] : memref<2x128x512xbf16, #tpu.memory_space<vmem>>, vector<1x128x512xbf16>
    %157 = vector.shape_cast %156 : vector<1x128x512xbf16> to vector<128x512xbf16>
    %cst_58 = arith.constant dense<0.000000e+00> : vector<8x512xf32>
    %158 = tpu.matmul %155, %157, %cst_58 {dimension_numbers = #tpu.dot_dimension_numbers<[1], [0], [0], [1], [0, 0, 1, 1], [], []>} : vector<8x128xbf16>, vector<128x512xbf16>, vector<8x512xf32> -> vector<8x512xf32>
    %159 = vector.extract_strided_slice %158 {offsets = [0, 0], sizes = [8, 256], strides = [1, 1]} : vector<8x512xf32> to vector<8x256xf32>
    %160 = vector.extract_strided_slice %158 {offsets = [0, 256], sizes = [8, 256], strides = [1, 1]} : vector<8x512xf32> to vector<8x256xf32>
    %cst_59 = arith.constant 0.000000e+00 : f32
    %161 = vector.broadcast %cst_59 : f32 to vector<8x256xf32>
    %162 = arith.subf %161, %159 : vector<8x256xf32>
    %163 = math.exp %162 : vector<8x256xf32>
    %cst_60 = arith.constant 1.000000e+00 : f32
    %164 = vector.broadcast %cst_60 : f32 to vector<8x256xf32>
    %165 = arith.addf %164, %163 : vector<8x256xf32>
    %166 = tpu.reciprocal %165 {approx = true} : vector<8x256xf32> -> vector<8x256xf32>
    %167 = arith.mulf %159, %166 : vector<8x256xf32>
    %168 = arith.mulf %167, %160 : vector<8x256xf32>
    %169 = arith.truncf %168 : vector<8x256xf32> to vector<8x256xbf16>
    %c0_61 = arith.constant 0 : index
    %c0_62 = arith.constant 0 : index
    %c0_63 = arith.constant 0 : index
    %170 = vector.load %arg12[%c0_61, %c0_62, %c0_63] : memref<2x256x128xbf16, #tpu.memory_space<vmem>>, vector<1x256x128xbf16>
    %171 = vector.shape_cast %170 : vector<1x256x128xbf16> to vector<256x128xbf16>
    %cst_64 = arith.constant dense<0.000000e+00> : vector<8x128xf32>
    %172 = tpu.matmul %169, %171, %cst_64 {dimension_numbers = #tpu.dot_dimension_numbers<[1], [0], [0], [1], [0, 0, 1, 1], [], []>} : vector<8x256xbf16>, vector<256x128xbf16>, vector<8x128xf32> -> vector<8x128xf32>
    %173 = arith.addf %139, %172 : vector<8x128xf32>
    %c1 = arith.constant 1 : index
    %c0_65 = arith.constant 0 : index
    %c0_66 = arith.constant 0 : index
    %174 = vector.load %arg6[%c1, %c0_65, %c0_66] : memref<2x1x128xbf16, #tpu.memory_space<vmem>>, vector<1x1x128xbf16>
    %175 = vector.shape_cast %174 : vector<1x1x128xbf16> to vector<1x128xbf16>
    %176 = arith.extf %175 : vector<1x128xbf16> to vector<1x128xf32>
    %177 = arith.mulf %173, %173 : vector<8x128xf32>
    %cst_67 = arith.constant dense<0.000000e+00> : vector<8xf32>
    %178 = vector.multi_reduction <add>, %177, %cst_67 [1] : vector<8x128xf32> to vector<8xf32>
    %179 = vector.shape_cast %178 : vector<8xf32> to vector<8x1xf32>
    %cst_68 = arith.constant 1.280000e+02 : f32
    %180 = vector.broadcast %cst_68 : f32 to vector<8x1xf32>
    %181 = arith.divf %179, %180 : vector<8x1xf32>
    %cst_69 = arith.constant 9.99999997E-7 : f32
    %182 = vector.broadcast %cst_69 : f32 to vector<8x1xf32>
    %183 = arith.addf %181, %182 : vector<8x1xf32>
    %184 = math.rsqrt %183 : vector<8x1xf32>
    %185 = vector.broadcast %184 : vector<8x1xf32> to vector<8x128xf32>
    %186 = arith.mulf %173, %185 : vector<8x128xf32>
    %187 = vector.broadcast %176 : vector<1x128xf32> to vector<8x128xf32>
    %188 = arith.mulf %186, %187 : vector<8x128xf32>
    %189 = arith.truncf %188 : vector<8x128xf32> to vector<8x128xbf16>
    %c1_70 = arith.constant 1 : index
    %c0_71 = arith.constant 0 : index
    %c0_72 = arith.constant 0 : index
    %190 = vector.load %arg9[%c1_70, %c0_71, %c0_72] : memref<2x128x384xbf16, #tpu.memory_space<vmem>>, vector<1x128x384xbf16>
    %191 = vector.shape_cast %190 : vector<1x128x384xbf16> to vector<128x384xbf16>
    %cst_73 = arith.constant dense<0.000000e+00> : vector<8x384xf32>
    %192 = tpu.matmul %189, %191, %cst_73 {dimension_numbers = #tpu.dot_dimension_numbers<[1], [0], [0], [1], [0, 0, 1, 1], [], []>} : vector<8x128xbf16>, vector<128x384xbf16>, vector<8x384xf32> -> vector<8x384xf32>
    %193 = vector.extract_strided_slice %192 {offsets = [0, 0], sizes = [8, 128], strides = [1, 1]} : vector<8x384xf32> to vector<8x128xf32>
    %194 = arith.mulf %193, %16 : vector<8x128xf32>
    %c112_i32_74 = arith.constant 112 : i32
    %195 = tpu.dynamic_rotate %193 by %c112_i32_74 dim 1 : vector<8x128xf32>, i32 -> vector<8x128xf32>
    %196 = arith.mulf %195, %17 : vector<8x128xf32>
    %197 = arith.addf %194, %196 : vector<8x128xf32>
    %c16_i32_75 = arith.constant 16 : i32
    %198 = tpu.dynamic_rotate %193 by %c16_i32_75 dim 1 : vector<8x128xf32>, i32 -> vector<8x128xf32>
    %199 = arith.mulf %198, %18 : vector<8x128xf32>
    %200 = arith.addf %197, %199 : vector<8x128xf32>
    %201 = arith.truncf %200 : vector<8x128xf32> to vector<8x128xbf16>
    %202 = vector.extract_strided_slice %192 {offsets = [0, 128], sizes = [8, 128], strides = [1, 1]} : vector<8x384xf32> to vector<8x128xf32>
    %203 = arith.mulf %202, %16 : vector<8x128xf32>
    %c112_i32_76 = arith.constant 112 : i32
    %204 = tpu.dynamic_rotate %202 by %c112_i32_76 dim 1 : vector<8x128xf32>, i32 -> vector<8x128xf32>
    %205 = arith.mulf %204, %17 : vector<8x128xf32>
    %206 = arith.addf %203, %205 : vector<8x128xf32>
    %c16_i32_77 = arith.constant 16 : i32
    %207 = tpu.dynamic_rotate %202 by %c16_i32_77 dim 1 : vector<8x128xf32>, i32 -> vector<8x128xf32>
    %208 = arith.mulf %207, %18 : vector<8x128xf32>
    %209 = arith.addf %206, %208 : vector<8x128xf32>
    %210 = arith.truncf %209 : vector<8x128xf32> to vector<8x128xbf16>
    %211 = vector.extract_strided_slice %192 {offsets = [0, 256], sizes = [8, 128], strides = [1, 1]} : vector<8x384xf32> to vector<8x128xf32>
    %212 = arith.truncf %211 : vector<8x128xf32> to vector<8x128xbf16>
    %213 = vector.extract_strided_slice %201 {offsets = [7, 0], sizes = [1, 128], strides = [1, 1]} : vector<8x128xbf16> to vector<1x128xbf16>
    %214 = vector.extract_strided_slice %15 {offsets = [7, 0], sizes = [1, 8], strides = [1, 1]} : vector<8x8xf32> to vector<1x8xf32>
    %215 = vector.extract_strided_slice %173 {offsets = [7, 0], sizes = [1, 128], strides = [1, 1]} : vector<8x128xf32> to vector<1x128xf32>
    %216 = vector.extract_strided_slice %213 {offsets = [0, 0], sizes = [1, 32], strides = [1, 1]} : vector<1x128xbf16> to vector<1x32xbf16>
    %217 = vector.extract_strided_slice %210 {offsets = [0, 0], sizes = [8, 32], strides = [1, 1]} : vector<8x128xbf16> to vector<8x32xbf16>
    %218 = vector.extract_strided_slice %212 {offsets = [0, 0], sizes = [8, 32], strides = [1, 1]} : vector<8x128xbf16> to vector<8x32xbf16>
    %cst_78 = arith.constant dense<0.000000e+00> : vector<1x8xf32>
    %219 = tpu.matmul %216, %217, %cst_78 {dimension_numbers = #tpu.dot_dimension_numbers<[1], [1], [0], [0], [0, 0, 1, 0], [], []>} : vector<1x32xbf16>, vector<8x32xbf16>, vector<1x8xf32> -> vector<1x8xf32>
    %cst_79 = arith.constant 0.176776692 : f32
    %220 = vector.broadcast %cst_79 : f32 to vector<1x8xf32>
    %221 = arith.mulf %219, %220 : vector<1x8xf32>
    %222 = arith.addf %221, %214 : vector<1x8xf32>
    %cst_80 = arith.constant dense<0xFF800000> : vector<1xf32>
    %223 = vector.multi_reduction <maximumf>, %222, %cst_80 [1] : vector<1x8xf32> to vector<1xf32>
    %224 = vector.shape_cast %223 : vector<1xf32> to vector<1x1xf32>
    %225 = vector.broadcast %224 : vector<1x1xf32> to vector<1x8xf32>
    %226 = arith.subf %222, %225 : vector<1x8xf32>
    %227 = math.exp %226 : vector<1x8xf32>
    %cst_81 = arith.constant dense<0.000000e+00> : vector<1xf32>
    %228 = vector.multi_reduction <add>, %227, %cst_81 [1] : vector<1x8xf32> to vector<1xf32>
    %229 = vector.shape_cast %228 : vector<1xf32> to vector<1x1xf32>
    %230 = tpu.reciprocal %229 {approx = true} : vector<1x1xf32> -> vector<1x1xf32>
    %231 = vector.broadcast %230 : vector<1x1xf32> to vector<1x8xf32>
    %232 = arith.mulf %227, %231 : vector<1x8xf32>
    %233 = arith.truncf %232 : vector<1x8xf32> to vector<1x8xbf16>
    %cst_82 = arith.constant dense<0.000000e+00> : vector<1x32xf32>
    %234 = tpu.matmul %233, %218, %cst_82 {dimension_numbers = #tpu.dot_dimension_numbers<[1], [0], [0], [1], [0, 0, 1, 1], [], []>} : vector<1x8xbf16>, vector<8x32xbf16>, vector<1x32xf32> -> vector<1x32xf32>
    %235 = vector.extract_strided_slice %213 {offsets = [0, 32], sizes = [1, 32], strides = [1, 1]} : vector<1x128xbf16> to vector<1x32xbf16>
    %236 = vector.extract_strided_slice %210 {offsets = [0, 32], sizes = [8, 32], strides = [1, 1]} : vector<8x128xbf16> to vector<8x32xbf16>
    %237 = vector.extract_strided_slice %212 {offsets = [0, 32], sizes = [8, 32], strides = [1, 1]} : vector<8x128xbf16> to vector<8x32xbf16>
    %cst_83 = arith.constant dense<0.000000e+00> : vector<1x8xf32>
    %238 = tpu.matmul %235, %236, %cst_83 {dimension_numbers = #tpu.dot_dimension_numbers<[1], [1], [0], [0], [0, 0, 1, 0], [], []>} : vector<1x32xbf16>, vector<8x32xbf16>, vector<1x8xf32> -> vector<1x8xf32>
    %cst_84 = arith.constant 0.176776692 : f32
    %239 = vector.broadcast %cst_84 : f32 to vector<1x8xf32>
    %240 = arith.mulf %238, %239 : vector<1x8xf32>
    %241 = arith.addf %240, %214 : vector<1x8xf32>
    %cst_85 = arith.constant dense<0xFF800000> : vector<1xf32>
    %242 = vector.multi_reduction <maximumf>, %241, %cst_85 [1] : vector<1x8xf32> to vector<1xf32>
    %243 = vector.shape_cast %242 : vector<1xf32> to vector<1x1xf32>
    %244 = vector.broadcast %243 : vector<1x1xf32> to vector<1x8xf32>
    %245 = arith.subf %241, %244 : vector<1x8xf32>
    %246 = math.exp %245 : vector<1x8xf32>
    %cst_86 = arith.constant dense<0.000000e+00> : vector<1xf32>
    %247 = vector.multi_reduction <add>, %246, %cst_86 [1] : vector<1x8xf32> to vector<1xf32>
    %248 = vector.shape_cast %247 : vector<1xf32> to vector<1x1xf32>
    %249 = tpu.reciprocal %248 {approx = true} : vector<1x1xf32> -> vector<1x1xf32>
    %250 = vector.broadcast %249 : vector<1x1xf32> to vector<1x8xf32>
    %251 = arith.mulf %246, %250 : vector<1x8xf32>
    %252 = arith.truncf %251 : vector<1x8xf32> to vector<1x8xbf16>
    %cst_87 = arith.constant dense<0.000000e+00> : vector<1x32xf32>
    %253 = tpu.matmul %252, %237, %cst_87 {dimension_numbers = #tpu.dot_dimension_numbers<[1], [0], [0], [1], [0, 0, 1, 1], [], []>} : vector<1x8xbf16>, vector<8x32xbf16>, vector<1x32xf32> -> vector<1x32xf32>
    %254 = vector.extract_strided_slice %213 {offsets = [0, 64], sizes = [1, 32], strides = [1, 1]} : vector<1x128xbf16> to vector<1x32xbf16>
    %255 = vector.extract_strided_slice %210 {offsets = [0, 64], sizes = [8, 32], strides = [1, 1]} : vector<8x128xbf16> to vector<8x32xbf16>
    %256 = vector.extract_strided_slice %212 {offsets = [0, 64], sizes = [8, 32], strides = [1, 1]} : vector<8x128xbf16> to vector<8x32xbf16>
    %cst_88 = arith.constant dense<0.000000e+00> : vector<1x8xf32>
    %257 = tpu.matmul %254, %255, %cst_88 {dimension_numbers = #tpu.dot_dimension_numbers<[1], [1], [0], [0], [0, 0, 1, 0], [], []>} : vector<1x32xbf16>, vector<8x32xbf16>, vector<1x8xf32> -> vector<1x8xf32>
    %cst_89 = arith.constant 0.176776692 : f32
    %258 = vector.broadcast %cst_89 : f32 to vector<1x8xf32>
    %259 = arith.mulf %257, %258 : vector<1x8xf32>
    %260 = arith.addf %259, %214 : vector<1x8xf32>
    %cst_90 = arith.constant dense<0xFF800000> : vector<1xf32>
    %261 = vector.multi_reduction <maximumf>, %260, %cst_90 [1] : vector<1x8xf32> to vector<1xf32>
    %262 = vector.shape_cast %261 : vector<1xf32> to vector<1x1xf32>
    %263 = vector.broadcast %262 : vector<1x1xf32> to vector<1x8xf32>
    %264 = arith.subf %260, %263 : vector<1x8xf32>
    %265 = math.exp %264 : vector<1x8xf32>
    %cst_91 = arith.constant dense<0.000000e+00> : vector<1xf32>
    %266 = vector.multi_reduction <add>, %265, %cst_91 [1] : vector<1x8xf32> to vector<1xf32>
    %267 = vector.shape_cast %266 : vector<1xf32> to vector<1x1xf32>
    %268 = tpu.reciprocal %267 {approx = true} : vector<1x1xf32> -> vector<1x1xf32>
    %269 = vector.broadcast %268 : vector<1x1xf32> to vector<1x8xf32>
    %270 = arith.mulf %265, %269 : vector<1x8xf32>
    %271 = arith.truncf %270 : vector<1x8xf32> to vector<1x8xbf16>
    %cst_92 = arith.constant dense<0.000000e+00> : vector<1x32xf32>
    %272 = tpu.matmul %271, %256, %cst_92 {dimension_numbers = #tpu.dot_dimension_numbers<[1], [0], [0], [1], [0, 0, 1, 1], [], []>} : vector<1x8xbf16>, vector<8x32xbf16>, vector<1x32xf32> -> vector<1x32xf32>
    %273 = vector.extract_strided_slice %213 {offsets = [0, 96], sizes = [1, 32], strides = [1, 1]} : vector<1x128xbf16> to vector<1x32xbf16>
    %274 = vector.extract_strided_slice %210 {offsets = [0, 96], sizes = [8, 32], strides = [1, 1]} : vector<8x128xbf16> to vector<8x32xbf16>
    %275 = vector.extract_strided_slice %212 {offsets = [0, 96], sizes = [8, 32], strides = [1, 1]} : vector<8x128xbf16> to vector<8x32xbf16>
    %cst_93 = arith.constant dense<0.000000e+00> : vector<1x8xf32>
    %276 = tpu.matmul %273, %274, %cst_93 {dimension_numbers = #tpu.dot_dimension_numbers<[1], [1], [0], [0], [0, 0, 1, 0], [], []>} : vector<1x32xbf16>, vector<8x32xbf16>, vector<1x8xf32> -> vector<1x8xf32>
    %cst_94 = arith.constant 0.176776692 : f32
    %277 = vector.broadcast %cst_94 : f32 to vector<1x8xf32>
    %278 = arith.mulf %276, %277 : vector<1x8xf32>
    %279 = arith.addf %278, %214 : vector<1x8xf32>
    %cst_95 = arith.constant dense<0xFF800000> : vector<1xf32>
    %280 = vector.multi_reduction <maximumf>, %279, %cst_95 [1] : vector<1x8xf32> to vector<1xf32>
    %281 = vector.shape_cast %280 : vector<1xf32> to vector<1x1xf32>
    %282 = vector.broadcast %281 : vector<1x1xf32> to vector<1x8xf32>
    %283 = arith.subf %279, %282 : vector<1x8xf32>
    %284 = math.exp %283 : vector<1x8xf32>
    %cst_96 = arith.constant dense<0.000000e+00> : vector<1xf32>
    %285 = vector.multi_reduction <add>, %284, %cst_96 [1] : vector<1x8xf32> to vector<1xf32>
    %286 = vector.shape_cast %285 : vector<1xf32> to vector<1x1xf32>
    %287 = tpu.reciprocal %286 {approx = true} : vector<1x1xf32> -> vector<1x1xf32>
    %288 = vector.broadcast %287 : vector<1x1xf32> to vector<1x8xf32>
    %289 = arith.mulf %284, %288 : vector<1x8xf32>
    %290 = arith.truncf %289 : vector<1x8xf32> to vector<1x8xbf16>
    %cst_97 = arith.constant dense<0.000000e+00> : vector<1x32xf32>
    %291 = tpu.matmul %290, %275, %cst_97 {dimension_numbers = #tpu.dot_dimension_numbers<[1], [0], [0], [1], [0, 0, 1, 1], [], []>} : vector<1x8xbf16>, vector<8x32xbf16>, vector<1x32xf32> -> vector<1x32xf32>
    %292 = tpu.concatenate %234, %253, %272, %291 in 1 : vector<1x32xf32>, vector<1x32xf32>, vector<1x32xf32>, vector<1x32xf32> -> vector<1x128xf32>
    %293 = arith.truncf %292 : vector<1x128xf32> to vector<1x128xbf16>
    %c1_98 = arith.constant 1 : index
    %c0_99 = arith.constant 0 : index
    %c0_100 = arith.constant 0 : index
    %294 = vector.load %arg10[%c1_98, %c0_99, %c0_100] : memref<2x128x128xbf16, #tpu.memory_space<vmem>>, vector<1x128x128xbf16>
    %295 = vector.shape_cast %294 : vector<1x128x128xbf16> to vector<128x128xbf16>
    %cst_101 = arith.constant dense<0.000000e+00> : vector<1x128xf32>
    %296 = tpu.matmul %293, %295, %cst_101 {dimension_numbers = #tpu.dot_dimension_numbers<[1], [0], [0], [1], [0, 0, 1, 1], [], []>} : vector<1x128xbf16>, vector<128x128xbf16>, vector<1x128xf32> -> vector<1x128xf32>
    %297 = arith.addf %215, %296 : vector<1x128xf32>
    %c1_102 = arith.constant 1 : index
    %c0_103 = arith.constant 0 : index
    %c0_104 = arith.constant 0 : index
    %298 = vector.load %arg7[%c1_102, %c0_103, %c0_104] : memref<2x1x128xbf16, #tpu.memory_space<vmem>>, vector<1x1x128xbf16>
    %299 = vector.shape_cast %298 : vector<1x1x128xbf16> to vector<1x128xbf16>
    %300 = arith.extf %299 : vector<1x128xbf16> to vector<1x128xf32>
    %301 = arith.mulf %297, %297 : vector<1x128xf32>
    %cst_105 = arith.constant dense<0.000000e+00> : vector<1xf32>
    %302 = vector.multi_reduction <add>, %301, %cst_105 [1] : vector<1x128xf32> to vector<1xf32>
    %303 = vector.shape_cast %302 : vector<1xf32> to vector<1x1xf32>
    %cst_106 = arith.constant 1.280000e+02 : f32
    %304 = vector.broadcast %cst_106 : f32 to vector<1x1xf32>
    %305 = arith.divf %303, %304 : vector<1x1xf32>
    %cst_107 = arith.constant 9.99999997E-7 : f32
    %306 = vector.broadcast %cst_107 : f32 to vector<1x1xf32>
    %307 = arith.addf %305, %306 : vector<1x1xf32>
    %308 = math.rsqrt %307 : vector<1x1xf32>
    %309 = vector.broadcast %308 : vector<1x1xf32> to vector<1x128xf32>
    %310 = arith.mulf %297, %309 : vector<1x128xf32>
    %311 = arith.mulf %310, %300 : vector<1x128xf32>
    %312 = arith.truncf %311 : vector<1x128xf32> to vector<1x128xbf16>
    %c1_108 = arith.constant 1 : index
    %c0_109 = arith.constant 0 : index
    %c0_110 = arith.constant 0 : index
    %313 = vector.load %arg11[%c1_108, %c0_109, %c0_110] : memref<2x128x512xbf16, #tpu.memory_space<vmem>>, vector<1x128x512xbf16>
    %314 = vector.shape_cast %313 : vector<1x128x512xbf16> to vector<128x512xbf16>
    %cst_111 = arith.constant dense<0.000000e+00> : vector<1x512xf32>
    %315 = tpu.matmul %312, %314, %cst_111 {dimension_numbers = #tpu.dot_dimension_numbers<[1], [0], [0], [1], [0, 0, 1, 1], [], []>} : vector<1x128xbf16>, vector<128x512xbf16>, vector<1x512xf32> -> vector<1x512xf32>
    %316 = vector.extract_strided_slice %315 {offsets = [0, 0], sizes = [1, 256], strides = [1, 1]} : vector<1x512xf32> to vector<1x256xf32>
    %317 = vector.extract_strided_slice %315 {offsets = [0, 256], sizes = [1, 256], strides = [1, 1]} : vector<1x512xf32> to vector<1x256xf32>
    %cst_112 = arith.constant 0.000000e+00 : f32
    %318 = vector.broadcast %cst_112 : f32 to vector<1x256xf32>
    %319 = arith.subf %318, %316 : vector<1x256xf32>
    %320 = math.exp %319 : vector<1x256xf32>
    %cst_113 = arith.constant 1.000000e+00 : f32
    %321 = vector.broadcast %cst_113 : f32 to vector<1x256xf32>
    %322 = arith.addf %321, %320 : vector<1x256xf32>
    %323 = tpu.reciprocal %322 {approx = true} : vector<1x256xf32> -> vector<1x256xf32>
    %324 = arith.mulf %316, %323 : vector<1x256xf32>
    %325 = arith.mulf %324, %317 : vector<1x256xf32>
    %326 = arith.truncf %325 : vector<1x256xf32> to vector<1x256xbf16>
    %c1_114 = arith.constant 1 : index
    %c0_115 = arith.constant 0 : index
    %c0_116 = arith.constant 0 : index
    %327 = vector.load %arg12[%c1_114, %c0_115, %c0_116] : memref<2x256x128xbf16, #tpu.memory_space<vmem>>, vector<1x256x128xbf16>
    %328 = vector.shape_cast %327 : vector<1x256x128xbf16> to vector<256x128xbf16>
    %cst_117 = arith.constant dense<0.000000e+00> : vector<1x128xf32>
    %329 = tpu.matmul %326, %328, %cst_117 {dimension_numbers = #tpu.dot_dimension_numbers<[1], [0], [0], [1], [0, 0, 1, 1], [], []>} : vector<1x256xbf16>, vector<256x128xbf16>, vector<1x128xf32> -> vector<1x128xf32>
    %330 = arith.addf %297, %329 : vector<1x128xf32>
    %c0_118 = arith.constant 0 : index
    %c0_119 = arith.constant 0 : index
    %331 = vector.load %arg8[%c0_118, %c0_119] : memref<1x128xbf16, #tpu.memory_space<vmem>>, vector<1x128xbf16>
    %332 = arith.extf %331 : vector<1x128xbf16> to vector<1x128xf32>
    %333 = arith.mulf %330, %330 : vector<1x128xf32>
    %cst_120 = arith.constant dense<0.000000e+00> : vector<1xf32>
    %334 = vector.multi_reduction <add>, %333, %cst_120 [1] : vector<1x128xf32> to vector<1xf32>
    %335 = vector.shape_cast %334 : vector<1xf32> to vector<1x1xf32>
    %cst_121 = arith.constant 1.280000e+02 : f32
    %336 = vector.broadcast %cst_121 : f32 to vector<1x1xf32>
    %337 = arith.divf %335, %336 : vector<1x1xf32>
    %cst_122 = arith.constant 9.99999997E-7 : f32
    %338 = vector.broadcast %cst_122 : f32 to vector<1x1xf32>
    %339 = arith.addf %337, %338 : vector<1x1xf32>
    %340 = math.rsqrt %339 : vector<1x1xf32>
    %341 = vector.broadcast %340 : vector<1x1xf32> to vector<1x128xf32>
    %342 = arith.mulf %330, %341 : vector<1x128xf32>
    %343 = arith.mulf %342, %332 : vector<1x128xf32>
    %344 = arith.truncf %343 : vector<1x128xf32> to vector<1x128xbf16>
    %c0_123 = arith.constant 0 : index
    %c0_124 = arith.constant 0 : index
    %345 = vector.load %arg13[%c0_123, %c0_124] : memref<128x128xbf16, #tpu.memory_space<vmem>>, vector<128x128xbf16>
    %cst_125 = arith.constant dense<0.000000e+00> : vector<1x128xf32>
    %346 = tpu.matmul %344, %345, %cst_125 {dimension_numbers = #tpu.dot_dimension_numbers<[1], [0], [0], [1], [0, 0, 1, 1], [], []>} : vector<1x128xbf16>, vector<128x128xbf16>, vector<1x128xf32> -> vector<1x128xf32>
    %c0_126 = arith.constant 0 : index
    %c0_127 = arith.constant 0 : index
    %347 = vector.load %arg14[%c0_126, %c0_127] : memref<1x128xf32, #tpu.memory_space<vmem>>, vector<1x128xf32>
    %348 = arith.addf %346, %347 : vector<1x128xf32>
    %c0_128 = arith.constant 0 : index
    %c0_129 = arith.constant 0 : index
    %c0_130 = arith.constant 0 : index
    %349 = vector.load %arg15[%c0_128, %c0_129, %c0_130] : memref<1x1x128xf32, #tpu.memory_space<vmem>>, vector<1x1x128xf32>
    %350 = vector.shape_cast %349 : vector<1x1x128xf32> to vector<1x128xf32>
    %351 = vector.shape_cast %348 : vector<1x128xf32> to vector<1x1x128xf32>
    tpu.vector_store %arg15[%c0_128, %c0_129, %c0_130], %351 {strides = array<i32>} : memref<1x1x128xf32, #tpu.memory_space<vmem>>, vector<1x1x128xf32>,
    return
  }
  func.func @transform_0(%arg0: i32) -> (i32, i32, i32) {
    %c0_i32 = arith.constant 0 : i32
    %c0_i32_0 = arith.constant 0 : i32
    %c0_i32_1 = arith.constant 0 : i32
    return %arg0, %c0_i32, %c0_i32_0 : i32, i32, i32
  }
  func.func @transform_1(%arg0: i32) -> (i32, i32, i32) {
    %c0_i32 = arith.constant 0 : i32
    %c0_i32_0 = arith.constant 0 : i32
    %c0_i32_1 = arith.constant 0 : i32
    return %arg0, %c0_i32, %c0_i32_0 : i32, i32, i32
  }
  func.func @transform_2(%arg0: i32) -> (i32, i32) {
    %c0_i32 = arith.constant 0 : i32
    %c0_i32_0 = arith.constant 0 : i32
    %c0_i32_1 = arith.constant 0 : i32
    return %c0_i32, %c0_i32_0 : i32, i32
  }
  func.func @transform_3(%arg0: i32) -> (i32, i32) {
    %c0_i32 = arith.constant 0 : i32
    %c0_i32_0 = arith.constant 0 : i32
    %c0_i32_1 = arith.constant 0 : i32
    return %c0_i32, %c0_i32_0 : i32, i32
  }
  func.func @transform_4(%arg0: i32) -> (i32, i32) {
    %c0_i32 = arith.constant 0 : i32
    %c0_i32_0 = arith.constant 0 : i32
    %c0_i32_1 = arith.constant 0 : i32
    return %c0_i32, %c0_i32_0 : i32, i32
  }
  func.func @transform_5(%arg0: i32) -> (i32, i32, i32) {
    %c0_i32 = arith.constant 0 : i32
    %c0_i32_0 = arith.constant 0 : i32
    %c0_i32_1 = arith.constant 0 : i32
    %c0_i32_2 = arith.constant 0 : i32
    return %c0_i32, %c0_i32_0, %c0_i32_1 : i32, i32, i32
  }
  func.func @transform_6(%arg0: i32) -> (i32, i32, i32) {
    %c0_i32 = arith.constant 0 : i32
    %c0_i32_0 = arith.constant 0 : i32
    %c0_i32_1 = arith.constant 0 : i32
    %c0_i32_2 = arith.constant 0 : i32
    return %c0_i32, %c0_i32_0, %c0_i32_1 : i32, i32, i32
  }
  func.func @transform_7(%arg0: i32) -> (i32, i32) {
    %c0_i32 = arith.constant 0 : i32
    %c0_i32_0 = arith.constant 0 : i32
    %c0_i32_1 = arith.constant 0 : i32
    return %c0_i32, %c0_i32_0 : i32, i32
  }
  func.func @transform_8(%arg0: i32) -> (i32, i32, i32) {
    %c0_i32 = arith.constant 0 : i32
    %c0_i32_0 = arith.constant 0 : i32
    %c0_i32_1 = arith.constant 0 : i32
    %c0_i32_2 = arith.constant 0 : i32
    return %c0_i32, %c0_i32_0, %c0_i32_1 : i32, i32, i32
  }
  func.func @transform_9(%arg0: i32) -> (i32, i32, i32) {
    %c0_i32 = arith.constant 0 : i32
    %c0_i32_0 = arith.constant 0 : i32
    %c0_i32_1 = arith.constant 0 : i32
    %c0_i32_2 = arith.constant 0 : i32
    return %c0_i32, %c0_i32_0, %c0_i32_1 : i32, i32, i32
  }
  func.func @transform_10(%arg0: i32) -> (i32, i32, i32) {
    %c0_i32 = arith.constant 0 : i32
    %c0_i32_0 = arith.constant 0 : i32
    %c0_i32_1 = arith.constant 0 : i32
    %c0_i32_2 = arith.constant 0 : i32
    return %c0_i32, %c0_i32_0, %c0_i32_1 : i32, i32, i32
  }
  func.func @transform_11(%arg0: i32) -> (i32, i32, i32) {
    %c0_i32 = arith.constant 0 : i32
    %c0_i32_0 = arith.constant 0 : i32
    %c0_i32_1 = arith.constant 0 : i32
    %c0_i32_2 = arith.constant 0 : i32
    return %c0_i32, %c0_i32_0, %c0_i32_1 : i32, i32, i32
  }
  func.func @transform_12(%arg0: i32) -> (i32, i32) {
    %c0_i32 = arith.constant 0 : i32
    %c0_i32_0 = arith.constant 0 : i32
    %c0_i32_1 = arith.constant 0 : i32
    return %c0_i32, %c0_i32_0 : i32, i32
  }
  func.func @transform_13(%arg0: i32) -> (i32, i32) {
    %c0_i32 = arith.constant 0 : i32
    %c0_i32_0 = arith.constant 0 : i32
    %c0_i32_1 = arith.constant 0 : i32
    return %c0_i32, %c0_i32_0 : i32, i32
  }
  func.func @transform_14(%arg0: i32) -> (i32, i32, i32) {
    %c0_i32 = arith.constant 0 : i32
    %c0_i32_0 = arith.constant 0 : i32
    %c0_i32_1 = arith.constant 0 : i32
    return %arg0, %c0_i32, %c0_i32_0 : i32, i32, i32
  }
}

</mosaic_0001>

<llo_original>
// kernel: tpu_custom_call.1
$region0: #{tpu_custom_call.1}
  #allocation0 [shape = 'u32[]', space=smem, size = 0x4, offset = 0x4, fixed_abs, tag = 'smem constant byte address 0x4 - core index']
  #allocation1 [shape = 'u32[144,128]{1,0:T(1,128)}', space=vmem, size = 0x12000, scoped, tag = 'internal scratch']
  %s0 = inlined_call_operand.hbm [shape: bf16[2,8,128], index: 0, kind: input, shape index: {}]
  %s1 = inlined_call_operand.hbm [shape: f32[2,1,8], index: 1, kind: input, shape index: {}]
  %s2 = inlined_call_operand.vmem [shape: f32[8,128], index: 2, kind: input, shape index: {}]
  %s3 = inlined_call_operand.hbm [shape: f32[8,128], index: 3, kind: input, shape index: {}]
  %s4 = inlined_call_operand.hbm [shape: f32[8,128], index: 4, kind: input, shape index: {}]
  %s5 = inlined_call_operand.vmem [shape: bf16[2,1,128], index: 5, kind: input, shape index: {}]
  %s6 = inlined_call_operand.vmem [shape: bf16[2,1,128], index: 6, kind: input, shape index: {}]
  %s7 = inlined_call_operand.vmem [shape: bf16[1,128], index: 7, kind: input, shape index: {}]
  %s8 = inlined_call_operand.hbm [shape: bf16[2,128,384], index: 8, kind: input, shape index: {}]
  %s9 = inlined_call_operand.hbm [shape: bf16[2,128,128], index: 9, kind: input, shape index: {}]
  %s10 = inlined_call_operand.hbm [shape: bf16[2,128,512], index: 10, kind: input, shape index: {}]
  %s11 = inlined_call_operand.hbm [shape: bf16[2,256,128], index: 11, kind: input, shape index: {}]
  %s12 = inlined_call_operand.hbm [shape: bf16[128,128], index: 12, kind: input, shape index: {}]
  %s13 = inlined_call_operand.vmem [shape: f32[1,128], index: 13, kind: input, shape index: {}]
  %s14 = inlined_call_operand.hbm [shape: f32[2,1,128], index: 14, kind: output, shape index: {}]
  %s15 = sld [smem:[#allocation0]]
  $region125: #{tpu_custom_call.1} parent=0
    _
  %s17 = ssub.s32 1, %s15
  %s18 = scalar_select 0, %s17, %s15
  $region1: #{tpu_custom_call.1} parent=0
    #allocation2 [shape = 'u8[4096]{0}', space=vmem, size = 0x1000, scoped, tag = 'input window, operand 0']
    #allocation3 [shape = 's32[2]{0}', space=sflag, size = 0x8, scoped, tag = 'scoped memory for tpu_custom_call.1']
    #allocation4 [shape = 's32[2]{0}', space=sflag, size = 0x8, scoped, tag = 'scoped memory for tpu_custom_call.1']
    #allocation5 [shape = 'u8[1024]{0}', space=vmem, size = 0x400, scoped, tag = 'input window, operand 1']
    #allocation6 [shape = 's32[2]{0}', space=sflag, size = 0x8, scoped, tag = 'scoped memory for tpu_custom_call.1']
    #allocation7 [shape = 'u8[4096]{0}', space=vmem, size = 0x1000, scoped, tag = 'input window, operand 3, single buffered']
    #allocation8 [shape = 'u8[4096]{0}', space=vmem, size = 0x1000, scoped, tag = 'input window, operand 4, single buffered']
    #allocation9 [shape = 's32[1]{0}', space=sflag, size = 0x4, scoped, tag = 'scoped memory for tpu_custom_call.1']
    #allocation10 [shape = 'u8[196608]{0}', space=vmem, size = 0x30000, scoped, tag = 'input window, operand 8, single buffered']
    #allocation11 [shape = 'u8[65536]{0}', space=vmem, size = 0x10000, scoped, tag = 'input window, operand 9, single buffered']
    #allocation12 [shape = 's32[1]{0}', space=sflag, size = 0x4, scoped, tag = 'scoped memory for tpu_custom_call.1']
    #allocation13 [shape = 'u8[262144]{0}', space=vmem, size = 0x40000, scoped, tag = 'input window, operand 10, single buffered']
    #allocation14 [shape = 'u8[131072]{0}', space=vmem, size = 0x20000, scoped, tag = 'input window, operand 11, single buffered']
    #allocation15 [shape = 's32[1]{0}', space=sflag, size = 0x4, scoped, tag = 'scoped memory for tpu_custom_call.1']
    #allocation16 [shape = 'u8[32768]{0}', space=vmem, size = 0x8000, scoped, tag = 'input window, operand 12, single buffered']
    #allocation17 [shape = 'u8[1024]{0}', space=vmem, size = 0x400, scoped, tag = 'output window, operand 0']
    %19 = vsyncpa [#allocation3], 0
    %s20 = scalar_lea.sflag [#allocation3], 1
    %21 = vsyncpa %s20, 0
    %22 = vsyncpa [#allocation6], 0
    %s23 = scalar_lea.sflag [#allocation6], 1
    %24 = vsyncpa %s23, 0
    %25 = vsyncpa [#allocation9], 0
    %26 = vsyncpa [#allocation12], 0
    %27 = vsyncpa [#allocation15], 0
    %28 = vsyncpa [#allocation4], 0
    %s29 = scalar_lea.sflag [#allocation4], 1
    %30 = vsyncpa %s29, 0
    loop: start=0, step=1, limit=4
    $region2: #{tpu_custom_call.1} parent=1 // loop_pre_header
      _
    $region3: #{tpu_custom_call.1} parent=1 // loop_header
      %s32 = sphi 0, %s36
      %p33 = scmp.ge.s32.totalorder %s32, 4
      %s42 = sphi 0, %s44
      %s45 = sphi 0, %s42
      %s46 = sphi 0, %s45
      %s62 = sphi 0, %s46
      %s68 = sphi 0, %s70
      %s71 = sphi 0, %s68
      %s72 = sphi 0, %s71
      %s88 = sphi 0, %s72
      %s92 = sphi 0, %s92
      %s94 = sphi 0, %s92
      %s95 = sphi 0, %s94
      %s109 = sphi 0, %s95
      %s113 = sphi 0, %s113
      %s115 = sphi 0, %s113
      %s116 = sphi 0, %s115
      %s130 = sphi 0, %s116
      %s134 = sphi 0, %s134
      %s136 = sphi 0, %s134
      %s137 = sphi 0, %s136
      %s151 = sphi 0, %s137
      %s155 = sphi 0, %s155
      %s157 = sphi 0, %s155
      %s158 = sphi 0, %s157
      %s172 = sphi 0, %s158
      %s176 = sphi 0, %s176
      %s178 = sphi 0, %s176
      %s179 = sphi 0, %s178
      %s193 = sphi 0, %s179
      %s197 = sphi 0, %s197
      %s199 = sphi 0, %s197
      %s200 = sphi 0, %s199
      %s214 = sphi 0, %s200
      %s218 = sphi 0, %s218
      %s220 = sphi 0, %s218
      %s221 = sphi 0, %s220
      %s235 = sphi 0, %s221
      %s239 = sphi 0, %s239
      %s241 = sphi 0, %s239
      %s242 = sphi 0, %s241
      %s256 = sphi 0, %s242
      %s260 = sphi 0, %s260
      %s262 = sphi 0, %s260
      %s263 = sphi 0, %s262
      %s277 = sphi 0, %s263
      %s281 = sphi 0, %s281
      %s283 = sphi 0, %s281
      %s284 = sphi 0, %s283
      %s298 = sphi 0, %s284
      %s302 = sphi 0, %s302
      %s304 = sphi 0, %s302
      %s305 = sphi 0, %s304
      %s319 = sphi 0, %s305
      %s323 = sphi 0, %s323
      %s325 = sphi 0, %s323
      %s326 = sphi 0, %s325
      %s340 = sphi 0, %s326
      %s346 = sphi 0, %s348
      %s349 = sphi 0, %s346
      %s350 = sphi 0, %s349
      %s366 = sphi 0, %s350
    $region4: #{tpu_custom_call.1} parent=1 // loop_header_branch
      %35 = sbr.rel (%p33) target = $region8
    $region5: #{tpu_custom_call.1} parent=1 // loop_body
      %s37 = ssub.s32 %s32, 1
      %s38 = ssub.s32 %s32, 2
      %s39 = sadd.s32 %s32, 1
      %s40 = ssub.s32 %s32, %s39
      %p41 = scmp.eq.s32.totalorder %s40, 0
      %s43 = sadd.s32 %s42, 1
      %s44 = scalar_select %p41, %s42, %s43
      %p47 = pneg %p41
      %p48 = scmp.eq.s32.totalorder %s32, 1
      %p49 = por %p47, %p48
      %p50 = scmp.ne.s32.totalorder %s42, %s45
      %p51 = scmp.eq.s32.totalorder %s32, 0
      %p52 = por %p50, %p51
      %p53 = scmp.ne.s32.totalorder %s42, %s45
      %p54 = scmp.eq.s32.totalorder %s37, 1
      %p55 = por %p53, %p54
      %p56 = scmp.ne.s32.totalorder %s45, %s46
      %p57 = scmp.eq.s32.totalorder %s37, 0
      %p58 = por %p56, %p57
      %p59 = scmp.ne.s32.totalorder %s45, %s46
      %p60 = scmp.eq.s32.totalorder %s38, 1
      %p61 = por %p59, %p60
      %p63 = scmp.ne.s32.totalorder %s46, %s62
      %p64 = scmp.eq.s32.totalorder %s38, 0
      %p65 = por %p63, %p64
      %s66 = ssub.s32 %s32, %s39
      %p67 = scmp.eq.s32.totalorder %s66, 0
      %s69 = sadd.s32 %s68, 1
      %s70 = scalar_select %p67, %s68, %s69
      %p73 = pneg %p67
      %p74 = scmp.eq.s32.totalorder %s32, 1
      %p75 = por %p73, %p74
      %p76 = scmp.ne.s32.totalorder %s68, %s71
      %p77 = scmp.eq.s32.totalorder %s32, 0
      %p78 = por %p76, %p77
      %p79 = scmp.ne.s32.totalorder %s68, %s71
      %p80 = scmp.eq.s32.totalorder %s37, 1
      %p81 = por %p79, %p80
      %p82 = scmp.ne.s32.totalorder %s71, %s72
      %p83 = scmp.eq.s32.totalorder %s37, 0
      %p84 = por %p82, %p83
      %p85 = scmp.ne.s32.totalorder %s71, %s72
      %p86 = scmp.eq.s32.totalorder %s38, 1
      %p87 = por %p85, %p86
      %p89 = scmp.ne.s32.totalorder %s72, %s88
      %p90 = scmp.eq.s32.totalorder %s38, 0
      %p91 = por %p89, %p90
      %s93 = sadd.s32 %s92, 1
      %p96 = scmp.eq.s32.totalorder %s32, 1
      %p97 = scmp.ne.s32.totalorder %s92, %s94
      %p98 = scmp.eq.s32.totalorder %s32, 0
      %p99 = por %p97, %p98
      %p100 = scmp.ne.s32.totalorder %s92, %s94
      %p101 = scmp.eq.s32.totalorder %s37, 1
      %p102 = por %p100, %p101
      %p103 = scmp.ne.s32.totalorder %s94, %s95
      %p104 = scmp.eq.s32.totalorder %s37, 0
      %p105 = por %p103, %p104
      %p106 = scmp.ne.s32.totalorder %s94, %s95
      %p107 = scmp.eq.s32.totalorder %s38, 1
      %p108 = por %p106, %p107
      %p110 = scmp.ne.s32.totalorder %s95, %s109
      %p111 = scmp.eq.s32.totalorder %s38, 0
      %p112 = por %p110, %p111
      %s114 = sadd.s32 %s113, 1
      %p117 = scmp.eq.s32.totalorder %s32, 1
      %p118 = scmp.ne.s32.totalorder %s113, %s115
      %p119 = scmp.eq.s32.totalorder %s32, 0
      %p120 = por %p118, %p119
      %p121 = scmp.ne.s32.totalorder %s113, %s115
      %p122 = scmp.eq.s32.totalorder %s37, 1
      %p123 = por %p121, %p122
      %p124 = scmp.ne.s32.totalorder %s115, %s116
      %p125 = scmp.eq.s32.totalorder %s37, 0
      %p126 = por %p124, %p125
      %p127 = scmp.ne.s32.totalorder %s115, %s116
      %p128 = scmp.eq.s32.totalorder %s38, 1
      %p129 = por %p127, %p128
      %p131 = scmp.ne.s32.totalorder %s116, %s130
      %p132 = scmp.eq.s32.totalorder %s38, 0
      %p133 = por %p131, %p132
      %s135 = sadd.s32 %s134, 1
      %p138 = scmp.eq.s32.totalorder %s32, 1
      %p139 = scmp.ne.s32.totalorder %s134, %s136
      %p140 = scmp.eq.s32.totalorder %s32, 0
      %p141 = por %p139, %p140
      %p142 = scmp.ne.s32.totalorder %s134, %s136
      %p143 = scmp.eq.s32.totalorder %s37, 1
      %p144 = por %p142, %p143
      %p145 = scmp.ne.s32.totalorder %s136, %s137
      %p146 = scmp.eq.s32.totalorder %s37, 0
      %p147 = por %p145, %p146
      %p148 = scmp.ne.s32.totalorder %s136, %s137
      %p149 = scmp.eq.s32.totalorder %s38, 1
      %p150 = por %p148, %p149
      %p152 = scmp.ne.s32.totalorder %s137, %s151
      %p153 = scmp.eq.s32.totalorder %s38, 0
      %p154 = por %p152, %p153
      %s156 = sadd.s32 %s155, 1
      %p159 = scmp.eq.s32.totalorder %s32, 1
      %p160 = scmp.ne.s32.totalorder %s155, %s157
      %p161 = scmp.eq.s32.totalorder %s32, 0
      %p162 = por %p160, %p161
      %p163 = scmp.ne.s32.totalorder %s155, %s157
      %p164 = scmp.eq.s32.totalorder %s37, 1
      %p165 = por %p163, %p164
      %p166 = scmp.ne.s32.totalorder %s157, %s158
      %p167 = scmp.eq.s32.totalorder %s37, 0
      %p168 = por %p166, %p167
      %p169 = scmp.ne.s32.totalorder %s157, %s158
      %p170 = scmp.eq.s32.totalorder %s38, 1
      %p171 = por %p169, %p170
      %p173 = scmp.ne.s32.totalorder %s158, %s172
      %p174 = scmp.eq.s32.totalorder %s38, 0
      %p175 = por %p173, %p174
      %s177 = sadd.s32 %s176, 1
      %p180 = scmp.eq.s32.totalorder %s32, 1
      %p181 = scmp.ne.s32.totalorder %s176, %s178
      %p182 = scmp.eq.s32.totalorder %s32, 0
      %p183 = por %p181, %p182
      %p184 = scmp.ne.s32.totalorder %s176, %s178
      %p185 = scmp.eq.s32.totalorder %s37, 1
      %p186 = por %p184, %p185
      %p187 = scmp.ne.s32.totalorder %s178, %s179
      %p188 = scmp.eq.s32.totalorder %s37, 0
      %p189 = por %p187, %p188
      %p190 = scmp.ne.s32.totalorder %s178, %s179
      %p191 = scmp.eq.s32.totalorder %s38, 1
      %p192 = por %p190, %p191
      %p194 = scmp.ne.s32.totalorder %s179, %s193
      %p195 = scmp.eq.s32.totalorder %s38, 0
      %p196 = por %p194, %p195
      %s198 = sadd.s32 %s197, 1
      %p201 = scmp.eq.s32.totalorder %s32, 1
      %p202 = scmp.ne.s32.totalorder %s197, %s199
      %p203 = scmp.eq.s32.totalorder %s32, 0
      %p204 = por %p202, %p203
      %p205 = scmp.ne.s32.totalorder %s197, %s199
      %p206 = scmp.eq.s32.totalorder %s37, 1
      %p207 = por %p205, %p206
      %p208 = scmp.ne.s32.totalorder %s199, %s200
      %p209 = scmp.eq.s32.totalorder %s37, 0
      %p210 = por %p208, %p209
      %p211 = scmp.ne.s32.totalorder %s199, %s200
      %p212 = scmp.eq.s32.totalorder %s38, 1
      %p213 = por %p211, %p212
      %p215 = scmp.ne.s32.totalorder %s200, %s214
      %p216 = scmp.eq.s32.totalorder %s38, 0
      %p217 = por %p215, %p216
      %s219 = sadd.s32 %s218, 1
      %p222 = scmp.eq.s32.totalorder %s32, 1
      %p223 = scmp.ne.s32.totalorder %s218, %s220
      %p224 = scmp.eq.s32.totalorder %s32, 0
      %p225 = por %p223, %p224
      %p226 = scmp.ne.s32.totalorder %s218, %s220
      %p227 = scmp.eq.s32.totalorder %s37, 1
      %p228 = por %p226, %p227
      %p229 = scmp.ne.s32.totalorder %s220, %s221
      %p230 = scmp.eq.s32.totalorder %s37, 0
      %p231 = por %p229, %p230
      %p232 = scmp.ne.s32.totalorder %s220, %s221
      %p233 = scmp.eq.s32.totalorder %s38, 1
      %p234 = por %p232, %p233
      %p236 = scmp.ne.s32.totalorder %s221, %s235
      %p237 = scmp.eq.s32.totalorder %s38, 0
      %p238 = por %p236, %p237
      %s240 = sadd.s32 %s239, 1
      %p243 = scmp.eq.s32.totalorder %s32, 1
      %p244 = scmp.ne.s32.totalorder %s239, %s241
      %p245 = scmp.eq.s32.totalorder %s32, 0
      %p246 = por %p244, %p245
      %p247 = scmp.ne.s32.totalorder %s239, %s241
      %p248 = scmp.eq.s32.totalorder %s37, 1
      %p249 = por %p247, %p248
      %p250 = scmp.ne.s32.totalorder %s241, %s242
      %p251 = scmp.eq.s32.totalorder %s37, 0
      %p252 = por %p250, %p251
      %p253 = scmp.ne.s32.totalorder %s241, %s242
      %p254 = scmp.eq.s32.totalorder %s38, 1
      %p255 = por %p253, %p254
      %p257 = scmp.ne.s32.totalorder %s242, %s256
      %p258 = scmp.eq.s32.totalorder %s38, 0
      %p259 = por %p257, %p258
      %s261 = sadd.s32 %s260, 1
      %p264 = scmp.eq.s32.totalorder %s32, 1
      %p265 = scmp.ne.s32.totalorder %s260, %s262
      %p266 = scmp.eq.s32.totalorder %s32, 0
      %p267 = por %p265, %p266
      %p268 = scmp.ne.s32.totalorder %s260, %s262
      %p269 = scmp.eq.s32.totalorder %s37, 1
      %p270 = por %p268, %p269
      %p271 = scmp.ne.s32.totalorder %s262, %s263
      %p272 = scmp.eq.s32.totalorder %s37, 0
      %p273 = por %p271, %p272
      %p274 = scmp.ne.s32.totalorder %s262, %s263
      %p275 = scmp.eq.s32.totalorder %s38, 1
      %p276 = por %p274, %p275
      %p278 = scmp.ne.s32.totalorder %s263, %s277
      %p279 = scmp.eq.s32.totalorder %s38, 0
      %p280 = por %p278, %p279
      %s282 = sadd.s32 %s281, 1
      %p285 = scmp.eq.s32.totalorder %s32, 1
      %p286 = scmp.ne.s32.totalorder %s281, %s283
      %p287 = scmp.eq.s32.totalorder %s32, 0
      %p288 = por %p286, %p287
      %p289 = scmp.ne.s32.totalorder %s281, %s283
      %p290 = scmp.eq.s32.totalorder %s37, 1
      %p291 = por %p289, %p290
      %p292 = scmp.ne.s32.totalorder %s283, %s284
      %p293 = scmp.eq.s32.totalorder %s37, 0
      %p294 = por %p292, %p293
      %p295 = scmp.ne.s32.totalorder %s283, %s284
      %p296 = scmp.eq.s32.totalorder %s38, 1
      %p297 = por %p295, %p296
      %p299 = scmp.ne.s32.totalorder %s284, %s298
      %p300 = scmp.eq.s32.totalorder %s38, 0
      %p301 = por %p299, %p300
      %s303 = sadd.s32 %s302, 1
      %p306 = scmp.eq.s32.totalorder %s32, 1
      %p307 = scmp.ne.s32.totalorder %s302, %s304
      %p308 = scmp.eq.s32.totalorder %s32, 0
      %p309 = por %p307, %p308
      %p310 = scmp.ne.s32.totalorder %s302, %s304
      %p311 = scmp.eq.s32.totalorder %s37, 1
      %p312 = por %p310, %p311
      %p313 = scmp.ne.s32.totalorder %s304, %s305
      %p314 = scmp.eq.s32.totalorder %s37, 0
      %p315 = por %p313, %p314
      %p316 = scmp.ne.s32.totalorder %s304, %s305
      %p317 = scmp.eq.s32.totalorder %s38, 1
      %p318 = por %p316, %p317
      %p320 = scmp.ne.s32.totalorder %s305, %s319
      %p321 = scmp.eq.s32.totalorder %s38, 0
      %p322 = por %p320, %p321
      %s324 = sadd.s32 %s323, 1
      %p327 = scmp.eq.s32.totalorder %s32, 1
      %p328 = scmp.ne.s32.totalorder %s323, %s325
      %p329 = scmp.eq.s32.totalorder %s32, 0
      %p330 = por %p328, %p329
      %p331 = scmp.ne.s32.totalorder %s323, %s325
      %p332 = scmp.eq.s32.totalorder %s37, 1
      %p333 = por %p331, %p332
      %p334 = scmp.ne.s32.totalorder %s325, %s326
      %p335 = scmp.eq.s32.totalorder %s37, 0
      %p336 = por %p334, %p335
      %p337 = scmp.ne.s32.totalorder %s325, %s326
      %p338 = scmp.eq.s32.totalorder %s38, 1
      %p339 = por %p337, %p338
      %p341 = scmp.ne.s32.totalorder %s326, %s340
      %p342 = scmp.eq.s32.totalorder %s38, 0
      %p343 = por %p341, %p342
      %s344 = ssub.s32 %s32, %s39
      %p345 = scmp.eq.s32.totalorder %s344, 0
      %s347 = sadd.s32 %s346, 1
      %s348 = scalar_select %p345, %s346, %s347
      %p351 = pneg %p345
      %p352 = scmp.eq.s32.totalorder %s32, 1
      %p353 = por %p351, %p352
      %p354 = scmp.ne.s32.totalorder %s346, %s349
      %p355 = scmp.eq.s32.totalorder %s32, 0
      %p356 = por %p354, %p355
      %p357 = scmp.ne.s32.totalorder %s346, %s349
      %p358 = scmp.eq.s32.totalorder %s37, 1
      %p359 = por %p357, %p358
      %p360 = scmp.ne.s32.totalorder %s349, %s350
      %p361 = scmp.eq.s32.totalorder %s37, 0
      %p362 = por %p360, %p361
      %p363 = scmp.ne.s32.totalorder %s349, %s350
      %p364 = scmp.eq.s32.totalorder %s38, 1
      %p365 = por %p363, %p364
      %p367 = scmp.ne.s32.totalorder %s350, %s366
      %p368 = scmp.eq.s32.totalorder %s38, 0
      %p369 = por %p367, %p368
      %p370 = scmp.le.s32.totalorder 1, %s32
      %p371 = scmp.lt.s32.totalorder %s32, 3
      %p372 = pnand %p370, %p371
      %p373 = pneg %p372
      // Predicated region
      $region9: #{tpu_custom_call.1} parent=5 // pred_check
        _
      $region10: #{tpu_custom_call.1} parent=5 // pred_check_branch
        %375 = sbr.rel (%p372) target = $region12
      $region11: #{tpu_custom_call.1} parent=5 // pred_region
        %s376 = ssub.s32 %s32, 1
        // Predicated region
        $region13: #{tpu_custom_call.1} parent=11 // pred_check
          %p377 = pneg %p105
        $region14: #{tpu_custom_call.1} parent=11 // pred_check_branch
          %379 = sbr.rel (%p377) target = $region16
        $region15: #{tpu_custom_call.1} parent=11 // pred_region
          _
        $region16: #{tpu_custom_call.1} parent=11 // pred_fallthru
          _
        // Predicated region
        $region17: #{tpu_custom_call.1} parent=11 // pred_check
          %p380 = pneg %p126
        $region18: #{tpu_custom_call.1} parent=11 // pred_check_branch
          %382 = sbr.rel (%p380) target = $region20
        $region19: #{tpu_custom_call.1} parent=11 // pred_region
          %s384 = ssub.s32 128, 128
          %385 = vsyncadd [#allocation6], %s384
          %s387 = sshll.u32 [#allocation7], 4
          %s388 = int_to_ptr.vmem [resolvable:$true] %s387
          %390 = dma.hbm_to_vmem [thread:$0]  %s3, 128, %s388, [#allocation6]
        $region20: #{tpu_custom_call.1} parent=11 // pred_fallthru
          _
        // Predicated region
        $region21: #{tpu_custom_call.1} parent=11 // pred_check
          %p391 = pneg %p147
        $region22: #{tpu_custom_call.1} parent=11 // pred_check_branch
          %393 = sbr.rel (%p391) target = $region24
        $region23: #{tpu_custom_call.1} parent=11 // pred_region
          %s395 = ssub.s32 128, 128
          %396 = vsyncadd [#allocation9], %s395
          %s398 = sshll.u32 [#allocation8], 4
          %s399 = int_to_ptr.vmem [resolvable:$true] %s398
          %401 = dma.hbm_to_vmem [thread:$0]  %s4, 128, %s399, [#allocation9]
        $region24: #{tpu_custom_call.1} parent=11 // pred_fallthru
          _
        // Predicated region
        $region25: #{tpu_custom_call.1} parent=11 // pred_check
          %p402 = pneg %p168
        $region26: #{tpu_custom_call.1} parent=11 // pred_check_branch
          %404 = sbr.rel (%p402) target = $region28
        $region27: #{tpu_custom_call.1} parent=11 // pred_region
          _
        $region28: #{tpu_custom_call.1} parent=11 // pred_fallthru
          _
        // Predicated region
        $region29: #{tpu_custom_call.1} parent=11 // pred_check
          %p405 = pneg %p189
        $region30: #{tpu_custom_call.1} parent=11 // pred_check_branch
          %407 = sbr.rel (%p405) target = $region32
        $region31: #{tpu_custom_call.1} parent=11 // pred_region
          _
        $region32: #{tpu_custom_call.1} parent=11 // pred_fallthru
          _
        // Predicated region
        $region33: #{tpu_custom_call.1} parent=11 // pred_check
          %p408 = pneg %p210
        $region34: #{tpu_custom_call.1} parent=11 // pred_check_branch
          %410 = sbr.rel (%p408) target = $region36
        $region35: #{tpu_custom_call.1} parent=11 // pred_region
          _
        $region36: #{tpu_custom_call.1} parent=11 // pred_fallthru
          _
        // Predicated region
        $region37: #{tpu_custom_call.1} parent=11 // pred_check
          %p411 = pneg %p231
        $region38: #{tpu_custom_call.1} parent=11 // pred_check_branch
          %413 = sbr.rel (%p411) target = $region40
        $region39: #{tpu_custom_call.1} parent=11 // pred_region
          %s415 = ssub.s32 6144, 6144
          %416 = vsyncadd [#allocation9], %s415
          %s417 = sshll.u32 [#allocation10], 4
          %s418 = int_to_ptr.vmem [resolvable:$true] %s417
          %423 = dma.hbm_to_vmem [thread:$0]  %s8, 6144, %s418, [#allocation9], 192, 192, 12
        $region40: #{tpu_custom_call.1} parent=11 // pred_fallthru
          _
        // Predicated region
        $region41: #{tpu_custom_call.1} parent=11 // pred_check
          %p424 = pneg %p252
        $region42: #{tpu_custom_call.1} parent=11 // pred_check_branch
          %426 = sbr.rel (%p424) target = $region44
        $region43: #{tpu_custom_call.1} parent=11 // pred_region
          %s428 = ssub.s32 2048, 2048
          %429 = vsyncadd [#allocation12], %s428
          %s430 = sshll.u32 [#allocation11], 4
          %s431 = int_to_ptr.vmem [resolvable:$true] %s430
          %436 = dma.hbm_to_vmem [thread:$0]  %s9, 2048, %s431, [#allocation12], 64, 64, 4
        $region44: #{tpu_custom_call.1} parent=11 // pred_fallthru
          _
        // Predicated region
        $region45: #{tpu_custom_call.1} parent=11 // pred_check
          %p437 = pneg %p273
        $region46: #{tpu_custom_call.1} parent=11 // pred_check_branch
          %439 = sbr.rel (%p437) target = $region48
        $region47: #{tpu_custom_call.1} parent=11 // pred_region
          %s441 = ssub.s32 8192, 8192
          %442 = vsyncadd [#allocation12], %s441
          %s443 = sshll.u32 [#allocation13], 4
          %s444 = int_to_ptr.vmem [resolvable:$true] %s443
          %449 = dma.hbm_to_vmem [thread:$0]  %s10, 8192, %s444, [#allocation12], 256, 256, 16
        $region48: #{tpu_custom_call.1} parent=11 // pred_fallthru
          _
        // Predicated region
        $region49: #{tpu_custom_call.1} parent=11 // pred_check
          %p450 = pneg %p294
        $region50: #{tpu_custom_call.1} parent=11 // pred_check_branch
          %452 = sbr.rel (%p450) target = $region52
        $region51: #{tpu_custom_call.1} parent=11 // pred_region
          %s454 = ssub.s32 4096, 4096
          %455 = vsyncadd [#allocation15], %s454
          %s456 = sshll.u32 [#allocation14], 4
          %s457 = int_to_ptr.vmem [resolvable:$true] %s456
          %462 = dma.hbm_to_vmem [thread:$0]  %s11, 4096, %s457, [#allocation15], 64, 64, 4
        $region52: #{tpu_custom_call.1} parent=11 // pred_fallthru
          _
        // Predicated region
        $region53: #{tpu_custom_call.1} parent=11 // pred_check
          %p463 = pneg %p315
        $region54: #{tpu_custom_call.1} parent=11 // pred_check_branch
          %465 = sbr.rel (%p463) target = $region56
        $region55: #{tpu_custom_call.1} parent=11 // pred_region
          %s467 = ssub.s32 1024, 1024
          %468 = vsyncadd [#allocation15], %s467
          %s469 = sshll.u32 [#allocation16], 4
          %s470 = int_to_ptr.vmem [resolvable:$true] %s469
          %475 = dma.hbm_to_vmem [thread:$0]  %s12, 1024, %s470, [#allocation15], 64, 64, 4
        $region56: #{tpu_custom_call.1} parent=11 // pred_fallthru
          _
        // Predicated region
        $region57: #{tpu_custom_call.1} parent=11 // pred_check
          %p476 = pneg %p336
        $region58: #{tpu_custom_call.1} parent=11 // pred_check_branch
          %478 = sbr.rel (%p476) target = $region60
        $region59: #{tpu_custom_call.1} parent=11 // pred_region
          _
        $region60: #{tpu_custom_call.1} parent=11 // pred_fallthru
          _
      $region12: #{tpu_custom_call.1} parent=5 // pred_fallthru
        _
      %p479 = scmp.lt.s32.totalorder %s32, 2
      // Predicated region
      $region61: #{tpu_custom_call.1} parent=5 // pred_check
        %p480 = pneg %p479
      $region62: #{tpu_custom_call.1} parent=5 // pred_check_branch
        %482 = sbr.rel (%p480) target = $region64
      $region63: #{tpu_custom_call.1} parent=5 // pred_region
        // Predicated region
        $region65: #{tpu_custom_call.1} parent=63 // pred_check
          %p483 = pneg %p52
        $region66: #{tpu_custom_call.1} parent=63 // pred_check_branch
          %485 = sbr.rel (%p483) target = $region68
        $region67: #{tpu_custom_call.1} parent=63 // pred_region
          %s486 = sand.u32 %s42, 1
          %s487 = scalar_lea.sflag [#allocation3], %s486
          %s488 = sand.u32 %s42, 1
          %s489 = smul.addr %s488, 4
          %s490 = scalar_lea.vmem [#allocation2], %s489
          %s492 = ssub.s32 64, 64
          %493 = vsyncadd %s487, %s492
          %s494 = smul.addr %s32, 64
          %s495 = scalar_lea.hbm %s0, %s494
          %s497 = sshll.u32 %s490, 4
          %s498 = int_to_ptr.vmem [resolvable:$true] %s497
          %500 = dma.hbm_to_vmem [thread:$0]  %s495, 64, %s498, %s487
        $region68: #{tpu_custom_call.1} parent=63 // pred_fallthru
          _
        // Predicated region
        $region69: #{tpu_custom_call.1} parent=63 // pred_check
          %p501 = pneg %p78
        $region70: #{tpu_custom_call.1} parent=63 // pred_check_branch
          %503 = sbr.rel (%p501) target = $region72
        $region71: #{tpu_custom_call.1} parent=63 // pred_region
          %s504 = sand.u32 %s32, 1
          %s505 = scalar_lea.sflag [#allocation6], %s504
          %s506 = sand.u32 %s68, 1
          %s507 = scalar_lea.vmem [#allocation5], %s506
          %s509 = ssub.s32 16, 16
          %510 = vsyncadd %s505, %s509
          %s511 = smul.addr %s32, 16
          %s512 = scalar_lea.hbm %s1, %s511
          %s514 = sshll.u32 %s507, 4
          %s515 = int_to_ptr.vmem [resolvable:$true] %s514
          %517 = dma.hbm_to_vmem [thread:$0]  %s512, 16, %s515, %s505
        $region72: #{tpu_custom_call.1} parent=63 // pred_fallthru
          _
      $region64: #{tpu_custom_call.1} parent=5 // pred_fallthru
        _
      %p518 = scmp.le.s32.totalorder 1, %s32
      %p519 = scmp.lt.s32.totalorder %s32, 3
      %p520 = pnand %p518, %p519
      %p521 = pneg %p520
      // Predicated region
      $region73: #{tpu_custom_call.1} parent=5 // pred_check
        _
      $region74: #{tpu_custom_call.1} parent=5 // pred_check_branch
        %523 = sbr.rel (%p520) target = $region76
      $region75: #{tpu_custom_call.1} parent=5 // pred_region
        %s524 = ssub.s32 %s32, 1
        %s525 = sand.u32 %s45, 1
        %s526 = scalar_lea.sflag [#allocation3], %s525
        %s527 = sand.u32 %s45, 1
        %s528 = smul.addr %s527, 4
        %s529 = scalar_lea.vmem [#allocation2], %s528
        // Predicated region
        $region77: #{tpu_custom_call.1} parent=75 // pred_check
          %p530 = pneg %p58
        $region78: #{tpu_custom_call.1} parent=75 // pred_check_branch
          %532 = sbr.rel (%p530) target = $region80
        $region79: #{tpu_custom_call.1} parent=75 // pred_region
          %533 = dma.done %s526, 64
        $region80: #{tpu_custom_call.1} parent=75 // pred_fallthru
          _
        %s534 = sand.u32 %s37, 1
        %s535 = scalar_lea.sflag [#allocation6], %s534
        %s536 = sand.u32 %s71, 1
        %s537 = scalar_lea.vmem [#allocation5], %s536
        // Predicated region
        $region81: #{tpu_custom_call.1} parent=75 // pred_check
          %p538 = pneg %p84
        $region82: #{tpu_custom_call.1} parent=75 // pred_check_branch
          %540 = sbr.rel (%p538) target = $region84
        $region83: #{tpu_custom_call.1} parent=75 // pred_region
          %541 = dma.done %s535, 16
        $region84: #{tpu_custom_call.1} parent=75 // pred_fallthru
          _
        // Predicated region
        $region85: #{tpu_custom_call.1} parent=75 // pred_check
          %p542 = pneg %p126
        $region86: #{tpu_custom_call.1} parent=75 // pred_check_branch
          %544 = sbr.rel (%p542) target = $region88
        $region87: #{tpu_custom_call.1} parent=75 // pred_region
          %545 = dma.done [#allocation6], 128
        $region88: #{tpu_custom_call.1} parent=75 // pred_fallthru
          _
        // Predicated region
        $region89: #{tpu_custom_call.1} parent=75 // pred_check
          %p546 = pneg %p147
        $region90: #{tpu_custom_call.1} parent=75 // pred_check_branch
          %548 = sbr.rel (%p546) target = $region92
        $region91: #{tpu_custom_call.1} parent=75 // pred_region
          %549 = dma.done [#allocation9], 128
        $region92: #{tpu_custom_call.1} parent=75 // pred_fallthru
          _
        // Predicated region
        $region93: #{tpu_custom_call.1} parent=75 // pred_check
          %p550 = pneg %p231
        $region94: #{tpu_custom_call.1} parent=75 // pred_check_branch
          %552 = sbr.rel (%p550) target = $region96
        $region95: #{tpu_custom_call.1} parent=75 // pred_region
          %553 = dma.done [#allocation9], 6144
        $region96: #{tpu_custom_call.1} parent=75 // pred_fallthru
          _
        // Predicated region
        $region97: #{tpu_custom_call.1} parent=75 // pred_check
          %p554 = pneg %p252
        $region98: #{tpu_custom_call.1} parent=75 // pred_check_branch
          %556 = sbr.rel (%p554) target = $region100
        $region99: #{tpu_custom_call.1} parent=75 // pred_region
          %557 = dma.done [#allocation12], 2048
        $region100: #{tpu_custom_call.1} parent=75 // pred_fallthru
          _
        // Predicated region
        $region101: #{tpu_custom_call.1} parent=75 // pred_check
          %p558 = pneg %p273
        $region102: #{tpu_custom_call.1} parent=75 // pred_check_branch
          %560 = sbr.rel (%p558) target = $region104
        $region103: #{tpu_custom_call.1} parent=75 // pred_region
          %561 = dma.done [#allocation12], 8192
        $region104: #{tpu_custom_call.1} parent=75 // pred_fallthru
          _
        // Predicated region
        $region105: #{tpu_custom_call.1} parent=75 // pred_check
          %p562 = pneg %p294
        $region106: #{tpu_custom_call.1} parent=75 // pred_check_branch
          %564 = sbr.rel (%p562) target = $region108
        $region107: #{tpu_custom_call.1} parent=75 // pred_region
          %565 = dma.done [#allocation15], 4096
        $region108: #{tpu_custom_call.1} parent=75 // pred_fallthru
          _
        // Predicated region
        $region109: #{tpu_custom_call.1} parent=75 // pred_check
          %p566 = pneg %p315
        $region110: #{tpu_custom_call.1} parent=75 // pred_check_branch
          %568 = sbr.rel (%p566) target = $region112
        $region111: #{tpu_custom_call.1} parent=75 // pred_region
          %569 = dma.done [#allocation15], 1024
        $region112: #{tpu_custom_call.1} parent=75 // pred_fallthru
          _
        %s570 = sand.u32 %s45, 1
        %s571 = scalar_lea.sflag [#allocation3], %s570
        %s572 = sand.u32 %s45, 1
        %s573 = smul.addr %s572, 4
        %s574 = scalar_lea.vmem [#allocation2], %s573
        %p575 = pneg %p58
        %p576 = pneg %p55
        %s577 = sand.u32 %s37, 1
        %s578 = scalar_lea.sflag [#allocation6], %s577
        %s579 = sand.u32 %s71, 1
        %s580 = scalar_lea.vmem [#allocation5], %s579
        %p581 = pneg %p84
        %p582 = pneg %p81
        %p583 = pneg %p105
        %p584 = pneg %p102
        %p585 = pneg %p126
        %p586 = pneg %p123
        %p587 = pneg %p147
        %p588 = pneg %p144
        %p589 = pneg %p168
        %p590 = pneg %p165
        %p591 = pneg %p189
        %p592 = pneg %p186
        %p593 = pneg %p210
        %p594 = pneg %p207
        %p595 = pneg %p231
        %p596 = pneg %p228
        %p597 = pneg %p252
        %p598 = pneg %p249
        %p599 = pneg %p273
        %p600 = pneg %p270
        %p601 = pneg %p294
        %p602 = pneg %p291
        %p603 = pneg %p315
        %p604 = pneg %p312
        %p605 = pneg %p336
        %p606 = pneg %p333
        %p607 = pneg %p362
        %p608 = pneg %p359
        %s609 = sand.u32 %s349, 1
        %s610 = scalar_lea.sflag [#allocation4], %s609
        %s611 = sand.u32 %s349, 1
        %s612 = scalar_lea.vmem [#allocation17], %s611
        %v614 = vld [vmem:[%s529] sm:$0xf]
        %v615 = vunpack.c.l.bf16 %v614
        %v616 = vld [vmem:[%s537] sm:$0x1]
        %v617 = vlaneseq
        %v618 = vshrl.u32 %v617, 7
        %v619 = vlaneseq
        %v620 = vand.u32 %v619, 127
        %vm621 = vcmp.le.s32.totalorder %v620, %v618
        %vm622 = vcmp.gt.f32.partialorder %v616, 0.5
        %v623 = vsel %vm622, 1, 0
        %v624 = vlaneseq
        %v625 = vshrl.u32 %v624, 7
        %v626 = vsub.s32 0, %v625
        %v627 = vrot.slane %v623, %v626
        %vm628 = vcmp.eq.s32.totalorder %v627, 1
        %vm629 = vmand %vm621, %vm628
        %v630 = vsel %vm629, 0.0, -1e+09
        %v631 = vld [vmem:[%s2] sm:$0xff]
        %v632 = vld [vmem:[#allocation7] sm:$0xff]
        %v633 = vld [vmem:[#allocation8] sm:$0xff]
        %v634 = vld [vmem:[%s5] sm:$0x1]
        %v635 = vunpack.c.l.bf16 %v634
        %v636 = vmul.f32 %v615, %v615
        %637 = vadd.xlane.f32.xlu0 %v636
        %v638 = vpop.xlane.xlu0 %637
        %v639 = vrcp.pop 128.0
        %v640 = vmul.f32 %v638, %v639
        %v641 = vadd.f32 %v640, 1e-06
        %v642 = vrsqrt.pop %v641
        %v643 = vmul.f32 %v615, %v642
        %v644 = vlaneseq
        %v645 = vshrl.u32 %v644, 7
        %v646 = vsub.s32 0, %v645
        %v647 = vrot.slane %v635, %v646
        %v648 = vmul.f32 %v643, %v647
        %v649 = vpack.c.bf16 %v648, %v648
        %v650 = vld [vmem:[#allocation10] sm:$0xff]
        %v651 = vld [vmem:[#allocation10 + $0x8] sm:$0xf]
        %v652 = vld [vmem:[#allocation10 + $0xc] sm:$0xff]
        %v653 = vld [vmem:[#allocation10 + $0x14] sm:$0xf]
        %v654 = vld [vmem:[#allocation10 + $0x18] sm:$0xff]
        %v655 = vld [vmem:[#allocation10 + $0x20] sm:$0xf]
        %v656 = vld [vmem:[#allocation10 + $0x24] sm:$0xff]
        %v657 = vld [vmem:[#allocation10 + $0x2c] sm:$0xf]
        %v658 = vld [vmem:[#allocation10 + $0x30] sm:$0xff]
        %v659 = vld [vmem:[#allocation10 + $0x38] sm:$0xf]
        %v660 = vld [vmem:[#allocation10 + $0x3c] sm:$0xff]
        %v661 = vld [vmem:[#allocation10 + $0x44] sm:$0xf]
        %v662 = vld [vmem:[#allocation10 + $0x48] sm:$0xff]
        %v663 = vld [vmem:[#allocation10 + $0x50] sm:$0xf]
        %v664 = vld [vmem:[#allocation10 + $0x54] sm:$0xff]
        %v665 = vld [vmem:[#allocation10 + $0x5c] sm:$0xf]
        %v666 = vld [vmem:[#allocation10 + $0x60] sm:$0xff]
        %v667 = vld [vmem:[#allocation10 + $0x68] sm:$0xf]
        %v668 = vld [vmem:[#allocation10 + $0x6c] sm:$0xff]
        %v669 = vld [vmem:[#allocation10 + $0x74] sm:$0xf]
        %v670 = vld [vmem:[#allocation10 + $0x78] sm:$0xff]
        %v671 = vld [vmem:[#allocation10 + $0x80] sm:$0xf]
        %v672 = vld [vmem:[#allocation10 + $0x84] sm:$0xff]
        %v673 = vld [vmem:[#allocation10 + $0x8c] sm:$0xf]
        %v674 = vld [vmem:[#allocation10 + $0x90] sm:$0xff]
        %v675 = vld [vmem:[#allocation10 + $0x98] sm:$0xf]
        %v676 = vld [vmem:[#allocation10 + $0x9c] sm:$0xff]
        %v677 = vld [vmem:[#allocation10 + $0xa4] sm:$0xf]
        %v678 = vld [vmem:[#allocation10 + $0xa8] sm:$0xff]
        %v679 = vld [vmem:[#allocation10 + $0xb0] sm:$0xf]
        %v680 = vld [vmem:[#allocation10 + $0xb4] sm:$0xff]
        %v681 = vld [vmem:[#allocation10 + $0xbc] sm:$0xf]
        %v714 = vunpack.c.l.b16 %v650
        %v715 = vunpack.c.h.b16 %v650
        %v716 = vunpack.c.l.b16 %v651
        %v717 = vunpack.c.l.b16 %v652
        %v718 = vunpack.c.h.b16 %v652
        %v719 = vunpack.c.l.b16 %v653
        %v720 = vunpack.c.l.b16 %v654
        %v721 = vunpack.c.h.b16 %v654
        %v722 = vunpack.c.l.b16 %v655
        %v723 = vunpack.c.l.b16 %v656
        %v724 = vunpack.c.h.b16 %v656
        %v725 = vunpack.c.l.b16 %v657
        %v726 = vunpack.c.l.b16 %v658
        %v727 = vunpack.c.h.b16 %v658
        %v728 = vunpack.c.l.b16 %v659
        %v729 = vunpack.c.l.b16 %v660
        %v730 = vunpack.c.h.b16 %v660
        %v731 = vunpack.c.l.b16 %v661
        %v732 = vunpack.c.l.b16 %v662
        %v733 = vunpack.c.h.b16 %v662
        %v734 = vunpack.c.l.b16 %v663
        %v735 = vunpack.c.l.b16 %v664
        %v736 = vunpack.c.h.b16 %v664
        %v737 = vunpack.c.l.b16 %v665
        %v738 = vunpack.c.l.b16 %v666
        %v739 = vunpack.c.h.b16 %v666
        %v740 = vunpack.c.l.b16 %v667
        %v741 = vunpack.c.l.b16 %v668
        %v742 = vunpack.c.h.b16 %v668
        %v743 = vunpack.c.l.b16 %v669
        %v744 = vunpack.c.l.b16 %v670
        %v745 = vunpack.c.h.b16 %v670
        %v746 = vunpack.c.l.b16 %v671
        %v747 = vunpack.c.l.b16 %v672
        %v748 = vunpack.c.h.b16 %v672
        %v749 = vunpack.c.l.b16 %v673
        %v750 = vunpack.c.l.b16 %v674
        %v751 = vunpack.c.h.b16 %v674
        %v752 = vunpack.c.l.b16 %v675
        %v753 = vunpack.c.l.b16 %v676
        %v754 = vunpack.c.h.b16 %v676
        %v755 = vunpack.c.l.b16 %v677
        %v756 = vunpack.c.l.b16 %v678
        %v757 = vunpack.c.h.b16 %v678
        %v758 = vunpack.c.l.b16 %v679
        %v759 = vunpack.c.l.b16 %v680
        %v760 = vunpack.c.h.b16 %v680
        %v761 = vunpack.c.l.b16 %v681
        %v762 = vpack.c.b16 %v717, %v714
        %v763 = vpack.c.b16 %v718, %v715
        %v764 = vpack.c.b16 %v719, %v716
        %v765 = vpack.c.b16 %v723, %v720
        %v766 = vpack.c.b16 %v724, %v721
        %v767 = vpack.c.b16 %v725, %v722
        %v768 = vpack.c.b16 %v729, %v726
        %v769 = vpack.c.b16 %v730, %v727
        %v770 = vpack.c.b16 %v731, %v728
        %v771 = vpack.c.b16 %v735, %v732
        %v772 = vpack.c.b16 %v736, %v733
        %v773 = vpack.c.b16 %v737, %v734
        %v774 = vpack.c.b16 %v741, %v738
        %v775 = vpack.c.b16 %v742, %v739
        %v776 = vpack.c.b16 %v743, %v740
        %v777 = vpack.c.b16 %v747, %v744
        %v778 = vpack.c.b16 %v748, %v745
        %v779 = vpack.c.b16 %v749, %v746
        %v780 = vpack.c.b16 %v753, %v750
        %v781 = vpack.c.b16 %v754, %v751
        %v782 = vpack.c.b16 %v755, %v752
        %v783 = vpack.c.b16 %v759, %v756
        %v784 = vpack.c.b16 %v760, %v757
        %v785 = vpack.c.b16 %v761, %v758
        %810 = vmatprep.subr.bf16.mxu0 %v784
        %811 = vmatpush1.bf16.msra.mxu0 %v783
        %812 = vmatprep.subr.bf16.mxu0 %v781
        %813 = vmatpush1.bf16.msra.mxu0 %v780
        %814 = vmatprep.subr.bf16.mxu0 %v778
        %815 = vmatpush1.bf16.msra.mxu0 %v777
        %816 = vmatprep.subr.bf16.mxu0 %v775
        %817 = vmatpush1.bf16.msra.mxu0 %v774
        %818 = vmatprep.subr.bf16.mxu0 %v772
        %819 = vmatpush1.bf16.msra.mxu0 %v771
        %820 = vmatprep.subr.bf16.mxu0 %v769
        %821 = vmatpush1.bf16.msra.mxu0 %v768
        %822 = vmatprep.subr.bf16.mxu0 %v766
        %823 = vmatpush1.bf16.msra.mxu0 %v765
        %824 = vmatprep.subr.bf16.mxu0 %v763
        %825 = vmatpush1.bf16.msra.mxu0 %v762
        %826 = vmatprep.subr.bf16.mxu0 0
        %827 = vmatpush2.bf16.msra.mxu0 0
        %828 = vmatprep.subr.bf16.mxu0 0
        %829 = vmatpush2.bf16.msra.mxu0 0
        %830 = vmatprep.subr.bf16.mxu0 0
        %831 = vmatpush2.bf16.msra.mxu0 0
        %832 = vmatprep.subr.bf16.mxu0 0
        %833 = vmatpush2.bf16.msra.mxu0 0
        %834 = vmatprep.subr.bf16.mxu0 0
        %835 = vmatpush2.bf16.msra.mxu0 0
        %836 = vmatprep.subr.bf16.mxu0 0
        %837 = vmatpush2.bf16.msra.mxu0 0
        %838 = vmatprep.subr.bf16.mxu0 0
        %839 = vmatpush2.bf16.msra.mxu0 0
        %840 = vmatprep.subr.bf16.mxu0 0
        %841 = vmatpush2.bf16.msra.mxu0 0
        %842 = vmatprep.mubr.bf16.mxu0 0
        %843 = vmatmul.mubr.bf16.gmra.mxu0 %v649
        %v844 = vpop.f32.mrf.mxu0
        %v845 = vadd.f32 0.0, %v844
        %v846 = vpop.f32.mrf.mxu0
        %v847 = vadd.f32 0.0, %v846
        %v848 = vpop.f32.mrf.mxu0
        %v849 = vpop.f32.mrf.mxu0
        %850 = vdwg.mxu0
        %851 = vmatprep.subr.bf16.mxu0 0
        %852 = vmatpush1.bf16.msra.mxu0 %v785
        %853 = vmatprep.subr.bf16.mxu0 0
        %854 = vmatpush1.bf16.msra.mxu0 %v782
        %855 = vmatprep.subr.bf16.mxu0 0
        %856 = vmatpush1.bf16.msra.mxu0 %v779
        %857 = vmatprep.subr.bf16.mxu0 0
        %858 = vmatpush1.bf16.msra.mxu0 %v776
        %859 = vmatprep.subr.bf16.mxu0 0
        %860 = vmatpush1.bf16.msra.mxu0 %v773
        %861 = vmatprep.subr.bf16.mxu0 0
        %862 = vmatpush1.bf16.msra.mxu0 %v770
        %863 = vmatprep.subr.bf16.mxu0 0
        %864 = vmatpush1.bf16.msra.mxu0 %v767
        %865 = vmatprep.subr.bf16.mxu0 0
        %866 = vmatpush1.bf16.msra.mxu0 %v764
        %867 = vmatprep.subr.bf16.mxu0 0
        %868 = vmatpush2.bf16.msra.mxu0 0
        %869 = vmatprep.subr.bf16.mxu0 0
        %870 = vmatpush2.bf16.msra.mxu0 0
        %871 = vmatprep.subr.bf16.mxu0 0
        %872 = vmatpush2.bf16.msra.mxu0 0
        %873 = vmatprep.subr.bf16.mxu0 0
        %874 = vmatpush2.bf16.msra.mxu0 0
        %875 = vmatprep.subr.bf16.mxu0 0
        %876 = vmatpush2.bf16.msra.mxu0 0
        %877 = vmatprep.subr.bf16.mxu0 0
        %878 = vmatpush2.bf16.msra.mxu0 0
        %879 = vmatprep.subr.bf16.mxu0 0
        %880 = vmatpush2.bf16.msra.mxu0 0
        %881 = vmatprep.subr.bf16.mxu0 0
        %882 = vmatpush2.bf16.msra.mxu0 0
        %883 = vmatprep.mubr.bf16.mxu0 0
        %884 = vmatmul.mubr.bf16.gmra.mxu0 %v649
        %v885 = vpop.f32.mrf.mxu0
        %v886 = vadd.f32 0.0, %v885
        %v887 = vpop.f32.mrf.mxu0
        %v888 = vpop.f32.mrf.mxu0
        %v889 = vpop.f32.mrf.mxu0
        %890 = vdwg.mxu0
        %v891 = vmul.f32 %v845, %v631
        %892 = vrot.lane.b32.xlu0 %v845, 112
        %v893 = vpop.permute.xlu0 %892
        %v894 = vmul.f32 %v893, %v632
        %v895 = vadd.f32 %v891, %v894
        %896 = vrot.lane.b32.xlu0 %v845, 16
        %v897 = vpop.permute.xlu0 %896
        %v898 = vmul.f32 %v897, %v633
        %v899 = vadd.f32 %v895, %v898
        %v900 = vpack.c.bf16 %v899, %v899
        %v901 = vmul.f32 %v847, %v631
        %902 = vrot.lane.b32.xlu0 %v847, 112
        %v903 = vpop.permute.xlu0 %902
        %v904 = vmul.f32 %v903, %v632
        %v905 = vadd.f32 %v901, %v904
        %906 = vrot.lane.b32.xlu0 %v847, 16
        %v907 = vpop.permute.xlu0 %906
        %v908 = vmul.f32 %v907, %v633
        %v909 = vadd.f32 %v905, %v908
        %v910 = vpack.c.bf16 %v909, %v909
        %v911 = vpack.c.bf16 %v886, %v886
        %vm912 = vcmask 261120
        %v914 = vsel %vm912, %v900, 0
        %v917 = vsel %vm912, %v910, 0
        %919 = vmatprep.subr.bf16.mxu0 0
        %920 = vmatpush1.bf16.xpose.msra.mxu0 0
        %921 = vmatprep.subr.bf16.mxu0 0
        %922 = vmatpush1.bf16.xpose.msra.mxu0 0
        %923 = vmatprep.subr.bf16.mxu0 0
        %924 = vmatpush1.bf16.xpose.msra.mxu0 0
        %925 = vmatprep.subr.bf16.mxu0 0
        %926 = vmatpush1.bf16.xpose.msra.mxu0 0
        %927 = vmatprep.subr.bf16.mxu0 0
        %928 = vmatpush1.bf16.xpose.msra.mxu0 0
        %929 = vmatprep.subr.bf16.mxu0 0
        %930 = vmatpush1.bf16.xpose.msra.mxu0 0
        %931 = vmatprep.subr.bf16.mxu0 0
        %932 = vmatpush1.bf16.xpose.msra.mxu0 0
        %933 = vmatprep.subr.bf16.mxu0 0
        %934 = vmatpush1.bf16.xpose.msra.mxu0 %v917
        %935 = vmatprep.subr.bf16.mxu0 0
        %936 = vmatpush2.bf16.xpose.msra.mxu0 0
        %937 = vmatprep.subr.bf16.mxu0 0
        %938 = vmatpush2.bf16.xpose.msra.mxu0 0
        %939 = vmatprep.subr.bf16.mxu0 0
        %940 = vmatpush2.bf16.xpose.msra.mxu0 0
        %941 = vmatprep.subr.bf16.mxu0 0
        %942 = vmatpush2.bf16.xpose.msra.mxu0 0
        %943 = vmatprep.subr.bf16.mxu0 0
        %944 = vmatpush2.bf16.xpose.msra.mxu0 0
        %945 = vmatprep.subr.bf16.mxu0 0
        %946 = vmatpush2.bf16.xpose.msra.mxu0 0
        %947 = vmatprep.subr.bf16.mxu0 0
        %948 = vmatpush2.bf16.xpose.msra.mxu0 0
        %949 = vmatprep.subr.bf16.mxu0 0
        %950 = vmatpush2.bf16.xpose.msra.mxu0 0
        %951 = vmatprep.mubr.bf16.mxu0 0
        %952 = vmatmul.mubr.bf16.gmra.mxu0 %v914
        %v953 = vpop.f32.mrf.mxu0
        %v954 = vadd.f32 0.0, %v953
        %v955 = vpop.f32.mrf.mxu0
        %v956 = vpop.f32.mrf.mxu0
        %v957 = vpop.f32.mrf.mxu0
        %958 = vdwg.mxu0
        %v959 = vmul.f32 %v954, 0.17677669
        %v960 = vadd.f32 %v959, %v630
        %vm961 = vcmask 64512
        %v962 = vsel %vm961, %v960, -inf
        %963 = vmax.xlane.f32.xlu0 %v962
        %v964 = vpop.xlane.xlu0 %963
        %v965 = vsub.f32 %v960, %v964
        %v966 = vmul.f32 %v965, 1.442695
        %v967 = vpow.pop %v966
        %v968 = vsel %vm961, %v967, 0.0
        %969 = vadd.xlane.f32.xlu0 %v968
        %v970 = vpop.xlane.xlu0 %969
        %v971 = vrcp.pop %v970
        %v972 = vmul.f32 %v967, %v971
        %v973 = vpack.c.bf16 %v972, %v972
        %v975 = vsel %vm961, %v973, 0
        %vm977 = vcmask 1043456
        %v979 = vsel %vm977, %v911, 0
        %981 = vmatprep.subr.bf16.mxu0 0
        %982 = vmatpush1.bf16.msra.mxu0 0
        %983 = vmatprep.subr.bf16.mxu0 0
        %984 = vmatpush1.bf16.msra.mxu0 0
        %985 = vmatprep.subr.bf16.mxu0 0
        %986 = vmatpush1.bf16.msra.mxu0 0
        %987 = vmatprep.subr.bf16.mxu0 0
        %988 = vmatpush1.bf16.msra.mxu0 0
        %989 = vmatprep.subr.bf16.mxu0 0
        %990 = vmatpush1.bf16.msra.mxu0 0
        %991 = vmatprep.subr.bf16.mxu0 0
        %992 = vmatpush1.bf16.msra.mxu0 0
        %993 = vmatprep.subr.bf16.mxu0 0
        %994 = vmatpush1.bf16.msra.mxu0 0
        %995 = vmatprep.subr.bf16.mxu0 0
        %996 = vmatpush1.bf16.msra.mxu0 %v979
        %997 = vmatprep.subr.bf16.mxu0 0
        %998 = vmatpush2.bf16.msra.mxu0 0
        %999 = vmatprep.subr.bf16.mxu0 0
        %1000 = vmatpush2.bf16.msra.mxu0 0
        %1001 = vmatprep.subr.bf16.mxu0 0
        %1002 = vmatpush2.bf16.msra.mxu0 0
        %1003 = vmatprep.subr.bf16.mxu0 0
        %1004 = vmatpush2.bf16.msra.mxu0 0
        %1005 = vmatprep.subr.bf16.mxu0 0
        %1006 = vmatpush2.bf16.msra.mxu0 0
        %1007 = vmatprep.subr.bf16.mxu0 0
        %1008 = vmatpush2.bf16.msra.mxu0 0
        %1009 = vmatprep.subr.bf16.mxu0 0
        %1010 = vmatpush2.bf16.msra.mxu0 0
        %1011 = vmatprep.subr.bf16.mxu0 0
        %1012 = vmatpush2.bf16.msra.mxu0 0
        %1013 = vmatprep.mubr.bf16.mxu0 0
        %1014 = vmatmul.mubr.bf16.gmra.mxu0 %v975
        %v1015 = vpop.f32.mrf.mxu0
        %v1016 = vadd.f32 0.0, %v1015
        %v1017 = vpop.f32.mrf.mxu0
        %v1018 = vpop.f32.mrf.mxu0
        %v1019 = vpop.f32.mrf.mxu0
        %1020 = vdwg.mxu0
        %1022 = vrot.lane.b32.xlu0 %v900, 96
        %v1023 = vpop.permute.xlu0 %1022
        %1025 = vrot.lane.b32.xlu0 %v910, 96
        %v1026 = vpop.permute.xlu0 %1025
        %v1028 = vsel %vm912, %v1023, 0
        %v1031 = vsel %vm912, %v1026, 0
        %1033 = vmatprep.subr.bf16.mxu0 0
        %1034 = vmatpush1.bf16.xpose.msra.mxu0 0
        %1035 = vmatprep.subr.bf16.mxu0 0
        %1036 = vmatpush1.bf16.xpose.msra.mxu0 0
        %1037 = vmatprep.subr.bf16.mxu0 0
        %1038 = vmatpush1.bf16.xpose.msra.mxu0 0
        %1039 = vmatprep.subr.bf16.mxu0 0
        %1040 = vmatpush1.bf16.xpose.msra.mxu0 0
        %1041 = vmatprep.subr.bf16.mxu0 0
        %1042 = vmatpush1.bf16.xpose.msra.mxu0 0
        %1043 = vmatprep.subr.bf16.mxu0 0
        %1044 = vmatpush1.bf16.xpose.msra.mxu0 0
        %1045 = vmatprep.subr.bf16.mxu0 0
        %1046 = vmatpush1.bf16.xpose.msra.mxu0 0
        %1047 = vmatprep.subr.bf16.mxu0 0
        %1048 = vmatpush1.bf16.xpose.msra.mxu0 %v1031
        %1049 = vmatprep.subr.bf16.mxu0 0
        %1050 = vmatpush2.bf16.xpose.msra.mxu0 0
        %1051 = vmatprep.subr.bf16.mxu0 0
        %1052 = vmatpush2.bf16.xpose.msra.mxu0 0
        %1053 = vmatprep.subr.bf16.mxu0 0
        %1054 = vmatpush2.bf16.xpose.msra.mxu0 0
        %1055 = vmatprep.subr.bf16.mxu0 0
        %1056 = vmatpush2.bf16.xpose.msra.mxu0 0
        %1057 = vmatprep.subr.bf16.mxu0 0
        %1058 = vmatpush2.bf16.xpose.msra.mxu0 0
        %1059 = vmatprep.subr.bf16.mxu0 0
        %1060 = vmatpush2.bf16.xpose.msra.mxu0 0
        %1061 = vmatprep.subr.bf16.mxu0 0
        %1062 = vmatpush2.bf16.xpose.msra.mxu0 0
        %1063 = vmatprep.subr.bf16.mxu0 0
        %1064 = vmatpush2.bf16.xpose.msra.mxu0 0
        %1065 = vmatprep.mubr.bf16.mxu0 0
        %1066 = vmatmul.mubr.bf16.gmra.mxu0 %v1028
        %v1067 = vpop.f32.mrf.mxu0
        %v1068 = vadd.f32 0.0, %v1067
        %v1069 = vpop.f32.mrf.mxu0
        %v1070 = vpop.f32.mrf.mxu0
        %v1071 = vpop.f32.mrf.mxu0
        %1072 = vdwg.mxu0
        %v1073 = vmul.f32 %v1068, 0.17677669
        %v1074 = vadd.f32 %v1073, %v630
        %v1075 = vsel %vm961, %v1074, -inf
        %1076 = vmax.xlane.f32.xlu0 %v1075
        %v1077 = vpop.xlane.xlu0 %1076
        %v1078 = vsub.f32 %v1074, %v1077
        %v1079 = vmul.f32 %v1078, 1.442695
        %v1080 = vpow.pop %v1079
        %v1081 = vsel %vm961, %v1080, 0.0
        %1082 = vadd.xlane.f32.xlu0 %v1081
        %v1083 = vpop.xlane.xlu0 %1082
        %v1084 = vrcp.pop %v1083
        %v1085 = vmul.f32 %v1080, %v1084
        %v1086 = vpack.c.bf16 %v1085, %v1085
        %1088 = vrot.lane.b32.xlu0 %v911, 96
        %v1089 = vpop.permute.xlu0 %1088
        %v1091 = vsel %vm961, %v1086, 0
        %v1094 = vsel %vm977, %v1089, 0
        %1096 = vmatprep.subr.bf16.mxu0 0
        %1097 = vmatpush1.bf16.msra.mxu0 0
        %1098 = vmatprep.subr.bf16.mxu0 0
        %1099 = vmatpush1.bf16.msra.mxu0 0
        %1100 = vmatprep.subr.bf16.mxu0 0
        %1101 = vmatpush1.bf16.msra.mxu0 0
        %1102 = vmatprep.subr.bf16.mxu0 0
        %1103 = vmatpush1.bf16.msra.mxu0 0
        %1104 = vmatprep.subr.bf16.mxu0 0
        %1105 = vmatpush1.bf16.msra.mxu0 0
        %1106 = vmatprep.subr.bf16.mxu0 0
        %1107 = vmatpush1.bf16.msra.mxu0 0
        %1108 = vmatprep.subr.bf16.mxu0 0
        %1109 = vmatpush1.bf16.msra.mxu0 0
        %1110 = vmatprep.subr.bf16.mxu0 0
        %1111 = vmatpush1.bf16.msra.mxu0 %v1094
        %1112 = vmatprep.subr.bf16.mxu0 0
        %1113 = vmatpush2.bf16.msra.mxu0 0
        %1114 = vmatprep.subr.bf16.mxu0 0
        %1115 = vmatpush2.bf16.msra.mxu0 0
        %1116 = vmatprep.subr.bf16.mxu0 0
        %1117 = vmatpush2.bf16.msra.mxu0 0
        %1118 = vmatprep.subr.bf16.mxu0 0
        %1119 = vmatpush2.bf16.msra.mxu0 0
        %1120 = vmatprep.subr.bf16.mxu0 0
        %1121 = vmatpush2.bf16.msra.mxu0 0
        %1122 = vmatprep.subr.bf16.mxu0 0
        %1123 = vmatpush2.bf16.msra.mxu0 0
        %1124 = vmatprep.subr.bf16.mxu0 0
        %1125 = vmatpush2.bf16.msra.mxu0 0
        %1126 = vmatprep.subr.bf16.mxu0 0
        %1127 = vmatpush2.bf16.msra.mxu0 0
        %1128 = vmatprep.mubr.bf16.mxu0 0
        %1129 = vmatmul.mubr.bf16.gmra.mxu0 %v1091
        %v1130 = vpop.f32.mrf.mxu0
        %v1131 = vadd.f32 0.0, %v1130
        %v1132 = vpop.f32.mrf.mxu0
        %v1133 = vpop.f32.mrf.mxu0
        %v1134 = vpop.f32.mrf.mxu0
        %1135 = vdwg.mxu0
        %1136 = vrot.lane.b32.xlu0 %v900, 64
        %v1137 = vpop.permute.xlu0 %1136
        %1138 = vrot.lane.b32.xlu0 %v910, 64
        %v1139 = vpop.permute.xlu0 %1138
        %v1141 = vsel %vm912, %v1137, 0
        %v1144 = vsel %vm912, %v1139, 0
        %1146 = vmatprep.subr.bf16.mxu0 0
        %1147 = vmatpush1.bf16.xpose.msra.mxu0 0
        %1148 = vmatprep.subr.bf16.mxu0 0
        %1149 = vmatpush1.bf16.xpose.msra.mxu0 0
        %1150 = vmatprep.subr.bf16.mxu0 0
        %1151 = vmatpush1.bf16.xpose.msra.mxu0 0
        %1152 = vmatprep.subr.bf16.mxu0 0
        %1153 = vmatpush1.bf16.xpose.msra.mxu0 0
        %1154 = vmatprep.subr.bf16.mxu0 0
        %1155 = vmatpush1.bf16.xpose.msra.mxu0 0
        %1156 = vmatprep.subr.bf16.mxu0 0
        %1157 = vmatpush1.bf16.xpose.msra.mxu0 0
        %1158 = vmatprep.subr.bf16.mxu0 0
        %1159 = vmatpush1.bf16.xpose.msra.mxu0 0
        %1160 = vmatprep.subr.bf16.mxu0 0
        %1161 = vmatpush1.bf16.xpose.msra.mxu0 %v1144
        %1162 = vmatprep.subr.bf16.mxu0 0
        %1163 = vmatpush2.bf16.xpose.msra.mxu0 0
        %1164 = vmatprep.subr.bf16.mxu0 0
        %1165 = vmatpush2.bf16.xpose.msra.mxu0 0
        %1166 = vmatprep.subr.bf16.mxu0 0
        %1167 = vmatpush2.bf16.xpose.msra.mxu0 0
        %1168 = vmatprep.subr.bf16.mxu0 0
        %1169 = vmatpush2.bf16.xpose.msra.mxu0 0
        %1170 = vmatprep.subr.bf16.mxu0 0
        %1171 = vmatpush2.bf16.xpose.msra.mxu0 0
        %1172 = vmatprep.subr.bf16.mxu0 0
        %1173 = vmatpush2.bf16.xpose.msra.mxu0 0
        %1174 = vmatprep.subr.bf16.mxu0 0
        %1175 = vmatpush2.bf16.xpose.msra.mxu0 0
        %1176 = vmatprep.subr.bf16.mxu0 0
        %1177 = vmatpush2.bf16.xpose.msra.mxu0 0
        %1178 = vmatprep.mubr.bf16.mxu0 0
        %1179 = vmatmul.mubr.bf16.gmra.mxu0 %v1141
        %v1180 = vpop.f32.mrf.mxu0
        %v1181 = vadd.f32 0.0, %v1180
        %v1182 = vpop.f32.mrf.mxu0
        %v1183 = vpop.f32.mrf.mxu0
        %v1184 = vpop.f32.mrf.mxu0
        %1185 = vdwg.mxu0
        %v1186 = vmul.f32 %v1181, 0.17677669
        %v1187 = vadd.f32 %v1186, %v630
        %v1188 = vsel %vm961, %v1187, -inf
        %1189 = vmax.xlane.f32.xlu0 %v1188
        %v1190 = vpop.xlane.xlu0 %1189
        %v1191 = vsub.f32 %v1187, %v1190
        %v1192 = vmul.f32 %v1191, 1.442695
        %v1193 = vpow.pop %v1192
        %v1194 = vsel %vm961, %v1193, 0.0
        %1195 = vadd.xlane.f32.xlu0 %v1194
        %v1196 = vpop.xlane.xlu0 %1195
        %v1197 = vrcp.pop %v1196
        %v1198 = vmul.f32 %v1193, %v1197
        %v1199 = vpack.c.bf16 %v1198, %v1198
        %1200 = vrot.lane.b32.xlu0 %v911, 64
        %v1201 = vpop.permute.xlu0 %1200
        %v1203 = vsel %vm961, %v1199, 0
        %v1206 = vsel %vm977, %v1201, 0
        %1208 = vmatprep.subr.bf16.mxu0 0
        %1209 = vmatpush1.bf16.msra.mxu0 0
        %1210 = vmatprep.subr.bf16.mxu0 0
        %1211 = vmatpush1.bf16.msra.mxu0 0
        %1212 = vmatprep.subr.bf16.mxu0 0
        %1213 = vmatpush1.bf16.msra.mxu0 0
        %1214 = vmatprep.subr.bf16.mxu0 0
        %1215 = vmatpush1.bf16.msra.mxu0 0
        %1216 = vmatprep.subr.bf16.mxu0 0
        %1217 = vmatpush1.bf16.msra.mxu0 0
        %1218 = vmatprep.subr.bf16.mxu0 0
        %1219 = vmatpush1.bf16.msra.mxu0 0
        %1220 = vmatprep.subr.bf16.mxu0 0
        %1221 = vmatpush1.bf16.msra.mxu0 0
        %1222 = vmatprep.subr.bf16.mxu0 0
        %1223 = vmatpush1.bf16.msra.mxu0 %v1206
        %1224 = vmatprep.subr.bf16.mxu0 0
        %1225 = vmatpush2.bf16.msra.mxu0 0
        %1226 = vmatprep.subr.bf16.mxu0 0
        %1227 = vmatpush2.bf16.msra.mxu0 0
        %1228 = vmatprep.subr.bf16.mxu0 0
        %1229 = vmatpush2.bf16.msra.mxu0 0
        %1230 = vmatprep.subr.bf16.mxu0 0
        %1231 = vmatpush2.bf16.msra.mxu0 0
        %1232 = vmatprep.subr.bf16.mxu0 0
        %1233 = vmatpush2.bf16.msra.mxu0 0
        %1234 = vmatprep.subr.bf16.mxu0 0
        %1235 = vmatpush2.bf16.msra.mxu0 0
        %1236 = vmatprep.subr.bf16.mxu0 0
        %1237 = vmatpush2.bf16.msra.mxu0 0
        %1238 = vmatprep.subr.bf16.mxu0 0
        %1239 = vmatpush2.bf16.msra.mxu0 0
        %1240 = vmatprep.mubr.bf16.mxu0 0
        %1241 = vmatmul.mubr.bf16.gmra.mxu0 %v1203
        %v1242 = vpop.f32.mrf.mxu0
        %v1243 = vadd.f32 0.0, %v1242
        %v1244 = vpop.f32.mrf.mxu0
        %v1245 = vpop.f32.mrf.mxu0
        %v1246 = vpop.f32.mrf.mxu0
        %1247 = vdwg.mxu0
        %1248 = vrot.lane.b32.xlu0 %v900, 32
        %v1249 = vpop.permute.xlu0 %1248
        %1250 = vrot.lane.b32.xlu0 %v910, 32
        %v1251 = vpop.permute.xlu0 %1250
        %v1253 = vsel %vm912, %v1249, 0
        %v1256 = vsel %vm912, %v1251, 0
        %1258 = vmatprep.subr.bf16.mxu0 0
        %1259 = vmatpush1.bf16.xpose.msra.mxu0 0
        %1260 = vmatprep.subr.bf16.mxu0 0
        %1261 = vmatpush1.bf16.xpose.msra.mxu0 0
        %1262 = vmatprep.subr.bf16.mxu0 0
        %1263 = vmatpush1.bf16.xpose.msra.mxu0 0
        %1264 = vmatprep.subr.bf16.mxu0 0
        %1265 = vmatpush1.bf16.xpose.msra.mxu0 0
        %1266 = vmatprep.subr.bf16.mxu0 0
        %1267 = vmatpush1.bf16.xpose.msra.mxu0 0
        %1268 = vmatprep.subr.bf16.mxu0 0
        %1269 = vmatpush1.bf16.xpose.msra.mxu0 0
        %1270 = vmatprep.subr.bf16.mxu0 0
        %1271 = vmatpush1.bf16.xpose.msra.mxu0 0
        %1272 = vmatprep.subr.bf16.mxu0 0
        %1273 = vmatpush1.bf16.xpose.msra.mxu0 %v1256
        %1274 = vmatprep.subr.bf16.mxu0 0
        %1275 = vmatpush2.bf16.xpose.msra.mxu0 0
        %1276 = vmatprep.subr.bf16.mxu0 0
        %1277 = vmatpush2.bf16.xpose.msra.mxu0 0
        %1278 = vmatprep.subr.bf16.mxu0 0
        %1279 = vmatpush2.bf16.xpose.msra.mxu0 0
        %1280 = vmatprep.subr.bf16.mxu0 0
        %1281 = vmatpush2.bf16.xpose.msra.mxu0 0
        %1282 = vmatprep.subr.bf16.mxu0 0
        %1283 = vmatpush2.bf16.xpose.msra.mxu0 0
        %1284 = vmatprep.subr.bf16.mxu0 0
        %1285 = vmatpush2.bf16.xpose.msra.mxu0 0
        %1286 = vmatprep.subr.bf16.mxu0 0
        %1287 = vmatpush2.bf16.xpose.msra.mxu0 0
        %1288 = vmatprep.subr.bf16.mxu0 0
        %1289 = vmatpush2.bf16.xpose.msra.mxu0 0
        %1290 = vmatprep.mubr.bf16.mxu0 0
        %1291 = vmatmul.mubr.bf16.gmra.mxu0 %v1253
        %v1292 = vpop.f32.mrf.mxu0
        %v1293 = vadd.f32 0.0, %v1292
        %v1294 = vpop.f32.mrf.mxu0
        %v1295 = vpop.f32.mrf.mxu0
        %v1296 = vpop.f32.mrf.mxu0
        %1297 = vdwg.mxu0
        %v1298 = vmul.f32 %v1293, 0.17677669
        %v1299 = vadd.f32 %v1298, %v630
        %v1300 = vsel %vm961, %v1299, -inf
        %1301 = vmax.xlane.f32.xlu0 %v1300
        %v1302 = vpop.xlane.xlu0 %1301
        %v1303 = vsub.f32 %v1299, %v1302
        %v1304 = vmul.f32 %v1303, 1.442695
        %v1305 = vpow.pop %v1304
        %v1306 = vsel %vm961, %v1305, 0.0
        %1307 = vadd.xlane.f32.xlu0 %v1306
        %v1308 = vpop.xlane.xlu0 %1307
        %v1309 = vrcp.pop %v1308
        %v1310 = vmul.f32 %v1305, %v1309
        %v1311 = vpack.c.bf16 %v1310, %v1310
        %1312 = vrot.lane.b32.xlu0 %v911, 32
        %v1313 = vpop.permute.xlu0 %1312
        %v1315 = vsel %vm961, %v1311, 0
        %v1318 = vsel %vm977, %v1313, 0
        %1320 = vmatprep.subr.bf16.mxu0 0
        %1321 = vmatpush1.bf16.msra.mxu0 0
        %1322 = vmatprep.subr.bf16.mxu0 0
        %1323 = vmatpush1.bf16.msra.mxu0 0
        %1324 = vmatprep.subr.bf16.mxu0 0
        %1325 = vmatpush1.bf16.msra.mxu0 0
        %1326 = vmatprep.subr.bf16.mxu0 0
        %1327 = vmatpush1.bf16.msra.mxu0 0
        %1328 = vmatprep.subr.bf16.mxu0 0
        %1329 = vmatpush1.bf16.msra.mxu0 0
        %1330 = vmatprep.subr.bf16.mxu0 0
        %1331 = vmatpush1.bf16.msra.mxu0 0
        %1332 = vmatprep.subr.bf16.mxu0 0
        %1333 = vmatpush1.bf16.msra.mxu0 0
        %1334 = vmatprep.subr.bf16.mxu0 0
        %1335 = vmatpush1.bf16.msra.mxu0 %v1318
        %1336 = vmatprep.subr.bf16.mxu0 0
        %1337 = vmatpush2.bf16.msra.mxu0 0
        %1338 = vmatprep.subr.bf16.mxu0 0
        %1339 = vmatpush2.bf16.msra.mxu0 0
        %1340 = vmatprep.subr.bf16.mxu0 0
        %1341 = vmatpush2.bf16.msra.mxu0 0
        %1342 = vmatprep.subr.bf16.mxu0 0
        %1343 = vmatpush2.bf16.msra.mxu0 0
        %1344 = vmatprep.subr.bf16.mxu0 0
        %1345 = vmatpush2.bf16.msra.mxu0 0
        %1346 = vmatprep.subr.bf16.mxu0 0
        %1347 = vmatpush2.bf16.msra.mxu0 0
        %1348 = vmatprep.subr.bf16.mxu0 0
        %1349 = vmatpush2.bf16.msra.mxu0 0
        %1350 = vmatprep.subr.bf16.mxu0 0
        %1351 = vmatpush2.bf16.msra.mxu0 0
        %1352 = vmatprep.mubr.bf16.mxu0 0
        %1353 = vmatmul.mubr.bf16.gmra.mxu0 %v1315
        %v1354 = vpop.f32.mrf.mxu0
        %v1355 = vadd.f32 0.0, %v1354
        %v1356 = vpop.f32.mrf.mxu0
        %v1357 = vpop.f32.mrf.mxu0
        %v1358 = vpop.f32.mrf.mxu0
        %1359 = vdwg.mxu0
        %1361 = vrot.lane.b32.xlu0 %v1131, 32
        %v1362 = vpop.permute.xlu0 %1361
        %1365 = vrot.lane.b32.xlu0 %v1243, 64
        %v1366 = vpop.permute.xlu0 %1365
        %1369 = vrot.lane.b32.xlu0 %v1355, 96
        %v1370 = vpop.permute.xlu0 %1369
        %v1372 = vsel %vm912, %v1016, %v1362
        %vm1373 = vcmask 523264
        %v1374 = vsel %vm1373, %v1372, %v1366
        %vm1375 = vcmask 785408
        %v1376 = vsel %vm1375, %v1374, %v1370
        %v1377 = vpack.c.bf16 %v1376, %v1376
        %v1378 = vld [vmem:[#allocation11] sm:$0xf]
        %v1379 = vld [vmem:[#allocation11 + $0x4] sm:$0xf]
        %v1380 = vld [vmem:[#allocation11 + $0x8] sm:$0xf]
        %v1381 = vld [vmem:[#allocation11 + $0xc] sm:$0xf]
        %v1382 = vld [vmem:[#allocation11 + $0x10] sm:$0xf]
        %v1383 = vld [vmem:[#allocation11 + $0x14] sm:$0xf]
        %v1384 = vld [vmem:[#allocation11 + $0x18] sm:$0xf]
        %v1385 = vld [vmem:[#allocation11 + $0x1c] sm:$0xf]
        %v1386 = vld [vmem:[#allocation11 + $0x20] sm:$0xf]
        %v1387 = vld [vmem:[#allocation11 + $0x24] sm:$0xf]
        %v1388 = vld [vmem:[#allocation11 + $0x28] sm:$0xf]
        %v1389 = vld [vmem:[#allocation11 + $0x2c] sm:$0xf]
        %v1390 = vld [vmem:[#allocation11 + $0x30] sm:$0xf]
        %v1391 = vld [vmem:[#allocation11 + $0x34] sm:$0xf]
        %v1392 = vld [vmem:[#allocation11 + $0x38] sm:$0xf]
        %v1393 = vld [vmem:[#allocation11 + $0x3c] sm:$0xf]
        %v1410 = vunpack.c.l.b16 %v1378
        %v1411 = vunpack.c.l.b16 %v1379
        %v1412 = vunpack.c.l.b16 %v1380
        %v1413 = vunpack.c.l.b16 %v1381
        %v1414 = vunpack.c.l.b16 %v1382
        %v1415 = vunpack.c.l.b16 %v1383
        %v1416 = vunpack.c.l.b16 %v1384
        %v1417 = vunpack.c.l.b16 %v1385
        %v1418 = vunpack.c.l.b16 %v1386
        %v1419 = vunpack.c.l.b16 %v1387
        %v1420 = vunpack.c.l.b16 %v1388
        %v1421 = vunpack.c.l.b16 %v1389
        %v1422 = vunpack.c.l.b16 %v1390
        %v1423 = vunpack.c.l.b16 %v1391
        %v1424 = vunpack.c.l.b16 %v1392
        %v1425 = vunpack.c.l.b16 %v1393
        %v1426 = vpack.c.b16 %v1411, %v1410
        %v1427 = vpack.c.b16 %v1413, %v1412
        %v1428 = vpack.c.b16 %v1415, %v1414
        %v1429 = vpack.c.b16 %v1417, %v1416
        %v1430 = vpack.c.b16 %v1419, %v1418
        %v1431 = vpack.c.b16 %v1421, %v1420
        %v1432 = vpack.c.b16 %v1423, %v1422
        %v1433 = vpack.c.b16 %v1425, %v1424
        %1442 = vmatprep.subr.bf16.mxu0 0
        %1443 = vmatpush1.bf16.msra.mxu0 %v1433
        %1444 = vmatprep.subr.bf16.mxu0 0
        %1445 = vmatpush1.bf16.msra.mxu0 %v1432
        %1446 = vmatprep.subr.bf16.mxu0 0
        %1447 = vmatpush1.bf16.msra.mxu0 %v1431
        %1448 = vmatprep.subr.bf16.mxu0 0
        %1449 = vmatpush1.bf16.msra.mxu0 %v1430
        %1450 = vmatprep.subr.bf16.mxu0 0
        %1451 = vmatpush1.bf16.msra.mxu0 %v1429
        %1452 = vmatprep.subr.bf16.mxu0 0
        %1453 = vmatpush1.bf16.msra.mxu0 %v1428
        %1454 = vmatprep.subr.bf16.mxu0 0
        %1455 = vmatpush1.bf16.msra.mxu0 %v1427
        %1456 = vmatprep.subr.bf16.mxu0 0
        %1457 = vmatpush1.bf16.msra.mxu0 %v1426
        %1458 = vmatprep.subr.bf16.mxu0 0
        %1459 = vmatpush2.bf16.msra.mxu0 0
        %1460 = vmatprep.subr.bf16.mxu0 0
        %1461 = vmatpush2.bf16.msra.mxu0 0
        %1462 = vmatprep.subr.bf16.mxu0 0
        %1463 = vmatpush2.bf16.msra.mxu0 0
        %1464 = vmatprep.subr.bf16.mxu0 0
        %1465 = vmatpush2.bf16.msra.mxu0 0
        %1466 = vmatprep.subr.bf16.mxu0 0
        %1467 = vmatpush2.bf16.msra.mxu0 0
        %1468 = vmatprep.subr.bf16.mxu0 0
        %1469 = vmatpush2.bf16.msra.mxu0 0
        %1470 = vmatprep.subr.bf16.mxu0 0
        %1471 = vmatpush2.bf16.msra.mxu0 0
        %1472 = vmatprep.subr.bf16.mxu0 0
        %1473 = vmatpush2.bf16.msra.mxu0 0
        %1474 = vmatprep.mubr.bf16.mxu0 0
        %1475 = vmatmul.mubr.bf16.gmra.mxu0 %v1377
        %v1476 = vpop.f32.mrf.mxu0
        %v1477 = vadd.f32 0.0, %v1476
        %v1478 = vpop.f32.mrf.mxu0
        %v1479 = vpop.f32.mrf.mxu0
        %v1480 = vpop.f32.mrf.mxu0
        %1481 = vdwg.mxu0
        %v1482 = vadd.f32 %v615, %v1477
        %v1483 = vld [vmem:[%s6] sm:$0x1]
        %v1484 = vunpack.c.l.bf16 %v1483
        %v1485 = vmul.f32 %v1482, %v1482
        %1486 = vadd.xlane.f32.xlu0 %v1485
        %v1487 = vpop.xlane.xlu0 %1486
        %v1488 = vmul.f32 %v1487, %v639
        %v1489 = vadd.f32 %v1488, 1e-06
        %v1490 = vrsqrt.pop %v1489
        %v1491 = vmul.f32 %v1482, %v1490
        %v1492 = vlaneseq
        %v1493 = vshrl.u32 %v1492, 7
        %v1494 = vsub.s32 0, %v1493
        %v1495 = vrot.slane %v1484, %v1494
        %v1496 = vmul.f32 %v1491, %v1495
        %v1497 = vpack.c.bf16 %v1496, %v1496
        %v1498 = vld [vmem:[#allocation13] sm:$0xff]
        %v1499 = vld [vmem:[#allocation13 + $0x8] sm:$0xff]
        %v1500 = vld [vmem:[#allocation13 + $0x10] sm:$0xff]
        %v1501 = vld [vmem:[#allocation13 + $0x18] sm:$0xff]
        %v1502 = vld [vmem:[#allocation13 + $0x20] sm:$0xff]
        %v1503 = vld [vmem:[#allocation13 + $0x28] sm:$0xff]
        %v1504 = vld [vmem:[#allocation13 + $0x30] sm:$0xff]
        %v1505 = vld [vmem:[#allocation13 + $0x38] sm:$0xff]
        %v1506 = vld [vmem:[#allocation13 + $0x40] sm:$0xff]
        %v1507 = vld [vmem:[#allocation13 + $0x48] sm:$0xff]
        %v1508 = vld [vmem:[#allocation13 + $0x50] sm:$0xff]
        %v1509 = vld [vmem:[#allocation13 + $0x58] sm:$0xff]
        %v1510 = vld [vmem:[#allocation13 + $0x60] sm:$0xff]
        %v1511 = vld [vmem:[#allocation13 + $0x68] sm:$0xff]
        %v1512 = vld [vmem:[#allocation13 + $0x70] sm:$0xff]
        %v1513 = vld [vmem:[#allocation13 + $0x78] sm:$0xff]
        %v1514 = vld [vmem:[#allocation13 + $0x80] sm:$0xff]
        %v1515 = vld [vmem:[#allocation13 + $0x88] sm:$0xff]
        %v1516 = vld [vmem:[#allocation13 + $0x90] sm:$0xff]
        %v1517 = vld [vmem:[#allocation13 + $0x98] sm:$0xff]
        %v1518 = vld [vmem:[#allocation13 + $0xa0] sm:$0xff]
        %v1519 = vld [vmem:[#allocation13 + $0xa8] sm:$0xff]
        %v1520 = vld [vmem:[#allocation13 + $0xb0] sm:$0xff]
        %v1521 = vld [vmem:[#allocation13 + $0xb8] sm:$0xff]
        %v1522 = vld [vmem:[#allocation13 + $0xc0] sm:$0xff]
        %v1523 = vld [vmem:[#allocation13 + $0xc8] sm:$0xff]
        %v1524 = vld [vmem:[#allocation13 + $0xd0] sm:$0xff]
        %v1525 = vld [vmem:[#allocation13 + $0xd8] sm:$0xff]
        %v1526 = vld [vmem:[#allocation13 + $0xe0] sm:$0xff]
        %v1527 = vld [vmem:[#allocation13 + $0xe8] sm:$0xff]
        %v1528 = vld [vmem:[#allocation13 + $0xf0] sm:$0xff]
        %v1529 = vld [vmem:[#allocation13 + $0xf8] sm:$0xff]
        %v1562 = vunpack.c.l.b16 %v1498
        %v1563 = vunpack.c.h.b16 %v1498
        %v1564 = vunpack.c.l.b16 %v1499
        %v1565 = vunpack.c.h.b16 %v1499
        %v1566 = vunpack.c.l.b16 %v1500
        %v1567 = vunpack.c.h.b16 %v1500
        %v1568 = vunpack.c.l.b16 %v1501
        %v1569 = vunpack.c.h.b16 %v1501
        %v1570 = vunpack.c.l.b16 %v1502
        %v1571 = vunpack.c.h.b16 %v1502
        %v1572 = vunpack.c.l.b16 %v1503
        %v1573 = vunpack.c.h.b16 %v1503
        %v1574 = vunpack.c.l.b16 %v1504
        %v1575 = vunpack.c.h.b16 %v1504
        %v1576 = vunpack.c.l.b16 %v1505
        %v1577 = vunpack.c.h.b16 %v1505
        %v1578 = vunpack.c.l.b16 %v1506
        %v1579 = vunpack.c.h.b16 %v1506
        %v1580 = vunpack.c.l.b16 %v1507
        %v1581 = vunpack.c.h.b16 %v1507
        %v1582 = vunpack.c.l.b16 %v1508
        %v1583 = vunpack.c.h.b16 %v1508
        %v1584 = vunpack.c.l.b16 %v1509
        %v1585 = vunpack.c.h.b16 %v1509
        %v1586 = vunpack.c.l.b16 %v1510
        %v1587 = vunpack.c.h.b16 %v1510
        %v1588 = vunpack.c.l.b16 %v1511
        %v1589 = vunpack.c.h.b16 %v1511
        %v1590 = vunpack.c.l.b16 %v1512
        %v1591 = vunpack.c.h.b16 %v1512
        %v1592 = vunpack.c.l.b16 %v1513
        %v1593 = vunpack.c.h.b16 %v1513
        %v1594 = vunpack.c.l.b16 %v1514
        %v1595 = vunpack.c.h.b16 %v1514
        %v1596 = vunpack.c.l.b16 %v1515
        %v1597 = vunpack.c.h.b16 %v1515
        %v1598 = vunpack.c.l.b16 %v1516
        %v1599 = vunpack.c.h.b16 %v1516
        %v1600 = vunpack.c.l.b16 %v1517
        %v1601 = vunpack.c.h.b16 %v1517
        %v1602 = vunpack.c.l.b16 %v1518
        %v1603 = vunpack.c.h.b16 %v1518
        %v1604 = vunpack.c.l.b16 %v1519
        %v1605 = vunpack.c.h.b16 %v1519
        %v1606 = vunpack.c.l.b16 %v1520
        %v1607 = vunpack.c.h.b16 %v1520
        %v1608 = vunpack.c.l.b16 %v1521
        %v1609 = vunpack.c.h.b16 %v1521
        %v1610 = vunpack.c.l.b16 %v1522
        %v1611 = vunpack.c.h.b16 %v1522
        %v1612 = vunpack.c.l.b16 %v1523
        %v1613 = vunpack.c.h.b16 %v1523
        %v1614 = vunpack.c.l.b16 %v1524
        %v1615 = vunpack.c.h.b16 %v1524
        %v1616 = vunpack.c.l.b16 %v1525
        %v1617 = vunpack.c.h.b16 %v1525
        %v1618 = vunpack.c.l.b16 %v1526
        %v1619 = vunpack.c.h.b16 %v1526
        %v1620 = vunpack.c.l.b16 %v1527
        %v1621 = vunpack.c.h.b16 %v1527
        %v1622 = vunpack.c.l.b16 %v1528
        %v1623 = vunpack.c.h.b16 %v1528
        %v1624 = vunpack.c.l.b16 %v1529
        %v1625 = vunpack.c.h.b16 %v1529
        %v1626 = vpack.c.b16 %v1566, %v1562
        %v1627 = vpack.c.b16 %v1567, %v1563
        %v1628 = vpack.c.b16 %v1568, %v1564
        %v1629 = vpack.c.b16 %v1569, %v1565
        %v1630 = vpack.c.b16 %v1574, %v1570
        %v1631 = vpack.c.b16 %v1575, %v1571
        %v1632 = vpack.c.b16 %v1576, %v1572
        %v1633 = vpack.c.b16 %v1577, %v1573
        %v1634 = vpack.c.b16 %v1582, %v1578
        %v1635 = vpack.c.b16 %v1583, %v1579
        %v1636 = vpack.c.b16 %v1584, %v1580
        %v1637 = vpack.c.b16 %v1585, %v1581
        %v1638 = vpack.c.b16 %v1590, %v1586
        %v1639 = vpack.c.b16 %v1591, %v1587
        %v1640 = vpack.c.b16 %v1592, %v1588
        %v1641 = vpack.c.b16 %v1593, %v1589
        %v1642 = vpack.c.b16 %v1598, %v1594
        %v1643 = vpack.c.b16 %v1599, %v1595
        %v1644 = vpack.c.b16 %v1600, %v1596
        %v1645 = vpack.c.b16 %v1601, %v1597
        %v1646 = vpack.c.b16 %v1606, %v1602
        %v1647 = vpack.c.b16 %v1607, %v1603
        %v1648 = vpack.c.b16 %v1608, %v1604
        %v1649 = vpack.c.b16 %v1609, %v1605
        %v1650 = vpack.c.b16 %v1614, %v1610
        %v1651 = vpack.c.b16 %v1615, %v1611
        %v1652 = vpack.c.b16 %v1616, %v1612
        %v1653 = vpack.c.b16 %v1617, %v1613
        %v1654 = vpack.c.b16 %v1622, %v1618
        %v1655 = vpack.c.b16 %v1623, %v1619
        %v1656 = vpack.c.b16 %v1624, %v1620
        %v1657 = vpack.c.b16 %v1625, %v1621
        %1690 = vmatprep.subr.bf16.mxu0 %v1655
        %1691 = vmatpush1.bf16.msra.mxu0 %v1654
        %1692 = vmatprep.subr.bf16.mxu0 %v1651
        %1693 = vmatpush1.bf16.msra.mxu0 %v1650
        %1694 = vmatprep.subr.bf16.mxu0 %v1647
        %1695 = vmatpush1.bf16.msra.mxu0 %v1646
        %1696 = vmatprep.subr.bf16.mxu0 %v1643
        %1697 = vmatpush1.bf16.msra.mxu0 %v1642
        %1698 = vmatprep.subr.bf16.mxu0 %v1639
        %1699 = vmatpush1.bf16.msra.mxu0 %v1638
        %1700 = vmatprep.subr.bf16.mxu0 %v1635
        %1701 = vmatpush1.bf16.msra.mxu0 %v1634
        %1702 = vmatprep.subr.bf16.mxu0 %v1631
        %1703 = vmatpush1.bf16.msra.mxu0 %v1630
        %1704 = vmatprep.subr.bf16.mxu0 %v1627
        %1705 = vmatpush1.bf16.msra.mxu0 %v1626
        %1706 = vmatprep.subr.bf16.mxu0 0
        %1707 = vmatpush2.bf16.msra.mxu0 0
        %1708 = vmatprep.subr.bf16.mxu0 0
        %1709 = vmatpush2.bf16.msra.mxu0 0
        %1710 = vmatprep.subr.bf16.mxu0 0
        %1711 = vmatpush2.bf16.msra.mxu0 0
        %1712 = vmatprep.subr.bf16.mxu0 0
        %1713 = vmatpush2.bf16.msra.mxu0 0
        %1714 = vmatprep.subr.bf16.mxu0 0
        %1715 = vmatpush2.bf16.msra.mxu0 0
        %1716 = vmatprep.subr.bf16.mxu0 0
        %1717 = vmatpush2.bf16.msra.mxu0 0
        %1718 = vmatprep.subr.bf16.mxu0 0
        %1719 = vmatpush2.bf16.msra.mxu0 0
        %1720 = vmatprep.subr.bf16.mxu0 0
        %1721 = vmatpush2.bf16.msra.mxu0 0
        %1722 = vmatprep.mubr.bf16.mxu0 0
        %1723 = vmatmul.mubr.bf16.gmra.mxu0 %v1497
        %v1724 = vpop.f32.mrf.mxu0
        %v1725 = vadd.f32 0.0, %v1724
        %v1726 = vpop.f32.mrf.mxu0
        %v1727 = vadd.f32 0.0, %v1726
        %v1728 = vpop.f32.mrf.mxu0
        %v1729 = vpop.f32.mrf.mxu0
        %1730 = vdwg.mxu0
        %1731 = vmatprep.subr.bf16.mxu0 %v1657
        %1732 = vmatpush1.bf16.msra.mxu0 %v1656
        %1733 = vmatprep.subr.bf16.mxu0 %v1653
        %1734 = vmatpush1.bf16.msra.mxu0 %v1652
        %1735 = vmatprep.subr.bf16.mxu0 %v1649
        %1736 = vmatpush1.bf16.msra.mxu0 %v1648
        %1737 = vmatprep.subr.bf16.mxu0 %v1645
        %1738 = vmatpush1.bf16.msra.mxu0 %v1644
        %1739 = vmatprep.subr.bf16.mxu0 %v1641
        %1740 = vmatpush1.bf16.msra.mxu0 %v1640
        %1741 = vmatprep.subr.bf16.mxu0 %v1637
        %1742 = vmatpush1.bf16.msra.mxu0 %v1636
        %1743 = vmatprep.subr.bf16.mxu0 %v1633
        %1744 = vmatpush1.bf16.msra.mxu0 %v1632
        %1745 = vmatprep.subr.bf16.mxu0 %v1629
        %1746 = vmatpush1.bf16.msra.mxu0 %v1628
        %1747 = vmatprep.subr.bf16.mxu0 0
        %1748 = vmatpush2.bf16.msra.mxu0 0
        %1749 = vmatprep.subr.bf16.mxu0 0
        %1750 = vmatpush2.bf16.msra.mxu0 0
        %1751 = vmatprep.subr.bf16.mxu0 0
        %1752 = vmatpush2.bf16.msra.mxu0 0
        %1753 = vmatprep.subr.bf16.mxu0 0
        %1754 = vmatpush2.bf16.msra.mxu0 0
        %1755 = vmatprep.subr.bf16.mxu0 0
        %1756 = vmatpush2.bf16.msra.mxu0 0
        %1757 = vmatprep.subr.bf16.mxu0 0
        %1758 = vmatpush2.bf16.msra.mxu0 0
        %1759 = vmatprep.subr.bf16.mxu0 0
        %1760 = vmatpush2.bf16.msra.mxu0 0
        %1761 = vmatprep.subr.bf16.mxu0 0
        %1762 = vmatpush2.bf16.msra.mxu0 0
        %1763 = vmatprep.mubr.bf16.mxu0 0
        %1764 = vmatmul.mubr.bf16.gmra.mxu0 %v1497
        %v1765 = vpop.f32.mrf.mxu0
        %v1766 = vadd.f32 0.0, %v1765
        %v1767 = vpop.f32.mrf.mxu0
        %v1768 = vadd.f32 0.0, %v1767
        %v1769 = vpop.f32.mrf.mxu0
        %v1770 = vpop.f32.mrf.mxu0
        %1771 = vdwg.mxu0
        %v1772 = vsub.f32 0.0, %v1725
        %v1773 = vsub.f32 0.0, %v1727
        %v1774 = vmul.f32 %v1772, 1.442695
        %v1775 = vpow.pop %v1774
        %v1776 = vmul.f32 %v1773, 1.442695
        %v1777 = vpow.pop %v1776
        %v1778 = vadd.f32 %v1775, 1.0
        %v1779 = vadd.f32 %v1777, 1.0
        %v1780 = vrcp.pop %v1778
        %v1781 = vrcp.pop %v1779
        %v1782 = vmul.f32 %v1725, %v1780
        %v1783 = vmul.f32 %v1727, %v1781
        %v1784 = vmul.f32 %v1782, %v1766
        %v1785 = vmul.f32 %v1783, %v1768
        %v1786 = vpack.c.bf16 %v1784, %v1784
        %v1787 = vpack.c.bf16 %v1785, %v1785
        %v1788 = vld [vmem:[#allocation14] sm:$0xf]
        %v1789 = vld [vmem:[#allocation14 + $0x4] sm:$0xf]
        %v1790 = vld [vmem:[#allocation14 + $0x8] sm:$0xf]
        %v1791 = vld [vmem:[#allocation14 + $0xc] sm:$0xf]
        %v1792 = vld [vmem:[#allocation14 + $0x10] sm:$0xf]
        %v1793 = vld [vmem:[#allocation14 + $0x14] sm:$0xf]
        %v1794 = vld [vmem:[#allocation14 + $0x18] sm:$0xf]
        %v1795 = vld [vmem:[#allocation14 + $0x1c] sm:$0xf]
        %v1796 = vld [vmem:[#allocation14 + $0x20] sm:$0xf]
        %v1797 = vld [vmem:[#allocation14 + $0x24] sm:$0xf]
        %v1798 = vld [vmem:[#allocation14 + $0x28] sm:$0xf]
        %v1799 = vld [vmem:[#allocation14 + $0x2c] sm:$0xf]
        %v1800 = vld [vmem:[#allocation14 + $0x30] sm:$0xf]
        %v1801 = vld [vmem:[#allocation14 + $0x34] sm:$0xf]
        %v1802 = vld [vmem:[#allocation14 + $0x38] sm:$0xf]
        %v1803 = vld [vmem:[#allocation14 + $0x3c] sm:$0xf]
        %v1804 = vld [vmem:[#allocation14 + $0x40] sm:$0xf]
        %v1805 = vld [vmem:[#allocation14 + $0x44] sm:$0xf]
        %v1806 = vld [vmem:[#allocation14 + $0x48] sm:$0xf]
        %v1807 = vld [vmem:[#allocation14 + $0x4c] sm:$0xf]
        %v1808 = vld [vmem:[#allocation14 + $0x50] sm:$0xf]
        %v1809 = vld [vmem:[#allocation14 + $0x54] sm:$0xf]
        %v1810 = vld [vmem:[#allocation14 + $0x58] sm:$0xf]
        %v1811 = vld [vmem:[#allocation14 + $0x5c] sm:$0xf]
        %v1812 = vld [vmem:[#allocation14 + $0x60] sm:$0xf]
        %v1813 = vld [vmem:[#allocation14 + $0x64] sm:$0xf]
        %v1814 = vld [vmem:[#allocation14 + $0x68] sm:$0xf]
        %v1815 = vld [vmem:[#allocation14 + $0x6c] sm:$0xf]
        %v1816 = vld [vmem:[#allocation14 + $0x70] sm:$0xf]
        %v1817 = vld [vmem:[#allocation14 + $0x74] sm:$0xf]
        %v1818 = vld [vmem:[#allocation14 + $0x78] sm:$0xf]
        %v1819 = vld [vmem:[#allocation14 + $0x7c] sm:$0xf]
        %v1852 = vunpack.c.l.b16 %v1788
        %v1853 = vunpack.c.l.b16 %v1789
        %v1854 = vunpack.c.l.b16 %v1790
        %v1855 = vunpack.c.l.b16 %v1791
        %v1856 = vunpack.c.l.b16 %v1792
        %v1857 = vunpack.c.l.b16 %v1793
        %v1858 = vunpack.c.l.b16 %v1794
        %v1859 = vunpack.c.l.b16 %v1795
        %v1860 = vunpack.c.l.b16 %v1796
        %v1861 = vunpack.c.l.b16 %v1797
        %v1862 = vunpack.c.l.b16 %v1798
        %v1863 = vunpack.c.l.b16 %v1799
        %v1864 = vunpack.c.l.b16 %v1800
        %v1865 = vunpack.c.l.b16 %v1801
        %v1866 = vunpack.c.l.b16 %v1802
        %v1867 = vunpack.c.l.b16 %v1803
        %v1868 = vunpack.c.l.b16 %v1804
        %v1869 = vunpack.c.l.b16 %v1805
        %v1870 = vunpack.c.l.b16 %v1806
        %v1871 = vunpack.c.l.b16 %v1807
        %v1872 = vunpack.c.l.b16 %v1808
        %v1873 = vunpack.c.l.b16 %v1809
        %v1874 = vunpack.c.l.b16 %v1810
        %v1875 = vunpack.c.l.b16 %v1811
        %v1876 = vunpack.c.l.b16 %v1812
        %v1877 = vunpack.c.l.b16 %v1813
        %v1878 = vunpack.c.l.b16 %v1814
        %v1879 = vunpack.c.l.b16 %v1815
        %v1880 = vunpack.c.l.b16 %v1816
        %v1881 = vunpack.c.l.b16 %v1817
        %v1882 = vunpack.c.l.b16 %v1818
        %v1883 = vunpack.c.l.b16 %v1819
        %v1884 = vpack.c.b16 %v1853, %v1852
        %v1885 = vpack.c.b16 %v1855, %v1854
        %v1886 = vpack.c.b16 %v1857, %v1856
        %v1887 = vpack.c.b16 %v1859, %v1858
        %v1888 = vpack.c.b16 %v1861, %v1860
        %v1889 = vpack.c.b16 %v1863, %v1862
        %v1890 = vpack.c.b16 %v1865, %v1864
        %v1891 = vpack.c.b16 %v1867, %v1866
        %v1892 = vpack.c.b16 %v1869, %v1868
        %v1893 = vpack.c.b16 %v1871, %v1870
        %v1894 = vpack.c.b16 %v1873, %v1872
        %v1895 = vpack.c.b16 %v1875, %v1874
        %v1896 = vpack.c.b16 %v1877, %v1876
        %v1897 = vpack.c.b16 %v1879, %v1878
        %v1898 = vpack.c.b16 %v1881, %v1880
        %v1899 = vpack.c.b16 %v1883, %v1882
        %1916 = vmatprep.subr.bf16.mxu0 0
        %1917 = vmatpush1.bf16.msra.mxu0 %v1891
        %1918 = vmatprep.subr.bf16.mxu0 0
        %1919 = vmatpush1.bf16.msra.mxu0 %v1890
        %1920 = vmatprep.subr.bf16.mxu0 0
        %1921 = vmatpush1.bf16.msra.mxu0 %v1889
        %1922 = vmatprep.subr.bf16.mxu0 0
        %1923 = vmatpush1.bf16.msra.mxu0 %v1888
        %1924 = vmatprep.subr.bf16.mxu0 0
        %1925 = vmatpush1.bf16.msra.mxu0 %v1887
        %1926 = vmatprep.subr.bf16.mxu0 0
        %1927 = vmatpush1.bf16.msra.mxu0 %v1886
        %1928 = vmatprep.subr.bf16.mxu0 0
        %1929 = vmatpush1.bf16.msra.mxu0 %v1885
        %1930 = vmatprep.subr.bf16.mxu0 0
        %1931 = vmatpush1.bf16.msra.mxu0 %v1884
        %1932 = vmatprep.subr.bf16.mxu0 0
        %1933 = vmatpush2.bf16.msra.mxu0 %v1899
        %1934 = vmatprep.subr.bf16.mxu0 0
        %1935 = vmatpush2.bf16.msra.mxu0 %v1898
        %1936 = vmatprep.subr.bf16.mxu0 0
        %1937 = vmatpush2.bf16.msra.mxu0 %v1897
        %1938 = vmatprep.subr.bf16.mxu0 0
        %1939 = vmatpush2.bf16.msra.mxu0 %v1896
        %1940 = vmatprep.subr.bf16.mxu0 0
        %1941 = vmatpush2.bf16.msra.mxu0 %v1895
        %1942 = vmatprep.subr.bf16.mxu0 0
        %1943 = vmatpush2.bf16.msra.mxu0 %v1894
        %1944 = vmatprep.subr.bf16.mxu0 0
        %1945 = vmatpush2.bf16.msra.mxu0 %v1893
        %1946 = vmatprep.subr.bf16.mxu0 0
        %1947 = vmatpush2.bf16.msra.mxu0 %v1892
        %1948 = vmatprep.mubr.bf16.mxu0 %v1787
        %1949 = vmatmul.mubr.bf16.gmra.mxu0 %v1786
        %v1950 = vpop.f32.mrf.mxu0
        %v1951 = vadd.f32 0.0, %v1950
        %v1952 = vpop.f32.mrf.mxu0
        %v1953 = vpop.f32.mrf.mxu0
        %v1954 = vpop.f32.mrf.mxu0
        %1955 = vdwg.mxu0
        %v1956 = vadd.f32 %v1482, %v1951
        %s1957 = scalar_lea.vmem %s5, 1
        %v1958 = vld [vmem:[%s1957] sm:$0x1]
        %v1959 = vunpack.c.l.bf16 %v1958
        %v1960 = vmul.f32 %v1956, %v1956
        %1961 = vadd.xlane.f32.xlu0 %v1960
        %v1962 = vpop.xlane.xlu0 %1961
        %v1963 = vmul.f32 %v1962, %v639
        %v1964 = vadd.f32 %v1963, 1e-06
        %v1965 = vrsqrt.pop %v1964
        %v1966 = vmul.f32 %v1956, %v1965
        %v1967 = vlaneseq
        %v1968 = vshrl.u32 %v1967, 7
        %v1969 = vsub.s32 0, %v1968
        %v1970 = vrot.slane %v1959, %v1969
        %v1971 = vmul.f32 %v1966, %v1970
        %v1972 = vpack.c.bf16 %v1971, %v1971
        %s1973 = scalar_lea.vmem [#allocation10], 192
        %v1974 = vld [vmem:[%s1973] sm:$0xff]
        %v1975 = vld [vmem:[%s1973 + $0x8] sm:$0xf]
        %v1976 = vld [vmem:[%s1973 + $0xc] sm:$0xff]
        %v1977 = vld [vmem:[%s1973 + $0x14] sm:$0xf]
        %v1978 = vld [vmem:[%s1973 + $0x18] sm:$0xff]
        %v1979 = vld [vmem:[%s1973 + $0x20] sm:$0xf]
        %v1980 = vld [vmem:[%s1973 + $0x24] sm:$0xff]
        %v1981 = vld [vmem:[%s1973 + $0x2c] sm:$0xf]
        %v1982 = vld [vmem:[%s1973 + $0x30] sm:$0xff]
        %v1983 = vld [vmem:[%s1973 + $0x38] sm:$0xf]
        %v1984 = vld [vmem:[%s1973 + $0x3c] sm:$0xff]
        %v1985 = vld [vmem:[%s1973 + $0x44] sm:$0xf]
        %v1986 = vld [vmem:[%s1973 + $0x48] sm:$0xff]
        %v1987 = vld [vmem:[%s1973 + $0x50] sm:$0xf]
        %v1988 = vld [vmem:[%s1973 + $0x54] sm:$0xff]
        %v1989 = vld [vmem:[%s1973 + $0x5c] sm:$0xf]
        %v1990 = vld [vmem:[%s1973 + $0x60] sm:$0xff]
        %v1991 = vld [vmem:[%s1973 + $0x68] sm:$0xf]
        %v1992 = vld [vmem:[%s1973 + $0x6c] sm:$0xff]
        %v1993 = vld [vmem:[%s1973 + $0x74] sm:$0xf]
        %v1994 = vld [vmem:[%s1973 + $0x78] sm:$0xff]
        %v1995 = vld [vmem:[%s1973 + $0x80] sm:$0xf]
        %v1996 = vld [vmem:[%s1973 + $0x84] sm:$0xff]
        %v1997 = vld [vmem:[%s1973 + $0x8c] sm:$0xf]
        %v1998 = vld [vmem:[%s1973 + $0x90] sm:$0xff]
        %v1999 = vld [vmem:[%s1973 + $0x98] sm:$0xf]
        %v2000 = vld [vmem:[%s1973 + $0x9c] sm:$0xff]
        %v2001 = vld [vmem:[%s1973 + $0xa4] sm:$0xf]
        %v2002 = vld [vmem:[%s1973 + $0xa8] sm:$0xff]
        %v2003 = vld [vmem:[%s1973 + $0xb0] sm:$0xf]
        %v2004 = vld [vmem:[%s1973 + $0xb4] sm:$0xff]
        %v2005 = vld [vmem:[%s1973 + $0xbc] sm:$0xf]
        %v2038 = vunpack.c.l.b16 %v1974
        %v2039 = vunpack.c.h.b16 %v1974
        %v2040 = vunpack.c.l.b16 %v1975
        %v2041 = vunpack.c.l.b16 %v1976
        %v2042 = vunpack.c.h.b16 %v1976
        %v2043 = vunpack.c.l.b16 %v1977
        %v2044 = vunpack.c.l.b16 %v1978
        %v2045 = vunpack.c.h.b16 %v1978
        %v2046 = vunpack.c.l.b16 %v1979
        %v2047 = vunpack.c.l.b16 %v1980
        %v2048 = vunpack.c.h.b16 %v1980
        %v2049 = vunpack.c.l.b16 %v1981
        %v2050 = vunpack.c.l.b16 %v1982
        %v2051 = vunpack.c.h.b16 %v1982
        %v2052 = vunpack.c.l.b16 %v1983
        %v2053 = vunpack.c.l.b16 %v1984
        %v2054 = vunpack.c.h.b16 %v1984
        %v2055 = vunpack.c.l.b16 %v1985
        %v2056 = vunpack.c.l.b16 %v1986
        %v2057 = vunpack.c.h.b16 %v1986
        %v2058 = vunpack.c.l.b16 %v1987
        %v2059 = vunpack.c.l.b16 %v1988
        %v2060 = vunpack.c.h.b16 %v1988
        %v2061 = vunpack.c.l.b16 %v1989
        %v2062 = vunpack.c.l.b16 %v1990
        %v2063 = vunpack.c.h.b16 %v1990
        %v2064 = vunpack.c.l.b16 %v1991
        %v2065 = vunpack.c.l.b16 %v1992
        %v2066 = vunpack.c.h.b16 %v1992
        %v2067 = vunpack.c.l.b16 %v1993
        %v2068 = vunpack.c.l.b16 %v1994
        %v2069 = vunpack.c.h.b16 %v1994
        %v2070 = vunpack.c.l.b16 %v1995
        %v2071 = vunpack.c.l.b16 %v1996
        %v2072 = vunpack.c.h.b16 %v1996
        %v2073 = vunpack.c.l.b16 %v1997
        %v2074 = vunpack.c.l.b16 %v1998
        %v2075 = vunpack.c.h.b16 %v1998
        %v2076 = vunpack.c.l.b16 %v1999
        %v2077 = vunpack.c.l.b16 %v2000
        %v2078 = vunpack.c.h.b16 %v2000
        %v2079 = vunpack.c.l.b16 %v2001
        %v2080 = vunpack.c.l.b16 %v2002
        %v2081 = vunpack.c.h.b16 %v2002
        %v2082 = vunpack.c.l.b16 %v2003
        %v2083 = vunpack.c.l.b16 %v2004
        %v2084 = vunpack.c.h.b16 %v2004
        %v2085 = vunpack.c.l.b16 %v2005
        %v2086 = vpack.c.b16 %v2041, %v2038
        %v2087 = vpack.c.b16 %v2042, %v2039
        %v2088 = vpack.c.b16 %v2043, %v2040
        %v2089 = vpack.c.b16 %v2047, %v2044
        %v2090 = vpack.c.b16 %v2048, %v2045
        %v2091 = vpack.c.b16 %v2049, %v2046
        %v2092 = vpack.c.b16 %v2053, %v2050
        %v2093 = vpack.c.b16 %v2054, %v2051
        %v2094 = vpack.c.b16 %v2055, %v2052
        %v2095 = vpack.c.b16 %v2059, %v2056
        %v2096 = vpack.c.b16 %v2060, %v2057
        %v2097 = vpack.c.b16 %v2061, %v2058
        %v2098 = vpack.c.b16 %v2065, %v2062
        %v2099 = vpack.c.b16 %v2066, %v2063
        %v2100 = vpack.c.b16 %v2067, %v2064
        %v2101 = vpack.c.b16 %v2071, %v2068
        %v2102 = vpack.c.b16 %v2072, %v2069
        %v2103 = vpack.c.b16 %v2073, %v2070
        %v2104 = vpack.c.b16 %v2077, %v2074
        %v2105 = vpack.c.b16 %v2078, %v2075
        %v2106 = vpack.c.b16 %v2079, %v2076
        %v2107 = vpack.c.b16 %v2083, %v2080
        %v2108 = vpack.c.b16 %v2084, %v2081
        %v2109 = vpack.c.b16 %v2085, %v2082
        %2134 = vmatprep.subr.bf16.mxu0 %v2108
        %2135 = vmatpush1.bf16.msra.mxu0 %v2107
        %2136 = vmatprep.subr.bf16.mxu0 %v2105
        %2137 = vmatpush1.bf16.msra.mxu0 %v2104
        %2138 = vmatprep.subr.bf16.mxu0 %v2102
        %2139 = vmatpush1.bf16.msra.mxu0 %v2101
        %2140 = vmatprep.subr.bf16.mxu0 %v2099
        %2141 = vmatpush1.bf16.msra.mxu0 %v2098
        %2142 = vmatprep.subr.bf16.mxu0 %v2096
        %2143 = vmatpush1.bf16.msra.mxu0 %v2095
        %2144 = vmatprep.subr.bf16.mxu0 %v2093
        %2145 = vmatpush1.bf16.msra.mxu0 %v2092
        %2146 = vmatprep.subr.bf16.mxu0 %v2090
        %2147 = vmatpush1.bf16.msra.mxu0 %v2089
        %2148 = vmatprep.subr.bf16.mxu0 %v2087
        %2149 = vmatpush1.bf16.msra.mxu0 %v2086
        %2150 = vmatprep.subr.bf16.mxu0 0
        %2151 = vmatpush2.bf16.msra.mxu0 0
        %2152 = vmatprep.subr.bf16.mxu0 0
        %2153 = vmatpush2.bf16.msra.mxu0 0
        %2154 = vmatprep.subr.bf16.mxu0 0
        %2155 = vmatpush2.bf16.msra.mxu0 0
        %2156 = vmatprep.subr.bf16.mxu0 0
        %2157 = vmatpush2.bf16.msra.mxu0 0
        %2158 = vmatprep.subr.bf16.mxu0 0
        %2159 = vmatpush2.bf16.msra.mxu0 0
        %2160 = vmatprep.subr.bf16.mxu0 0
        %2161 = vmatpush2.bf16.msra.mxu0 0
        %2162 = vmatprep.subr.bf16.mxu0 0
        %2163 = vmatpush2.bf16.msra.mxu0 0
        %2164 = vmatprep.subr.bf16.mxu0 0
        %2165 = vmatpush2.bf16.msra.mxu0 0
        %2166 = vmatprep.mubr.bf16.mxu0 0
        %2167 = vmatmul.mubr.bf16.gmra.mxu0 %v1972
        %v2168 = vpop.f32.mrf.mxu0
        %v2169 = vadd.f32 0.0, %v2168
        %v2170 = vpop.f32.mrf.mxu0
        %v2171 = vadd.f32 0.0, %v2170
        %v2172 = vpop.f32.mrf.mxu0
        %v2173 = vpop.f32.mrf.mxu0
        %2174 = vdwg.mxu0
        %2175 = vmatprep.subr.bf16.mxu0 0
        %2176 = vmatpush1.bf16.msra.mxu0 %v2109
        %2177 = vmatprep.subr.bf16.mxu0 0
        %2178 = vmatpush1.bf16.msra.mxu0 %v2106
        %2179 = vmatprep.subr.bf16.mxu0 0
        %2180 = vmatpush1.bf16.msra.mxu0 %v2103
        %2181 = vmatprep.subr.bf16.mxu0 0
        %2182 = vmatpush1.bf16.msra.mxu0 %v2100
        %2183 = vmatprep.subr.bf16.mxu0 0
        %2184 = vmatpush1.bf16.msra.mxu0 %v2097
        %2185 = vmatprep.subr.bf16.mxu0 0
        %2186 = vmatpush1.bf16.msra.mxu0 %v2094
        %2187 = vmatprep.subr.bf16.mxu0 0
        %2188 = vmatpush1.bf16.msra.mxu0 %v2091
        %2189 = vmatprep.subr.bf16.mxu0 0
        %2190 = vmatpush1.bf16.msra.mxu0 %v2088
        %2191 = vmatprep.subr.bf16.mxu0 0
        %2192 = vmatpush2.bf16.msra.mxu0 0
        %2193 = vmatprep.subr.bf16.mxu0 0
        %2194 = vmatpush2.bf16.msra.mxu0 0
        %2195 = vmatprep.subr.bf16.mxu0 0
        %2196 = vmatpush2.bf16.msra.mxu0 0
        %2197 = vmatprep.subr.bf16.mxu0 0
        %2198 = vmatpush2.bf16.msra.mxu0 0
        %2199 = vmatprep.subr.bf16.mxu0 0
        %2200 = vmatpush2.bf16.msra.mxu0 0
        %2201 = vmatprep.subr.bf16.mxu0 0
        %2202 = vmatpush2.bf16.msra.mxu0 0
        %2203 = vmatprep.subr.bf16.mxu0 0
        %2204 = vmatpush2.bf16.msra.mxu0 0
        %2205 = vmatprep.subr.bf16.mxu0 0
        %2206 = vmatpush2.bf16.msra.mxu0 0
        %2207 = vmatprep.mubr.bf16.mxu0 0
        %2208 = vmatmul.mubr.bf16.gmra.mxu0 %v1972
        %v2209 = vpop.f32.mrf.mxu0
        %v2210 = vadd.f32 0.0, %v2209
        %v2211 = vpop.f32.mrf.mxu0
        %v2212 = vpop.f32.mrf.mxu0
        %v2213 = vpop.f32.mrf.mxu0
        %2214 = vdwg.mxu0
        %v2215 = vmul.f32 %v2169, %v631
        %2216 = vrot.lane.b32.xlu0 %v2169, 112
        %v2217 = vpop.permute.xlu0 %2216
        %v2218 = vmul.f32 %v2217, %v632
        %v2219 = vadd.f32 %v2215, %v2218
        %2220 = vrot.lane.b32.xlu0 %v2169, 16
        %v2221 = vpop.permute.xlu0 %2220
        %v2222 = vmul.f32 %v2221, %v633
        %v2223 = vadd.f32 %v2219, %v2222
        %v2224 = vpack.c.bf16 %v2223, %v2223
        %v2225 = vmul.f32 %v2171, %v631
        %2226 = vrot.lane.b32.xlu0 %v2171, 112
        %v2227 = vpop.permute.xlu0 %2226
        %v2228 = vmul.f32 %v2227, %v632
        %v2229 = vadd.f32 %v2225, %v2228
        %2230 = vrot.lane.b32.xlu0 %v2171, 16
        %v2231 = vpop.permute.xlu0 %2230
        %v2232 = vmul.f32 %v2231, %v633
        %v2233 = vadd.f32 %v2229, %v2232
        %v2234 = vpack.c.bf16 %v2233, %v2233
        %v2235 = vpack.c.bf16 %v2210, %v2210
        %v2237 = vshrl.u32 %v2224, 16
        %v2239 = vrot.slane %v2237, 3
        %v2241 = vsel %vm912, %v2239, 0
        %v2244 = vsel %vm912, %v2234, 0
        %2246 = vmatprep.subr.bf16.mxu0 0
        %2247 = vmatpush1.bf16.xpose.msra.mxu0 0
        %2248 = vmatprep.subr.bf16.mxu0 0
        %2249 = vmatpush1.bf16.xpose.msra.mxu0 0
        %2250 = vmatprep.subr.bf16.mxu0 0
        %2251 = vmatpush1.bf16.xpose.msra.mxu0 0
        %2252 = vmatprep.subr.bf16.mxu0 0
        %2253 = vmatpush1.bf16.xpose.msra.mxu0 0
        %2254 = vmatprep.subr.bf16.mxu0 0
        %2255 = vmatpush1.bf16.xpose.msra.mxu0 0
        %2256 = vmatprep.subr.bf16.mxu0 0
        %2257 = vmatpush1.bf16.xpose.msra.mxu0 0
        %2258 = vmatprep.subr.bf16.mxu0 0
        %2259 = vmatpush1.bf16.xpose.msra.mxu0 0
        %2260 = vmatprep.subr.bf16.mxu0 0
        %2261 = vmatpush1.bf16.xpose.msra.mxu0 %v2244
        %2262 = vmatprep.subr.bf16.mxu0 0
        %2263 = vmatpush2.bf16.xpose.msra.mxu0 0
        %2264 = vmatprep.subr.bf16.mxu0 0
        %2265 = vmatpush2.bf16.xpose.msra.mxu0 0
        %2266 = vmatprep.subr.bf16.mxu0 0
        %2267 = vmatpush2.bf16.xpose.msra.mxu0 0
        %2268 = vmatprep.subr.bf16.mxu0 0
        %2269 = vmatpush2.bf16.xpose.msra.mxu0 0
        %2270 = vmatprep.subr.bf16.mxu0 0
        %2271 = vmatpush2.bf16.xpose.msra.mxu0 0
        %2272 = vmatprep.subr.bf16.mxu0 0
        %2273 = vmatpush2.bf16.xpose.msra.mxu0 0
        %2274 = vmatprep.subr.bf16.mxu0 0
        %2275 = vmatpush2.bf16.xpose.msra.mxu0 0
        %2276 = vmatprep.subr.bf16.mxu0 0
        %2277 = vmatpush2.bf16.xpose.msra.mxu0 0
        %2278 = vmatprep.mubr.bf16.mxu0 0
        %2279 = vmatmul.mubr.bf16.gmra.mxu0 %v2241
        %v2280 = vpop.f32.mrf.mxu0
        %v2281 = vadd.f32 0.0, %v2280
        %v2282 = vpop.f32.mrf.mxu0
        %v2283 = vpop.f32.mrf.mxu0
        %v2284 = vpop.f32.mrf.mxu0
        %2285 = vdwg.mxu0
        %v2286 = vmul.f32 %v2281, 0.17677669
        %v2288 = vrot.slane %v630, 7
        %v2290 = vadd.f32 %v2286, %v2288
        %vm2291 = vcmask 57344
        %v2292 = vsel %vm2291, %v2290, -inf
        %2293 = vmax.xlane.f32.xlu0 %v2292
        %v2294 = vpop.xlane.xlu0 %2293
        %v2295 = vsub.f32 %v2290, %v2294
        %v2296 = vmul.f32 %v2295, 1.442695
        %v2297 = vpow.pop %v2296
        %v2298 = vsel %vm2291, %v2297, 0.0
        %2299 = vadd.xlane.f32.xlu0 %v2298
        %v2300 = vpop.xlane.xlu0 %2299
        %v2301 = vrcp.pop %v2300
        %v2302 = vmul.f32 %v2297, %v2301
        %v2303 = vpack.c.bf16 %v2302, %v2302
        %v2305 = vsel %vm961, %v2303, 0
        %v2308 = vsel %vm977, %v2235, 0
        %2310 = vmatprep.subr.bf16.mxu0 0
        %2311 = vmatpush1.bf16.msra.mxu0 0
        %2312 = vmatprep.subr.bf16.mxu0 0
        %2313 = vmatpush1.bf16.msra.mxu0 0
        %2314 = vmatprep.subr.bf16.mxu0 0
        %2315 = vmatpush1.bf16.msra.mxu0 0
        %2316 = vmatprep.subr.bf16.mxu0 0
        %2317 = vmatpush1.bf16.msra.mxu0 0
        %2318 = vmatprep.subr.bf16.mxu0 0
        %2319 = vmatpush1.bf16.msra.mxu0 0
        %2320 = vmatprep.subr.bf16.mxu0 0
        %2321 = vmatpush1.bf16.msra.mxu0 0
        %2322 = vmatprep.subr.bf16.mxu0 0
        %2323 = vmatpush1.bf16.msra.mxu0 0
        %2324 = vmatprep.subr.bf16.mxu0 0
        %2325 = vmatpush1.bf16.msra.mxu0 %v2308
        %2326 = vmatprep.subr.bf16.mxu0 0
        %2327 = vmatpush2.bf16.msra.mxu0 0
        %2328 = vmatprep.subr.bf16.mxu0 0
        %2329 = vmatpush2.bf16.msra.mxu0 0
        %2330 = vmatprep.subr.bf16.mxu0 0
        %2331 = vmatpush2.bf16.msra.mxu0 0
        %2332 = vmatprep.subr.bf16.mxu0 0
        %2333 = vmatpush2.bf16.msra.mxu0 0
        %2334 = vmatprep.subr.bf16.mxu0 0
        %2335 = vmatpush2.bf16.msra.mxu0 0
        %2336 = vmatprep.subr.bf16.mxu0 0
        %2337 = vmatpush2.bf16.msra.mxu0 0
        %2338 = vmatprep.subr.bf16.mxu0 0
        %2339 = vmatpush2.bf16.msra.mxu0 0
        %2340 = vmatprep.subr.bf16.mxu0 0
        %2341 = vmatpush2.bf16.msra.mxu0 0
        %2342 = vmatprep.mubr.bf16.mxu0 0
        %2343 = vmatmul.mubr.bf16.gmra.mxu0 %v2305
        %v2344 = vpop.f32.mrf.mxu0
        %v2345 = vadd.f32 0.0, %v2344
        %v2346 = vpop.f32.mrf.mxu0
        %v2347 = vpop.f32.mrf.mxu0
        %v2348 = vpop.f32.mrf.mxu0
        %2349 = vdwg.mxu0
        %2350 = vrot.lane.b32.xlu0 %v2239, 96
        %v2351 = vpop.permute.xlu0 %2350
        %2353 = vrot.lane.b32.xlu0 %v2234, 96
        %v2354 = vpop.permute.xlu0 %2353
        %v2356 = vsel %vm912, %v2351, 0
        %v2359 = vsel %vm912, %v2354, 0
        %2361 = vmatprep.subr.bf16.mxu0 0
        %2362 = vmatpush1.bf16.xpose.msra.mxu0 0
        %2363 = vmatprep.subr.bf16.mxu0 0
        %2364 = vmatpush1.bf16.xpose.msra.mxu0 0
        %2365 = vmatprep.subr.bf16.mxu0 0
        %2366 = vmatpush1.bf16.xpose.msra.mxu0 0
        %2367 = vmatprep.subr.bf16.mxu0 0
        %2368 = vmatpush1.bf16.xpose.msra.mxu0 0
        %2369 = vmatprep.subr.bf16.mxu0 0
        %2370 = vmatpush1.bf16.xpose.msra.mxu0 0
        %2371 = vmatprep.subr.bf16.mxu0 0
        %2372 = vmatpush1.bf16.xpose.msra.mxu0 0
        %2373 = vmatprep.subr.bf16.mxu0 0
        %2374 = vmatpush1.bf16.xpose.msra.mxu0 0
        %2375 = vmatprep.subr.bf16.mxu0 0
        %2376 = vmatpush1.bf16.xpose.msra.mxu0 %v2359
        %2377 = vmatprep.subr.bf16.mxu0 0
        %2378 = vmatpush2.bf16.xpose.msra.mxu0 0
        %2379 = vmatprep.subr.bf16.mxu0 0
        %2380 = vmatpush2.bf16.xpose.msra.mxu0 0
        %2381 = vmatprep.subr.bf16.mxu0 0
        %2382 = vmatpush2.bf16.xpose.msra.mxu0 0
        %2383 = vmatprep.subr.bf16.mxu0 0
        %2384 = vmatpush2.bf16.xpose.msra.mxu0 0
        %2385 = vmatprep.subr.bf16.mxu0 0
        %2386 = vmatpush2.bf16.xpose.msra.mxu0 0
        %2387 = vmatprep.subr.bf16.mxu0 0
        %2388 = vmatpush2.bf16.xpose.msra.mxu0 0
        %2389 = vmatprep.subr.bf16.mxu0 0
        %2390 = vmatpush2.bf16.xpose.msra.mxu0 0
        %2391 = vmatprep.subr.bf16.mxu0 0
        %2392 = vmatpush2.bf16.xpose.msra.mxu0 0
        %2393 = vmatprep.mubr.bf16.mxu0 0
        %2394 = vmatmul.mubr.bf16.gmra.mxu0 %v2356
        %v2395 = vpop.f32.mrf.mxu0
        %v2396 = vadd.f32 0.0, %v2395
        %v2397 = vpop.f32.mrf.mxu0
        %v2398 = vpop.f32.mrf.mxu0
        %v2399 = vpop.f32.mrf.mxu0
        %2400 = vdwg.mxu0
        %v2401 = vmul.f32 %v2396, 0.17677669
        %v2402 = vadd.f32 %v2401, %v2288
        %v2403 = vsel %vm2291, %v2402, -inf
        %2404 = vmax.xlane.f32.xlu0 %v2403
        %v2405 = vpop.xlane.xlu0 %2404
        %v2406 = vsub.f32 %v2402, %v2405
        %v2407 = vmul.f32 %v2406, 1.442695
        %v2408 = vpow.pop %v2407
        %v2409 = vsel %vm2291, %v2408, 0.0
        %2410 = vadd.xlane.f32.xlu0 %v2409
        %v2411 = vpop.xlane.xlu0 %2410
        %v2412 = vrcp.pop %v2411
        %v2413 = vmul.f32 %v2408, %v2412
        %v2414 = vpack.c.bf16 %v2413, %v2413
        %2416 = vrot.lane.b32.xlu0 %v2235, 96
        %v2417 = vpop.permute.xlu0 %2416
        %v2419 = vsel %vm961, %v2414, 0
        %v2422 = vsel %vm977, %v2417, 0
        %2424 = vmatprep.subr.bf16.mxu0 0
        %2425 = vmatpush1.bf16.msra.mxu0 0
        %2426 = vmatprep.subr.bf16.mxu0 0
        %2427 = vmatpush1.bf16.msra.mxu0 0
        %2428 = vmatprep.subr.bf16.mxu0 0
        %2429 = vmatpush1.bf16.msra.mxu0 0
        %2430 = vmatprep.subr.bf16.mxu0 0
        %2431 = vmatpush1.bf16.msra.mxu0 0
        %2432 = vmatprep.subr.bf16.mxu0 0
        %2433 = vmatpush1.bf16.msra.mxu0 0
        %2434 = vmatprep.subr.bf16.mxu0 0
        %2435 = vmatpush1.bf16.msra.mxu0 0
        %2436 = vmatprep.subr.bf16.mxu0 0
        %2437 = vmatpush1.bf16.msra.mxu0 0
        %2438 = vmatprep.subr.bf16.mxu0 0
        %2439 = vmatpush1.bf16.msra.mxu0 %v2422
        %2440 = vmatprep.subr.bf16.mxu0 0
        %2441 = vmatpush2.bf16.msra.mxu0 0
        %2442 = vmatprep.subr.bf16.mxu0 0
        %2443 = vmatpush2.bf16.msra.mxu0 0
        %2444 = vmatprep.subr.bf16.mxu0 0
        %2445 = vmatpush2.bf16.msra.mxu0 0
        %2446 = vmatprep.subr.bf16.mxu0 0
        %2447 = vmatpush2.bf16.msra.mxu0 0
        %2448 = vmatprep.subr.bf16.mxu0 0
        %2449 = vmatpush2.bf16.msra.mxu0 0
        %2450 = vmatprep.subr.bf16.mxu0 0
        %2451 = vmatpush2.bf16.msra.mxu0 0
        %2452 = vmatprep.subr.bf16.mxu0 0
        %2453 = vmatpush2.bf16.msra.mxu0 0
        %2454 = vmatprep.subr.bf16.mxu0 0
        %2455 = vmatpush2.bf16.msra.mxu0 0
        %2456 = vmatprep.mubr.bf16.mxu0 0
        %2457 = vmatmul.mubr.bf16.gmra.mxu0 %v2419
        %v2458 = vpop.f32.mrf.mxu0
        %v2459 = vadd.f32 0.0, %v2458
        %v2460 = vpop.f32.mrf.mxu0
        %v2461 = vpop.f32.mrf.mxu0
        %v2462 = vpop.f32.mrf.mxu0
        %2463 = vdwg.mxu0
        %2464 = vrot.lane.b32.xlu0 %v2239, 64
        %v2465 = vpop.permute.xlu0 %2464
        %2466 = vrot.lane.b32.xlu0 %v2234, 64
        %v2467 = vpop.permute.xlu0 %2466
        %v2469 = vsel %vm912, %v2465, 0
        %v2472 = vsel %vm912, %v2467, 0
        %2474 = vmatprep.subr.bf16.mxu0 0
        %2475 = vmatpush1.bf16.xpose.msra.mxu0 0
        %2476 = vmatprep.subr.bf16.mxu0 0
        %2477 = vmatpush1.bf16.xpose.msra.mxu0 0
        %2478 = vmatprep.subr.bf16.mxu0 0
        %2479 = vmatpush1.bf16.xpose.msra.mxu0 0
        %2480 = vmatprep.subr.bf16.mxu0 0
        %2481 = vmatpush1.bf16.xpose.msra.mxu0 0
        %2482 = vmatprep.subr.bf16.mxu0 0
        %2483 = vmatpush1.bf16.xpose.msra.mxu0 0
        %2484 = vmatprep.subr.bf16.mxu0 0
        %2485 = vmatpush1.bf16.xpose.msra.mxu0 0
        %2486 = vmatprep.subr.bf16.mxu0 0
        %2487 = vmatpush1.bf16.xpose.msra.mxu0 0
        %2488 = vmatprep.subr.bf16.mxu0 0
        %2489 = vmatpush1.bf16.xpose.msra.mxu0 %v2472
        %2490 = vmatprep.subr.bf16.mxu0 0
        %2491 = vmatpush2.bf16.xpose.msra.mxu0 0
        %2492 = vmatprep.subr.bf16.mxu0 0
        %2493 = vmatpush2.bf16.xpose.msra.mxu0 0
        %2494 = vmatprep.subr.bf16.mxu0 0
        %2495 = vmatpush2.bf16.xpose.msra.mxu0 0
        %2496 = vmatprep.subr.bf16.mxu0 0
        %2497 = vmatpush2.bf16.xpose.msra.mxu0 0
        %2498 = vmatprep.subr.bf16.mxu0 0
        %2499 = vmatpush2.bf16.xpose.msra.mxu0 0
        %2500 = vmatprep.subr.bf16.mxu0 0
        %2501 = vmatpush2.bf16.xpose.msra.mxu0 0
        %2502 = vmatprep.subr.bf16.mxu0 0
        %2503 = vmatpush2.bf16.xpose.msra.mxu0 0
        %2504 = vmatprep.subr.bf16.mxu0 0
        %2505 = vmatpush2.bf16.xpose.msra.mxu0 0
        %2506 = vmatprep.mubr.bf16.mxu0 0
        %2507 = vmatmul.mubr.bf16.gmra.mxu0 %v2469
        %v2508 = vpop.f32.mrf.mxu0
        %v2509 = vadd.f32 0.0, %v2508
        %v2510 = vpop.f32.mrf.mxu0
        %v2511 = vpop.f32.mrf.mxu0
        %v2512 = vpop.f32.mrf.mxu0
        %2513 = vdwg.mxu0
        %v2514 = vmul.f32 %v2509, 0.17677669
        %v2515 = vadd.f32 %v2514, %v2288
        %v2516 = vsel %vm2291, %v2515, -inf
        %2517 = vmax.xlane.f32.xlu0 %v2516
        %v2518 = vpop.xlane.xlu0 %2517
        %v2519 = vsub.f32 %v2515, %v2518
        %v2520 = vmul.f32 %v2519, 1.442695
        %v2521 = vpow.pop %v2520
        %v2522 = vsel %vm2291, %v2521, 0.0
        %2523 = vadd.xlane.f32.xlu0 %v2522
        %v2524 = vpop.xlane.xlu0 %2523
        %v2525 = vrcp.pop %v2524
        %v2526 = vmul.f32 %v2521, %v2525
        %v2527 = vpack.c.bf16 %v2526, %v2526
        %2528 = vrot.lane.b32.xlu0 %v2235, 64
        %v2529 = vpop.permute.xlu0 %2528
        %v2531 = vsel %vm961, %v2527, 0
        %v2534 = vsel %vm977, %v2529, 0
        %2536 = vmatprep.subr.bf16.mxu0 0
        %2537 = vmatpush1.bf16.msra.mxu0 0
        %2538 = vmatprep.subr.bf16.mxu0 0
        %2539 = vmatpush1.bf16.msra.mxu0 0
        %2540 = vmatprep.subr.bf16.mxu0 0
        %2541 = vmatpush1.bf16.msra.mxu0 0
        %2542 = vmatprep.subr.bf16.mxu0 0
        %2543 = vmatpush1.bf16.msra.mxu0 0
        %2544 = vmatprep.subr.bf16.mxu0 0
        %2545 = vmatpush1.bf16.msra.mxu0 0
        %2546 = vmatprep.subr.bf16.mxu0 0
        %2547 = vmatpush1.bf16.msra.mxu0 0
        %2548 = vmatprep.subr.bf16.mxu0 0
        %2549 = vmatpush1.bf16.msra.mxu0 0
        %2550 = vmatprep.subr.bf16.mxu0 0
        %2551 = vmatpush1.bf16.msra.mxu0 %v2534
        %2552 = vmatprep.subr.bf16.mxu0 0
        %2553 = vmatpush2.bf16.msra.mxu0 0
        %2554 = vmatprep.subr.bf16.mxu0 0
        %2555 = vmatpush2.bf16.msra.mxu0 0
        %2556 = vmatprep.subr.bf16.mxu0 0
        %2557 = vmatpush2.bf16.msra.mxu0 0
        %2558 = vmatprep.subr.bf16.mxu0 0
        %2559 = vmatpush2.bf16.msra.mxu0 0
        %2560 = vmatprep.subr.bf16.mxu0 0
        %2561 = vmatpush2.bf16.msra.mxu0 0
        %2562 = vmatprep.subr.bf16.mxu0 0
        %2563 = vmatpush2.bf16.msra.mxu0 0
        %2564 = vmatprep.subr.bf16.mxu0 0
        %2565 = vmatpush2.bf16.msra.mxu0 0
        %2566 = vmatprep.subr.bf16.mxu0 0
        %2567 = vmatpush2.bf16.msra.mxu0 0
        %2568 = vmatprep.mubr.bf16.mxu0 0
        %2569 = vmatmul.mubr.bf16.gmra.mxu0 %v2531
        %v2570 = vpop.f32.mrf.mxu0
        %v2571 = vadd.f32 0.0, %v2570
        %v2572 = vpop.f32.mrf.mxu0
        %v2573 = vpop.f32.mrf.mxu0
        %v2574 = vpop.f32.mrf.mxu0
        %2575 = vdwg.mxu0
        %2576 = vrot.lane.b32.xlu0 %v2239, 32
        %v2577 = vpop.permute.xlu0 %2576
        %2578 = vrot.lane.b32.xlu0 %v2234, 32
        %v2579 = vpop.permute.xlu0 %2578
        %v2581 = vsel %vm912, %v2577, 0
        %v2584 = vsel %vm912, %v2579, 0
        %2586 = vmatprep.subr.bf16.mxu0 0
        %2587 = vmatpush1.bf16.xpose.msra.mxu0 0
        %2588 = vmatprep.subr.bf16.mxu0 0
        %2589 = vmatpush1.bf16.xpose.msra.mxu0 0
        %2590 = vmatprep.subr.bf16.mxu0 0
        %2591 = vmatpush1.bf16.xpose.msra.mxu0 0
        %2592 = vmatprep.subr.bf16.mxu0 0
        %2593 = vmatpush1.bf16.xpose.msra.mxu0 0
        %2594 = vmatprep.subr.bf16.mxu0 0
        %2595 = vmatpush1.bf16.xpose.msra.mxu0 0
        %2596 = vmatprep.subr.bf16.mxu0 0
        %2597 = vmatpush1.bf16.xpose.msra.mxu0 0
        %2598 = vmatprep.subr.bf16.mxu0 0
        %2599 = vmatpush1.bf16.xpose.msra.mxu0 0
        %2600 = vmatprep.subr.bf16.mxu0 0
        %2601 = vmatpush1.bf16.xpose.msra.mxu0 %v2584
        %2602 = vmatprep.subr.bf16.mxu0 0
        %2603 = vmatpush2.bf16.xpose.msra.mxu0 0
        %2604 = vmatprep.subr.bf16.mxu0 0
        %2605 = vmatpush2.bf16.xpose.msra.mxu0 0
        %2606 = vmatprep.subr.bf16.mxu0 0
        %2607 = vmatpush2.bf16.xpose.msra.mxu0 0
        %2608 = vmatprep.subr.bf16.mxu0 0
        %2609 = vmatpush2.bf16.xpose.msra.mxu0 0
        %2610 = vmatprep.subr.bf16.mxu0 0
        %2611 = vmatpush2.bf16.xpose.msra.mxu0 0
        %2612 = vmatprep.subr.bf16.mxu0 0
        %2613 = vmatpush2.bf16.xpose.msra.mxu0 0
        %2614 = vmatprep.subr.bf16.mxu0 0
        %2615 = vmatpush2.bf16.xpose.msra.mxu0 0
        %2616 = vmatprep.subr.bf16.mxu0 0
        %2617 = vmatpush2.bf16.xpose.msra.mxu0 0
        %2618 = vmatprep.mubr.bf16.mxu0 0
        %2619 = vmatmul.mubr.bf16.gmra.mxu0 %v2581
        %v2620 = vpop.f32.mrf.mxu0
        %v2621 = vadd.f32 0.0, %v2620
        %v2622 = vpop.f32.mrf.mxu0
        %v2623 = vpop.f32.mrf.mxu0
        %v2624 = vpop.f32.mrf.mxu0
        %2625 = vdwg.mxu0
        %v2626 = vmul.f32 %v2621, 0.17677669
        %v2627 = vadd.f32 %v2626, %v2288
        %v2628 = vsel %vm2291, %v2627, -inf
        %2629 = vmax.xlane.f32.xlu0 %v2628
        %v2630 = vpop.xlane.xlu0 %2629
        %v2631 = vsub.f32 %v2627, %v2630
        %v2632 = vmul.f32 %v2631, 1.442695
        %v2633 = vpow.pop %v2632
        %v2634 = vsel %vm2291, %v2633, 0.0
        %2635 = vadd.xlane.f32.xlu0 %v2634
        %v2636 = vpop.xlane.xlu0 %2635
        %v2637 = vrcp.pop %v2636
        %v2638 = vmul.f32 %v2633, %v2637
        %v2639 = vpack.c.bf16 %v2638, %v2638
        %2640 = vrot.lane.b32.xlu0 %v2235, 32
        %v2641 = vpop.permute.xlu0 %2640
        %v2643 = vsel %vm961, %v2639, 0
        %v2646 = vsel %vm977, %v2641, 0
        %2648 = vmatprep.subr.bf16.mxu0 0
        %2649 = vmatpush1.bf16.msra.mxu0 0
        %2650 = vmatprep.subr.bf16.mxu0 0
        %2651 = vmatpush1.bf16.msra.mxu0 0
        %2652 = vmatprep.subr.bf16.mxu0 0
        %2653 = vmatpush1.bf16.msra.mxu0 0
        %2654 = vmatprep.subr.bf16.mxu0 0
        %2655 = vmatpush1.bf16.msra.mxu0 0
        %2656 = vmatprep.subr.bf16.mxu0 0
        %2657 = vmatpush1.bf16.msra.mxu0 0
        %2658 = vmatprep.subr.bf16.mxu0 0
        %2659 = vmatpush1.bf16.msra.mxu0 0
        %2660 = vmatprep.subr.bf16.mxu0 0
        %2661 = vmatpush1.bf16.msra.mxu0 0
        %2662 = vmatprep.subr.bf16.mxu0 0
        %2663 = vmatpush1.bf16.msra.mxu0 %v2646
        %2664 = vmatprep.subr.bf16.mxu0 0
        %2665 = vmatpush2.bf16.msra.mxu0 0
        %2666 = vmatprep.subr.bf16.mxu0 0
        %2667 = vmatpush2.bf16.msra.mxu0 0
        %2668 = vmatprep.subr.bf16.mxu0 0
        %2669 = vmatpush2.bf16.msra.mxu0 0
        %2670 = vmatprep.subr.bf16.mxu0 0
        %2671 = vmatpush2.bf16.msra.mxu0 0
        %2672 = vmatprep.subr.bf16.mxu0 0
        %2673 = vmatpush2.bf16.msra.mxu0 0
        %2674 = vmatprep.subr.bf16.mxu0 0
        %2675 = vmatpush2.bf16.msra.mxu0 0
        %2676 = vmatprep.subr.bf16.mxu0 0
        %2677 = vmatpush2.bf16.msra.mxu0 0
        %2678 = vmatprep.subr.bf16.mxu0 0
        %2679 = vmatpush2.bf16.msra.mxu0 0
        %2680 = vmatprep.mubr.bf16.mxu0 0
        %2681 = vmatmul.mubr.bf16.gmra.mxu0 %v2643
        %v2682 = vpop.f32.mrf.mxu0
        %v2683 = vadd.f32 0.0, %v2682
        %v2684 = vpop.f32.mrf.mxu0
        %v2685 = vpop.f32.mrf.mxu0
        %v2686 = vpop.f32.mrf.mxu0
        %2687 = vdwg.mxu0
        %2689 = vrot.lane.b32.xlu0 %v2459, 32
        %v2690 = vpop.permute.xlu0 %2689
        %2693 = vrot.lane.b32.xlu0 %v2571, 64
        %v2694 = vpop.permute.xlu0 %2693
        %2697 = vrot.lane.b32.xlu0 %v2683, 96
        %v2698 = vpop.permute.xlu0 %2697
        %v2700 = vsel %vm912, %v2345, %v2690
        %v2701 = vsel %vm1373, %v2700, %v2694
        %v2702 = vsel %vm1375, %v2701, %v2698
        %v2703 = vpack.c.bf16 %v2702, %v2702
        %s2704 = scalar_lea.vmem [#allocation11], 64
        %v2705 = vld [vmem:[%s2704] sm:$0xf]
        %v2706 = vld [vmem:[%s2704 + $0x4] sm:$0xf]
        %v2707 = vld [vmem:[%s2704 + $0x8] sm:$0xf]
        %v2708 = vld [vmem:[%s2704 + $0xc] sm:$0xf]
        %v2709 = vld [vmem:[%s2704 + $0x10] sm:$0xf]
        %v2710 = vld [vmem:[%s2704 + $0x14] sm:$0xf]
        %v2711 = vld [vmem:[%s2704 + $0x18] sm:$0xf]
        %v2712 = vld [vmem:[%s2704 + $0x1c] sm:$0xf]
        %v2713 = vld [vmem:[%s2704 + $0x20] sm:$0xf]
        %v2714 = vld [vmem:[%s2704 + $0x24] sm:$0xf]
        %v2715 = vld [vmem:[%s2704 + $0x28] sm:$0xf]
        %v2716 = vld [vmem:[%s2704 + $0x2c] sm:$0xf]
        %v2717 = vld [vmem:[%s2704 + $0x30] sm:$0xf]
        %v2718 = vld [vmem:[%s2704 + $0x34] sm:$0xf]
        %v2719 = vld [vmem:[%s2704 + $0x38] sm:$0xf]
        %v2720 = vld [vmem:[%s2704 + $0x3c] sm:$0xf]
        %v2737 = vunpack.c.l.b16 %v2705
        %v2738 = vunpack.c.l.b16 %v2706
        %v2739 = vunpack.c.l.b16 %v2707
        %v2740 = vunpack.c.l.b16 %v2708
        %v2741 = vunpack.c.l.b16 %v2709
        %v2742 = vunpack.c.l.b16 %v2710
        %v2743 = vunpack.c.l.b16 %v2711
        %v2744 = vunpack.c.l.b16 %v2712
        %v2745 = vunpack.c.l.b16 %v2713
        %v2746 = vunpack.c.l.b16 %v2714
        %v2747 = vunpack.c.l.b16 %v2715
        %v2748 = vunpack.c.l.b16 %v2716
        %v2749 = vunpack.c.l.b16 %v2717
        %v2750 = vunpack.c.l.b16 %v2718
        %v2751 = vunpack.c.l.b16 %v2719
        %v2752 = vunpack.c.l.b16 %v2720
        %v2753 = vpack.c.b16 %v2738, %v2737
        %v2754 = vpack.c.b16 %v2740, %v2739
        %v2755 = vpack.c.b16 %v2742, %v2741
        %v2756 = vpack.c.b16 %v2744, %v2743
        %v2757 = vpack.c.b16 %v2746, %v2745
        %v2758 = vpack.c.b16 %v2748, %v2747
        %v2759 = vpack.c.b16 %v2750, %v2749
        %v2760 = vpack.c.b16 %v2752, %v2751
        %2769 = vmatprep.subr.bf16.mxu0 0
        %2770 = vmatpush1.bf16.msra.mxu0 %v2760
        %2771 = vmatprep.subr.bf16.mxu0 0
        %2772 = vmatpush1.bf16.msra.mxu0 %v2759
        %2773 = vmatprep.subr.bf16.mxu0 0
        %2774 = vmatpush1.bf16.msra.mxu0 %v2758
        %2775 = vmatprep.subr.bf16.mxu0 0
        %2776 = vmatpush1.bf16.msra.mxu0 %v2757
        %2777 = vmatprep.subr.bf16.mxu0 0
        %2778 = vmatpush1.bf16.msra.mxu0 %v2756
        %2779 = vmatprep.subr.bf16.mxu0 0
        %2780 = vmatpush1.bf16.msra.mxu0 %v2755
        %2781 = vmatprep.subr.bf16.mxu0 0
        %2782 = vmatpush1.bf16.msra.mxu0 %v2754
        %2783 = vmatprep.subr.bf16.mxu0 0
        %2784 = vmatpush1.bf16.msra.mxu0 %v2753
        %2785 = vmatprep.subr.bf16.mxu0 0
        %2786 = vmatpush2.bf16.msra.mxu0 0
        %2787 = vmatprep.subr.bf16.mxu0 0
        %2788 = vmatpush2.bf16.msra.mxu0 0
        %2789 = vmatprep.subr.bf16.mxu0 0
        %2790 = vmatpush2.bf16.msra.mxu0 0
        %2791 = vmatprep.subr.bf16.mxu0 0
        %2792 = vmatpush2.bf16.msra.mxu0 0
        %2793 = vmatprep.subr.bf16.mxu0 0
        %2794 = vmatpush2.bf16.msra.mxu0 0
        %2795 = vmatprep.subr.bf16.mxu0 0
        %2796 = vmatpush2.bf16.msra.mxu0 0
        %2797 = vmatprep.subr.bf16.mxu0 0
        %2798 = vmatpush2.bf16.msra.mxu0 0
        %2799 = vmatprep.subr.bf16.mxu0 0
        %2800 = vmatpush2.bf16.msra.mxu0 0
        %2801 = vmatprep.mubr.bf16.mxu0 0
        %2802 = vmatmul.mubr.bf16.gmra.mxu0 %v2703
        %v2803 = vpop.f32.mrf.mxu0
        %v2804 = vadd.f32 0.0, %v2803
        %v2805 = vpop.f32.mrf.mxu0
        %v2806 = vpop.f32.mrf.mxu0
        %v2807 = vpop.f32.mrf.mxu0
        %2808 = vdwg.mxu0
        %v2810 = vrot.slane %v2804, 1
        %v2812 = vadd.f32 %v1956, %v2810
        %s2813 = scalar_lea.vmem %s6, 1
        %v2814 = vld [vmem:[%s2813] sm:$0x1]
        %v2815 = vunpack.c.l.bf16 %v2814
        %v2816 = vmul.f32 %v2812, %v2812
        %vm2817 = vcmask 1047559
        %v2818 = vsel %vm2817, %v2816, 0.0
        %2819 = vadd.xlane.f32.xlu0 %v2818
        %v2820 = vpop.xlane.xlu0 %2819
        %v2821 = vmul.f32 %v2820, %v639
        %v2822 = vadd.f32 %v2821, 1e-06
        %v2823 = vrsqrt.pop %v2822
        %v2824 = vmul.f32 %v2812, %v2823
        %v2826 = vlaneseq
        %v2827 = vshrl.u32 %v2826, 7
        %v2828 = vsub.s32 0, %v2827
        %v2829 = vrot.slane %v2815, %v2828
        %v2831 = vmul.f32 %v2824, %v2829
        %v2832 = vpack.c.bf16 %v2831, %v2831
        %s2833 = scalar_lea.vmem [#allocation13], 256
        %v2834 = vld [vmem:[%s2833] sm:$0xff]
        %v2835 = vld [vmem:[%s2833 + $0x8] sm:$0xff]
        %v2836 = vld [vmem:[%s2833 + $0x10] sm:$0xff]
        %v2837 = vld [vmem:[%s2833 + $0x18] sm:$0xff]
        %v2838 = vld [vmem:[%s2833 + $0x20] sm:$0xff]
        %v2839 = vld [vmem:[%s2833 + $0x28] sm:$0xff]
        %v2840 = vld [vmem:[%s2833 + $0x30] sm:$0xff]
        %v2841 = vld [vmem:[%s2833 + $0x38] sm:$0xff]
        %v2842 = vld [vmem:[%s2833 + $0x40] sm:$0xff]
        %v2843 = vld [vmem:[%s2833 + $0x48] sm:$0xff]
        %v2844 = vld [vmem:[%s2833 + $0x50] sm:$0xff]
        %v2845 = vld [vmem:[%s2833 + $0x58] sm:$0xff]
        %v2846 = vld [vmem:[%s2833 + $0x60] sm:$0xff]
        %v2847 = vld [vmem:[%s2833 + $0x68] sm:$0xff]
        %v2848 = vld [vmem:[%s2833 + $0x70] sm:$0xff]
        %v2849 = vld [vmem:[%s2833 + $0x78] sm:$0xff]
        %v2850 = vld [vmem:[%s2833 + $0x80] sm:$0xff]
        %v2851 = vld [vmem:[%s2833 + $0x88] sm:$0xff]
        %v2852 = vld [vmem:[%s2833 + $0x90] sm:$0xff]
        %v2853 = vld [vmem:[%s2833 + $0x98] sm:$0xff]
        %v2854 = vld [vmem:[%s2833 + $0xa0] sm:$0xff]
        %v2855 = vld [vmem:[%s2833 + $0xa8] sm:$0xff]
        %v2856 = vld [vmem:[%s2833 + $0xb0] sm:$0xff]
        %v2857 = vld [vmem:[%s2833 + $0xb8] sm:$0xff]
        %v2858 = vld [vmem:[%s2833 + $0xc0] sm:$0xff]
        %v2859 = vld [vmem:[%s2833 + $0xc8] sm:$0xff]
        %v2860 = vld [vmem:[%s2833 + $0xd0] sm:$0xff]
        %v2861 = vld [vmem:[%s2833 + $0xd8] sm:$0xff]
        %v2862 = vld [vmem:[%s2833 + $0xe0] sm:$0xff]
        %v2863 = vld [vmem:[%s2833 + $0xe8] sm:$0xff]
        %v2864 = vld [vmem:[%s2833 + $0xf0] sm:$0xff]
        %v2865 = vld [vmem:[%s2833 + $0xf8] sm:$0xff]
        %v2867 = vshrl.u32 %v2832, 16
        %v2869 = vrot.slane %v2867, 3
        %v2903 = vunpack.c.l.b16 %v2834
        %v2904 = vunpack.c.h.b16 %v2834
        %v2905 = vunpack.c.l.b16 %v2835
        %v2906 = vunpack.c.h.b16 %v2835
        %v2907 = vunpack.c.l.b16 %v2836
        %v2908 = vunpack.c.h.b16 %v2836
        %v2909 = vunpack.c.l.b16 %v2837
        %v2910 = vunpack.c.h.b16 %v2837
        %v2911 = vunpack.c.l.b16 %v2838
        %v2912 = vunpack.c.h.b16 %v2838
        %v2913 = vunpack.c.l.b16 %v2839
        %v2914 = vunpack.c.h.b16 %v2839
        %v2915 = vunpack.c.l.b16 %v2840
        %v2916 = vunpack.c.h.b16 %v2840
        %v2917 = vunpack.c.l.b16 %v2841
        %v2918 = vunpack.c.h.b16 %v2841
        %v2919 = vunpack.c.l.b16 %v2842
        %v2920 = vunpack.c.h.b16 %v2842
        %v2921 = vunpack.c.l.b16 %v2843
        %v2922 = vunpack.c.h.b16 %v2843
        %v2923 = vunpack.c.l.b16 %v2844
        %v2924 = vunpack.c.h.b16 %v2844
        %v2925 = vunpack.c.l.b16 %v2845
        %v2926 = vunpack.c.h.b16 %v2845
        %v2927 = vunpack.c.l.b16 %v2846
        %v2928 = vunpack.c.h.b16 %v2846
        %v2929 = vunpack.c.l.b16 %v2847
        %v2930 = vunpack.c.h.b16 %v2847
        %v2931 = vunpack.c.l.b16 %v2848
        %v2932 = vunpack.c.h.b16 %v2848
        %v2933 = vunpack.c.l.b16 %v2849
        %v2934 = vunpack.c.h.b16 %v2849
        %v2935 = vunpack.c.l.b16 %v2850
        %v2936 = vunpack.c.h.b16 %v2850
        %v2937 = vunpack.c.l.b16 %v2851
        %v2938 = vunpack.c.h.b16 %v2851
        %v2939 = vunpack.c.l.b16 %v2852
        %v2940 = vunpack.c.h.b16 %v2852
        %v2941 = vunpack.c.l.b16 %v2853
        %v2942 = vunpack.c.h.b16 %v2853
        %v2943 = vunpack.c.l.b16 %v2854
        %v2944 = vunpack.c.h.b16 %v2854
        %v2945 = vunpack.c.l.b16 %v2855
        %v2946 = vunpack.c.h.b16 %v2855
        %v2947 = vunpack.c.l.b16 %v2856
        %v2948 = vunpack.c.h.b16 %v2856
        %v2949 = vunpack.c.l.b16 %v2857
        %v2950 = vunpack.c.h.b16 %v2857
        %v2951 = vunpack.c.l.b16 %v2858
        %v2952 = vunpack.c.h.b16 %v2858
        %v2953 = vunpack.c.l.b16 %v2859
        %v2954 = vunpack.c.h.b16 %v2859
        %v2955 = vunpack.c.l.b16 %v2860
        %v2956 = vunpack.c.h.b16 %v2860
        %v2957 = vunpack.c.l.b16 %v2861
        %v2958 = vunpack.c.h.b16 %v2861
        %v2959 = vunpack.c.l.b16 %v2862
        %v2960 = vunpack.c.h.b16 %v2862
        %v2961 = vunpack.c.l.b16 %v2863
        %v2962 = vunpack.c.h.b16 %v2863
        %v2963 = vunpack.c.l.b16 %v2864
        %v2964 = vunpack.c.h.b16 %v2864
        %v2965 = vunpack.c.l.b16 %v2865
        %v2966 = vunpack.c.h.b16 %v2865
        %v2967 = vpack.c.b16 %v2907, %v2903
        %v2968 = vpack.c.b16 %v2908, %v2904
        %v2969 = vpack.c.b16 %v2909, %v2905
        %v2970 = vpack.c.b16 %v2910, %v2906
        %v2971 = vpack.c.b16 %v2915, %v2911
        %v2972 = vpack.c.b16 %v2916, %v2912
        %v2973 = vpack.c.b16 %v2917, %v2913
        %v2974 = vpack.c.b16 %v2918, %v2914
        %v2975 = vpack.c.b16 %v2923, %v2919
        %v2976 = vpack.c.b16 %v2924, %v2920
        %v2977 = vpack.c.b16 %v2925, %v2921
        %v2978 = vpack.c.b16 %v2926, %v2922
        %v2979 = vpack.c.b16 %v2931, %v2927
        %v2980 = vpack.c.b16 %v2932, %v2928
        %v2981 = vpack.c.b16 %v2933, %v2929
        %v2982 = vpack.c.b16 %v2934, %v2930
        %v2983 = vpack.c.b16 %v2939, %v2935
        %v2984 = vpack.c.b16 %v2940, %v2936
        %v2985 = vpack.c.b16 %v2941, %v2937
        %v2986 = vpack.c.b16 %v2942, %v2938
        %v2987 = vpack.c.b16 %v2947, %v2943
        %v2988 = vpack.c.b16 %v2948, %v2944
        %v2989 = vpack.c.b16 %v2949, %v2945
        %v2990 = vpack.c.b16 %v2950, %v2946
        %v2991 = vpack.c.b16 %v2955, %v2951
        %v2992 = vpack.c.b16 %v2956, %v2952
        %v2993 = vpack.c.b16 %v2957, %v2953
        %v2994 = vpack.c.b16 %v2958, %v2954
        %v2995 = vpack.c.b16 %v2963, %v2959
        %v2996 = vpack.c.b16 %v2964, %v2960
        %v2997 = vpack.c.b16 %v2965, %v2961
        %v2998 = vpack.c.b16 %v2966, %v2962
        %3031 = vmatprep.subr.bf16.mxu0 %v2996
        %3032 = vmatpush1.bf16.msra.mxu0 %v2995
        %3033 = vmatprep.subr.bf16.mxu0 %v2992
        %3034 = vmatpush1.bf16.msra.mxu0 %v2991
        %3035 = vmatprep.subr.bf16.mxu0 %v2988
        %3036 = vmatpush1.bf16.msra.mxu0 %v2987
        %3037 = vmatprep.subr.bf16.mxu0 %v2984
        %3038 = vmatpush1.bf16.msra.mxu0 %v2983
        %3039 = vmatprep.subr.bf16.mxu0 %v2980
        %3040 = vmatpush1.bf16.msra.mxu0 %v2979
        %3041 = vmatprep.subr.bf16.mxu0 %v2976
        %3042 = vmatpush1.bf16.msra.mxu0 %v2975
        %3043 = vmatprep.subr.bf16.mxu0 %v2972
        %3044 = vmatpush1.bf16.msra.mxu0 %v2971
        %3045 = vmatprep.subr.bf16.mxu0 %v2968
        %3046 = vmatpush1.bf16.msra.mxu0 %v2967
        %3047 = vmatprep.subr.bf16.mxu0 0
        %3048 = vmatpush2.bf16.msra.mxu0 0
        %3049 = vmatprep.subr.bf16.mxu0 0
        %3050 = vmatpush2.bf16.msra.mxu0 0
        %3051 = vmatprep.subr.bf16.mxu0 0
        %3052 = vmatpush2.bf16.msra.mxu0 0
        %3053 = vmatprep.subr.bf16.mxu0 0
        %3054 = vmatpush2.bf16.msra.mxu0 0
        %3055 = vmatprep.subr.bf16.mxu0 0
        %3056 = vmatpush2.bf16.msra.mxu0 0
        %3057 = vmatprep.subr.bf16.mxu0 0
        %3058 = vmatpush2.bf16.msra.mxu0 0
        %3059 = vmatprep.subr.bf16.mxu0 0
        %3060 = vmatpush2.bf16.msra.mxu0 0
        %3061 = vmatprep.subr.bf16.mxu0 0
        %3062 = vmatpush2.bf16.msra.mxu0 0
        %3063 = vmatprep.mubr.bf16.mxu0 0
        %3064 = vmatmul.mubr.bf16.gmra.mxu0 %v2869
        %v3065 = vpop.f32.mrf.mxu0
        %v3066 = vadd.f32 0.0, %v3065
        %v3067 = vpop.f32.mrf.mxu0
        %v3068 = vadd.f32 0.0, %v3067
        %v3069 = vpop.f32.mrf.mxu0
        %v3070 = vpop.f32.mrf.mxu0
        %3071 = vdwg.mxu0
        %3072 = vmatprep.subr.bf16.mxu0 %v2998
        %3073 = vmatpush1.bf16.msra.mxu0 %v2997
        %3074 = vmatprep.subr.bf16.mxu0 %v2994
        %3075 = vmatpush1.bf16.msra.mxu0 %v2993
        %3076 = vmatprep.subr.bf16.mxu0 %v2990
        %3077 = vmatpush1.bf16.msra.mxu0 %v2989
        %3078 = vmatprep.subr.bf16.mxu0 %v2986
        %3079 = vmatpush1.bf16.msra.mxu0 %v2985
        %3080 = vmatprep.subr.bf16.mxu0 %v2982
        %3081 = vmatpush1.bf16.msra.mxu0 %v2981
        %3082 = vmatprep.subr.bf16.mxu0 %v2978
        %3083 = vmatpush1.bf16.msra.mxu0 %v2977
        %3084 = vmatprep.subr.bf16.mxu0 %v2974
        %3085 = vmatpush1.bf16.msra.mxu0 %v2973
        %3086 = vmatprep.subr.bf16.mxu0 %v2970
        %3087 = vmatpush1.bf16.msra.mxu0 %v2969
        %3088 = vmatprep.subr.bf16.mxu0 0
        %3089 = vmatpush2.bf16.msra.mxu0 0
        %3090 = vmatprep.subr.bf16.mxu0 0
        %3091 = vmatpush2.bf16.msra.mxu0 0
        %3092 = vmatprep.subr.bf16.mxu0 0
        %3093 = vmatpush2.bf16.msra.mxu0 0
        %3094 = vmatprep.subr.bf16.mxu0 0
        %3095 = vmatpush2.bf16.msra.mxu0 0
        %3096 = vmatprep.subr.bf16.mxu0 0
        %3097 = vmatpush2.bf16.msra.mxu0 0
        %3098 = vmatprep.subr.bf16.mxu0 0
        %3099 = vmatpush2.bf16.msra.mxu0 0
        %3100 = vmatprep.subr.bf16.mxu0 0
        %3101 = vmatpush2.bf16.msra.mxu0 0
        %3102 = vmatprep.subr.bf16.mxu0 0
        %3103 = vmatpush2.bf16.msra.mxu0 0
        %3104 = vmatprep.mubr.bf16.mxu0 0
        %3105 = vmatmul.mubr.bf16.gmra.mxu0 %v2869
        %v3106 = vpop.f32.mrf.mxu0
        %v3107 = vadd.f32 0.0, %v3106
        %v3108 = vpop.f32.mrf.mxu0
        %v3109 = vadd.f32 0.0, %v3108
        %v3110 = vpop.f32.mrf.mxu0
        %v3111 = vpop.f32.mrf.mxu0
        %3112 = vdwg.mxu0
        %v3113 = vsub.f32 0.0, %v3066
        %v3114 = vsub.f32 0.0, %v3068
        %v3115 = vmul.f32 %v3113, 1.442695
        %v3116 = vpow.pop %v3115
        %v3117 = vmul.f32 %v3114, 1.442695
        %v3118 = vpow.pop %v3117
        %v3119 = vadd.f32 %v3116, 1.0
        %v3120 = vadd.f32 %v3118, 1.0
        %v3121 = vrcp.pop %v3119
        %v3122 = vrcp.pop %v3120
        %v3123 = vmul.f32 %v3066, %v3121
        %v3124 = vmul.f32 %v3068, %v3122
        %v3125 = vmul.f32 %v3123, %v3107
        %v3126 = vmul.f32 %v3124, %v3109
        %v3127 = vpack.c.bf16 %v3125, %v3125
        %v3128 = vpack.c.bf16 %v3126, %v3126
        %s3129 = scalar_lea.vmem [#allocation14], 128
        %v3130 = vld [vmem:[%s3129] sm:$0xf]
        %v3131 = vld [vmem:[%s3129 + $0x4] sm:$0xf]
        %v3132 = vld [vmem:[%s3129 + $0x8] sm:$0xf]
        %v3133 = vld [vmem:[%s3129 + $0xc] sm:$0xf]
        %v3134 = vld [vmem:[%s3129 + $0x10] sm:$0xf]
        %v3135 = vld [vmem:[%s3129 + $0x14] sm:$0xf]
        %v3136 = vld [vmem:[%s3129 + $0x18] sm:$0xf]
        %v3137 = vld [vmem:[%s3129 + $0x1c] sm:$0xf]
        %v3138 = vld [vmem:[%s3129 + $0x20] sm:$0xf]
        %v3139 = vld [vmem:[%s3129 + $0x24] sm:$0xf]
        %v3140 = vld [vmem:[%s3129 + $0x28] sm:$0xf]
        %v3141 = vld [vmem:[%s3129 + $0x2c] sm:$0xf]
        %v3142 = vld [vmem:[%s3129 + $0x30] sm:$0xf]
        %v3143 = vld [vmem:[%s3129 + $0x34] sm:$0xf]
        %v3144 = vld [vmem:[%s3129 + $0x38] sm:$0xf]
        %v3145 = vld [vmem:[%s3129 + $0x3c] sm:$0xf]
        %v3146 = vld [vmem:[%s3129 + $0x40] sm:$0xf]
        %v3147 = vld [vmem:[%s3129 + $0x44] sm:$0xf]
        %v3148 = vld [vmem:[%s3129 + $0x48] sm:$0xf]
        %v3149 = vld [vmem:[%s3129 + $0x4c] sm:$0xf]
        %v3150 = vld [vmem:[%s3129 + $0x50] sm:$0xf]
        %v3151 = vld [vmem:[%s3129 + $0x54] sm:$0xf]
        %v3152 = vld [vmem:[%s3129 + $0x58] sm:$0xf]
        %v3153 = vld [vmem:[%s3129 + $0x5c] sm:$0xf]
        %v3154 = vld [vmem:[%s3129 + $0x60] sm:$0xf]
        %v3155 = vld [vmem:[%s3129 + $0x64] sm:$0xf]
        %v3156 = vld [vmem:[%s3129 + $0x68] sm:$0xf]
        %v3157 = vld [vmem:[%s3129 + $0x6c] sm:$0xf]
        %v3158 = vld [vmem:[%s3129 + $0x70] sm:$0xf]
        %v3159 = vld [vmem:[%s3129 + $0x74] sm:$0xf]
        %v3160 = vld [vmem:[%s3129 + $0x78] sm:$0xf]
        %v3161 = vld [vmem:[%s3129 + $0x7c] sm:$0xf]
        %v3194 = vunpack.c.l.b16 %v3130
        %v3195 = vunpack.c.l.b16 %v3131
        %v3196 = vunpack.c.l.b16 %v3132
        %v3197 = vunpack.c.l.b16 %v3133
        %v3198 = vunpack.c.l.b16 %v3134
        %v3199 = vunpack.c.l.b16 %v3135
        %v3200 = vunpack.c.l.b16 %v3136
        %v3201 = vunpack.c.l.b16 %v3137
        %v3202 = vunpack.c.l.b16 %v3138
        %v3203 = vunpack.c.l.b16 %v3139
        %v3204 = vunpack.c.l.b16 %v3140
        %v3205 = vunpack.c.l.b16 %v3141
        %v3206 = vunpack.c.l.b16 %v3142
        %v3207 = vunpack.c.l.b16 %v3143
        %v3208 = vunpack.c.l.b16 %v3144
        %v3209 = vunpack.c.l.b16 %v3145
        %v3210 = vunpack.c.l.b16 %v3146
        %v3211 = vunpack.c.l.b16 %v3147
        %v3212 = vunpack.c.l.b16 %v3148
        %v3213 = vunpack.c.l.b16 %v3149
        %v3214 = vunpack.c.l.b16 %v3150
        %v3215 = vunpack.c.l.b16 %v3151
        %v3216 = vunpack.c.l.b16 %v3152
        %v3217 = vunpack.c.l.b16 %v3153
        %v3218 = vunpack.c.l.b16 %v3154
        %v3219 = vunpack.c.l.b16 %v3155
        %v3220 = vunpack.c.l.b16 %v3156
        %v3221 = vunpack.c.l.b16 %v3157
        %v3222 = vunpack.c.l.b16 %v3158
        %v3223 = vunpack.c.l.b16 %v3159
        %v3224 = vunpack.c.l.b16 %v3160
        %v3225 = vunpack.c.l.b16 %v3161
        %v3226 = vpack.c.b16 %v3195, %v3194
        %v3227 = vpack.c.b16 %v3197, %v3196
        %v3228 = vpack.c.b16 %v3199, %v3198
        %v3229 = vpack.c.b16 %v3201, %v3200
        %v3230 = vpack.c.b16 %v3203, %v3202
        %v3231 = vpack.c.b16 %v3205, %v3204
        %v3232 = vpack.c.b16 %v3207, %v3206
        %v3233 = vpack.c.b16 %v3209, %v3208
        %v3234 = vpack.c.b16 %v3211, %v3210
        %v3235 = vpack.c.b16 %v3213, %v3212
        %v3236 = vpack.c.b16 %v3215, %v3214
        %v3237 = vpack.c.b16 %v3217, %v3216
        %v3238 = vpack.c.b16 %v3219, %v3218
        %v3239 = vpack.c.b16 %v3221, %v3220
        %v3240 = vpack.c.b16 %v3223, %v3222
        %v3241 = vpack.c.b16 %v3225, %v3224
        %3258 = vmatprep.subr.bf16.mxu0 0
        %3259 = vmatpush1.bf16.msra.mxu0 %v3233
        %3260 = vmatprep.subr.bf16.mxu0 0
        %3261 = vmatpush1.bf16.msra.mxu0 %v3232
        %3262 = vmatprep.subr.bf16.mxu0 0
        %3263 = vmatpush1.bf16.msra.mxu0 %v3231
        %3264 = vmatprep.subr.bf16.mxu0 0
        %3265 = vmatpush1.bf16.msra.mxu0 %v3230
        %3266 = vmatprep.subr.bf16.mxu0 0
        %3267 = vmatpush1.bf16.msra.mxu0 %v3229
        %3268 = vmatprep.subr.bf16.mxu0 0
        %3269 = vmatpush1.bf16.msra.mxu0 %v3228
        %3270 = vmatprep.subr.bf16.mxu0 0
        %3271 = vmatpush1.bf16.msra.mxu0 %v3227
        %3272 = vmatprep.subr.bf16.mxu0 0
        %3273 = vmatpush1.bf16.msra.mxu0 %v3226
        %3274 = vmatprep.subr.bf16.mxu0 0
        %3275 = vmatpush2.bf16.msra.mxu0 %v3241
        %3276 = vmatprep.subr.bf16.mxu0 0
        %3277 = vmatpush2.bf16.msra.mxu0 %v3240
        %3278 = vmatprep.subr.bf16.mxu0 0
        %3279 = vmatpush2.bf16.msra.mxu0 %v3239
        %3280 = vmatprep.subr.bf16.mxu0 0
        %3281 = vmatpush2.bf16.msra.mxu0 %v3238
        %3282 = vmatprep.subr.bf16.mxu0 0
        %3283 = vmatpush2.bf16.msra.mxu0 %v3237
        %3284 = vmatprep.subr.bf16.mxu0 0
        %3285 = vmatpush2.bf16.msra.mxu0 %v3236
        %3286 = vmatprep.subr.bf16.mxu0 0
        %3287 = vmatpush2.bf16.msra.mxu0 %v3235
        %3288 = vmatprep.subr.bf16.mxu0 0
        %3289 = vmatpush2.bf16.msra.mxu0 %v3234
        %3290 = vmatprep.mubr.bf16.mxu0 %v3128
        %3291 = vmatmul.mubr.bf16.gmra.mxu0 %v3127
        %v3292 = vpop.f32.mrf.mxu0
        %v3293 = vadd.f32 0.0, %v3292
        %v3294 = vpop.f32.mrf.mxu0
        %v3295 = vpop.f32.mrf.mxu0
        %v3296 = vpop.f32.mrf.mxu0
        %3297 = vdwg.mxu0
        %v3299 = vrot.slane %v3293, 1
        %v3301 = vadd.f32 %v2812, %v3299
        %v3302 = vld [vmem:[%s7] sm:$0x1]
        %v3303 = vunpack.c.l.bf16 %v3302
        %v3304 = vmul.f32 %v3301, %v3301
        %v3305 = vsel %vm2817, %v3304, 0.0
        %3306 = vadd.xlane.f32.xlu0 %v3305
        %v3307 = vpop.xlane.xlu0 %3306
        %v3308 = vmul.f32 %v3307, %v639
        %v3309 = vadd.f32 %v3308, 1e-06
        %v3310 = vrsqrt.pop %v3309
        %v3311 = vmul.f32 %v3301, %v3310
        %v3313 = vlaneseq
        %v3314 = vshrl.u32 %v3313, 7
        %v3315 = vsub.s32 0, %v3314
        %v3316 = vrot.slane %v3303, %v3315
        %v3318 = vmul.f32 %v3311, %v3316
        %v3319 = vpack.c.bf16 %v3318, %v3318
        %v3320 = vld [vmem:[#allocation16] sm:$0xf]
        %v3321 = vld [vmem:[#allocation16 + $0x4] sm:$0xf]
        %v3322 = vld [vmem:[#allocation16 + $0x8] sm:$0xf]
        %v3323 = vld [vmem:[#allocation16 + $0xc] sm:$0xf]
        %v3324 = vld [vmem:[#allocation16 + $0x10] sm:$0xf]
        %v3325 = vld [vmem:[#allocation16 + $0x14] sm:$0xf]
        %v3326 = vld [vmem:[#allocation16 + $0x18] sm:$0xf]
        %v3327 = vld [vmem:[#allocation16 + $0x1c] sm:$0xf]
        %v3328 = vld [vmem:[#allocation16 + $0x20] sm:$0xf]
        %v3329 = vld [vmem:[#allocation16 + $0x24] sm:$0xf]
        %v3330 = vld [vmem:[#allocation16 + $0x28] sm:$0xf]
        %v3331 = vld [vmem:[#allocation16 + $0x2c] sm:$0xf]
        %v3332 = vld [vmem:[#allocation16 + $0x30] sm:$0xf]
        %v3333 = vld [vmem:[#allocation16 + $0x34] sm:$0xf]
        %v3334 = vld [vmem:[#allocation16 + $0x38] sm:$0xf]
        %v3335 = vld [vmem:[#allocation16 + $0x3c] sm:$0xf]
        %v3336 = vld [vmem:[%s13] sm:$0x1]
        %v3338 = vshrl.u32 %v3319, 16
        %v3340 = vrot.slane %v3338, 3
        %v3358 = vunpack.c.l.b16 %v3320
        %v3359 = vunpack.c.l.b16 %v3321
        %v3360 = vunpack.c.l.b16 %v3322
        %v3361 = vunpack.c.l.b16 %v3323
        %v3362 = vunpack.c.l.b16 %v3324
        %v3363 = vunpack.c.l.b16 %v3325
        %v3364 = vunpack.c.l.b16 %v3326
        %v3365 = vunpack.c.l.b16 %v3327
        %v3366 = vunpack.c.l.b16 %v3328
        %v3367 = vunpack.c.l.b16 %v3329
        %v3368 = vunpack.c.l.b16 %v3330
        %v3369 = vunpack.c.l.b16 %v3331
        %v3370 = vunpack.c.l.b16 %v3332
        %v3371 = vunpack.c.l.b16 %v3333
        %v3372 = vunpack.c.l.b16 %v3334
        %v3373 = vunpack.c.l.b16 %v3335
        %v3374 = vpack.c.b16 %v3359, %v3358
        %v3375 = vpack.c.b16 %v3361, %v3360
        %v3376 = vpack.c.b16 %v3363, %v3362
        %v3377 = vpack.c.b16 %v3365, %v3364
        %v3378 = vpack.c.b16 %v3367, %v3366
        %v3379 = vpack.c.b16 %v3369, %v3368
        %v3380 = vpack.c.b16 %v3371, %v3370
        %v3381 = vpack.c.b16 %v3373, %v3372
        %3390 = vmatprep.subr.bf16.mxu0 0
        %3391 = vmatpush1.bf16.msra.mxu0 %v3381
        %3392 = vmatprep.subr.bf16.mxu0 0
        %3393 = vmatpush1.bf16.msra.mxu0 %v3380
        %3394 = vmatprep.subr.bf16.mxu0 0
        %3395 = vmatpush1.bf16.msra.mxu0 %v3379
        %3396 = vmatprep.subr.bf16.mxu0 0
        %3397 = vmatpush1.bf16.msra.mxu0 %v3378
        %3398 = vmatprep.subr.bf16.mxu0 0
        %3399 = vmatpush1.bf16.msra.mxu0 %v3377
        %3400 = vmatprep.subr.bf16.mxu0 0
        %3401 = vmatpush1.bf16.msra.mxu0 %v3376
        %3402 = vmatprep.subr.bf16.mxu0 0
        %3403 = vmatpush1.bf16.msra.mxu0 %v3375
        %3404 = vmatprep.subr.bf16.mxu0 0
        %3405 = vmatpush1.bf16.msra.mxu0 %v3374
        %3406 = vmatprep.subr.bf16.mxu0 0
        %3407 = vmatpush2.bf16.msra.mxu0 0
        %3408 = vmatprep.subr.bf16.mxu0 0
        %3409 = vmatpush2.bf16.msra.mxu0 0
        %3410 = vmatprep.subr.bf16.mxu0 0
        %3411 = vmatpush2.bf16.msra.mxu0 0
        %3412 = vmatprep.subr.bf16.mxu0 0
        %3413 = vmatpush2.bf16.msra.mxu0 0
        %3414 = vmatprep.subr.bf16.mxu0 0
        %3415 = vmatpush2.bf16.msra.mxu0 0
        %3416 = vmatprep.subr.bf16.mxu0 0
        %3417 = vmatpush2.bf16.msra.mxu0 0
        %3418 = vmatprep.subr.bf16.mxu0 0
        %3419 = vmatpush2.bf16.msra.mxu0 0
        %3420 = vmatprep.subr.bf16.mxu0 0
        %3421 = vmatpush2.bf16.msra.mxu0 0
        %3422 = vmatprep.mubr.bf16.mxu0 0
        %3423 = vmatmul.mubr.bf16.gmra.mxu0 %v3340
        %v3424 = vpop.f32.mrf.mxu0
        %v3425 = vadd.f32 %v3336, %v3424
        %v3426 = vpop.f32.mrf.mxu0
        %v3427 = vpop.f32.mrf.mxu0
        %v3428 = vpop.f32.mrf.mxu0
        %3429 = vdwg.mxu0
        %3430 = vst [vmem:[%s612] sm:$0x1] %v3425
        %s3431 = sand.u32 %s349, 1
        %s3432 = scalar_lea.sflag [#allocation4], %s3431
        %s3433 = sand.u32 %s349, 1
        %s3434 = scalar_lea.vmem [#allocation17], %s3433
        // Predicated region
        $region113: #{tpu_custom_call.1} parent=75 // pred_check
          %p3435 = pneg %p359
        $region114: #{tpu_custom_call.1} parent=75 // pred_check_branch
          %3437 = sbr.rel (%p3435) target = $region116
        $region115: #{tpu_custom_call.1} parent=75 // pred_region
          %s3439 = ssub.s32 16, 16
          %3440 = vsyncadd %s3432, %s3439
          %s3441 = smul.addr %s37, 16
          %s3442 = scalar_lea.hbm %s14, %s3441
          %s3444 = sshll.u32 %s3434, 4
          %s3445 = int_to_ptr.vmem [resolvable:$true] %s3444
          %3447 = dma.vmem_to_hbm [thread:$0]  %s3445, 16, %s3442, %s3432
        $region116: #{tpu_custom_call.1} parent=75 // pred_fallthru
          _
      $region76: #{tpu_custom_call.1} parent=5 // pred_fallthru
        _
      %p3448 = scmp.le.s32.totalorder 2, %s32
      // Predicated region
      $region117: #{tpu_custom_call.1} parent=5 // pred_check
        %p3449 = pneg %p3448
      $region118: #{tpu_custom_call.1} parent=5 // pred_check_branch
        %3451 = sbr.rel (%p3449) target = $region120
      $region119: #{tpu_custom_call.1} parent=5 // pred_region
        %s3452 = ssub.s32 %s32, 2
        // Predicated region
        $region121: #{tpu_custom_call.1} parent=119 // pred_check
          %p3453 = pneg %p365
        $region122: #{tpu_custom_call.1} parent=119 // pred_check_branch
          %3455 = sbr.rel (%p3453) target = $region124
        $region123: #{tpu_custom_call.1} parent=119 // pred_region
          %s3456 = sand.u32 %s350, 1
          %s3457 = scalar_lea.sflag [#allocation4], %s3456
          %s3458 = sand.u32 %s350, 1
          %s3459 = scalar_lea.vmem [#allocation17], %s3458
          %3460 = dma.done %s3457, 16
        $region124: #{tpu_custom_call.1} parent=119 // pred_fallthru
          _
      $region120: #{tpu_custom_call.1} parent=5 // pred_fallthru
        _
    $region6: #{tpu_custom_call.1} parent=1 // loop_footer
      %s36 = sadd.s32 1, %s32
    $region7: #{tpu_custom_call.1} parent=1 // loop_footer_branch
      %31 = sbr.rel target = $region3
    $region8: #{tpu_custom_call.1} parent=1 // loop_exit
      _
    %3461 = vsyncpa [#allocation3], 1
    %s3462 = scalar_lea.sflag [#allocation3], 1
    %3463 = vsyncpa %s3462, 1
    %3464 = vsyncpa [#allocation6], 1
    %s3465 = scalar_lea.sflag [#allocation6], 1
    %3466 = vsyncpa %s3465, 1
    %3467 = vsyncpa [#allocation9], 1
    %3468 = vsyncpa [#allocation12], 1
    %3469 = vsyncpa [#allocation15], 1
    %3470 = vsyncpa [#allocation4], 1
    %s3471 = scalar_lea.sflag [#allocation4], 1
    %3472 = vsyncpa %s3471, 1

</llo_original>
